<compile_context>
chip_gen: v7x
topology: tpu7x:2x2x1
jax: 0.10.0
libtpu: 0.0.40
codegen_flags: <defaults>
</compile_context>

<pallas_src>
import jax
import jax.numpy as jnp
import numpy as np
from jax import lax
from jax.experimental import pallas as pl
from jax.experimental.pallas import tpu as pltpu

EPS = 1e-5


# --------------------------------------------------------------------------
# Kernel: fused BN(scale/shift) -> ReLU -> 3x3 conv for one NHWC image,
# expressed as 3 whole-image GEMMs against banded weight slabs.
# --------------------------------------------------------------------------
def _conv_block_kernel(x_ref, scale_ref, shift_ref, wb_ref, bias_ref, o_ref,
                       xpad_ref):
    """Shapes (per grid step / image):

    x_ref:     (H, W*Cin)          f32   flattened input image
    scale_ref: (1, W*Cin)          f32   BN scale, per-channel tiled along W
    shift_ref: (1, W*Cin)          f32   BN shift, per-channel tiled along W
    wb_ref:    (3, W*Cin, W*Cout)  bf16  banded weight slab per vertical tap
    bias_ref:  (1, W*Cout)         f32   conv bias, tiled along W
    o_ref:     (H, W*Cout)         f32   flattened output (lane dense)
    xpad_ref:  (H+2, W*Cin)        f32   VMEM scratch with 2 zero halo rows
    """
    hh, kk = x_ref.shape

    # BatchNorm (folded) + ReLU, all in f32 on the VPU.
    xr = jnp.maximum(x_ref[...] * scale_ref[...] + shift_ref[...], 0.0)

    # Row-padded copy: only the 2 halo rows are zeroed (not the full scratch).
    xpad_ref[0:1, :] = jnp.zeros((1, kk), jnp.float32)
    xpad_ref[hh + 1:hh + 2, :] = jnp.zeros((1, kk), jnp.float32)
    xpad_ref[1:hh + 1, :] = xr

    # Three whole-image GEMMs (one per vertical tap ky); bf16 in, f32 accum.
    acc = None
    for ky in range(3):
        a = xpad_ref[ky:ky + hh, :].astype(jnp.bfloat16)
        part = jnp.dot(a, wb_ref[ky], preferred_element_type=jnp.float32)
        acc = part if acc is None else acc + part

    o_ref[...] = (acc + bias_ref[...]).astype(o_ref.dtype)


# --------------------------------------------------------------------------
# Wrapper-side weight preparation: banded (Toeplitz-like) slabs so the
# horizontal taps + zero padding become part of a single GEMM per ky.
#   B[ky, wi*Cin + ci, wo*Cout + co] = W[ky, wi - wo + 1, ci, co]
#   (zero where wi - wo + 1 is outside [0, 3))
# --------------------------------------------------------------------------
def _build_banded_weights(w_hwio, width):
    kh, kw, cin, cout = w_hwio.shape                    # (3, 3, Cin, Cout)
    wi = jnp.arange(width)[:, None]                     # input column
    wo = jnp.arange(width)[None, :]                     # output column
    kx = wi - wo + 1                                    # (W, W)
    valid = (kx >= 0) & (kx < kw)
    kxc = jnp.clip(kx, 0, kw - 1)
    gathered = w_hwio[:, kxc]                           # (3, W, W, Cin, Cout)
    banded = jnp.where(valid[None, :, :, None, None], gathered, 0.0)
    banded = banded.transpose(0, 1, 3, 2, 4)            # (3, W, Cin, W, Cout)
    return banded.reshape(kh, width * cin, width * cout)


def conv_block_apply(x_nhwc, params):
    """BatchNorm2d (training-mode batch stats) -> ReLU -> Conv2d(3x3, pad=1)."""
    n, h, w, cin = x_nhwc.shape
    cout = params["w"].shape[-1]

    # Batch statistics with plain XLA reductions (stable two-pass variance).
    mean = jnp.mean(x_nhwc, axis=(0, 1, 2))
    var = jnp.mean(jnp.square(x_nhwc - mean), axis=(0, 1, 2))
    scale = params["gamma"] * lax.rsqrt(var + EPS)      # fold BN into a*x + b
    shift = params["beta"] - mean * scale

    scale_t = jnp.tile(scale, w).reshape(1, w * cin).astype(jnp.float32)
    shift_t = jnp.tile(shift, w).reshape(1, w * cin).astype(jnp.float32)
    bias_t = jnp.tile(params["b"], w).reshape(1, w * cout).astype(jnp.float32)
    wb = _build_banded_weights(params["w"], w).astype(jnp.bfloat16)

    x2 = x_nhwc.reshape(n, h, w * cin).astype(jnp.float32)   # free reshape

    out2 = pl.pallas_call(
        _conv_block_kernel,
        out_shape=jax.ShapeDtypeStruct((n, h, w * cout), jnp.float32),
        grid=(n,),
        in_specs=[
            pl.BlockSpec((None, h, w * cin), lambda i: (i, 0, 0)),
            pl.BlockSpec((1, w * cin), lambda i: (0, 0)),
            pl.BlockSpec((1, w * cin), lambda i: (0, 0)),
            pl.BlockSpec((3, w * cin, w * cout), lambda i: (0, 0, 0)),
            pl.BlockSpec((1, w * cout), lambda i: (0, 0)),
        ],
        out_specs=pl.BlockSpec((None, h, w * cout), lambda i: (i, 0, 0)),
        scratch_shapes=[pltpu.VMEM((h + 2, w * cin), jnp.float32)],
        compiler_params=pltpu.CompilerParams(
            dimension_semantics=("parallel",),
            vmem_limit_bytes=32 * 1024 * 1024),
    )(x2, scale_t, shift_t, wb, bias_t)

    return out2.reshape(n, h, w, cout)


# --------------------------------------------------------------------------
# DenseBlock forward: x = cat(x, conv_block(x)) for each block (NCHW I/O).
# --------------------------------------------------------------------------
@jax.jit
def dense_block_forward(x_nchw, block_params):
    x = jnp.transpose(x_nchw, (0, 2, 3, 1))              # NCHW -> NHWC
    for p in block_params:
        y = conv_block_apply(x, p)
        x = jnp.concatenate([x, y], axis=-1)             # dense channel concat
    return jnp.transpose(x, (0, 3, 1, 2))                # NHWC -> NCHW


def init_dense_block_params(key, in_channels, out_channels, num_convs):
    params = []
    for i in range(num_convs):
        cin = in_channels + i * out_channels
        key, k1, k2, k3, k4 = jax.random.split(key, 5)
        params.append({
            "gamma": 1.0 + 0.1 * jax.random.normal(k1, (cin,), jnp.float32),
            "beta": 0.1 * jax.random.normal(k2, (cin,), jnp.float32),
            # HWIO conv weight (PyTorch OIHW transposed to (H, W, I, O)).
            "w": 0.1 * jax.random.normal(k3, (3, 3, cin, out_channels),
                                         jnp.float32),
            "b": 0.1 * jax.random.normal(k4, (out_channels,), jnp.float32),
        })
    return params


# --------------------------------------------------------------------------
# Pure-JAX references (correctness checks only).
# --------------------------------------------------------------------------
def _conv_block_ref(x_nhwc, p, matmul_dtype):
    mean = jnp.mean(x_nhwc, axis=(0, 1, 2))
    var = jnp.mean(jnp.square(x_nhwc - mean), axis=(0, 1, 2))
    scale = p["gamma"] * lax.rsqrt(var + EPS)
    shift = p["beta"] - mean * scale
    xr = jnp.maximum(x_nhwc * scale + shift, 0.0)
    y = lax.conv_general_dilated(
        xr.astype(matmul_dtype), p["w"].astype(matmul_dtype),
        window_strides=(1, 1), padding="SAME",
        dimension_numbers=("NHWC", "HWIO", "NHWC"),
        preferred_element_type=jnp.float32) + p["b"]
    return y


def _dense_block_ref(x_nchw, block_params, matmul_dtype):
    x = jnp.transpose(x_nchw, (0, 2, 3, 1))
    for p in block_params:
        y = _conv_block_ref(x, p, matmul_dtype)
        x = jnp.concatenate([x, y], axis=-1)
    return jnp.transpose(x, (0, 3, 1, 2))


if __name__ == "__main__":
    in_channels, out_channels, num_convs = 4, 8, 3
    N, H, W = 2, 16, 16

    key = jax.random.PRNGKey(0)
    key, kx = jax.random.split(key)
    x = jax.random.normal(kx, (N, in_channels, H, W), jnp.float32)  # NCHW
    params = init_dense_block_params(key, in_channels, out_channels, num_convs)

    out = jax.block_until_ready(dense_block_forward(x, params))

    expected_channels = in_channels + num_convs * out_channels
    assert out.shape == (N, expected_channels, H, W), out.shape

    # Strict check: reference that also performs the matmuls in bf16 (same
    # rounding points as the kernel's MXU path).
    ref_bf16 = jax.block_until_ready(_dense_block_ref(x, params, jnp.bfloat16))
    np.testing.assert_allclose(np.asarray(out), np.asarray(ref_bf16),
                               atol=2e-3, rtol=2e-3)

    # Sanity check against the full-f32 reference (original module semantics);
    # tolerance accounts for bf16 MXU inputs.
    ref_f32 = jax.block_until_ready(_dense_block_ref(x, params, jnp.float32))
    np.testing.assert_allclose(np.asarray(out), np.asarray(ref_f32),
                               atol=5e-2, rtol=5e-2)

    print("KERNEL_OK")
</pallas_src>

<mosaic_0001>
module attributes {stable_mosaic.version = 11 : i64} {
  func.func @_conv_block_kernel(%arg0: i32, %arg1: memref<1x16x64xf32, #tpu.memory_space<vmem>>, %arg2: memref<1x64xf32, #tpu.memory_space<vmem>>, %arg3: memref<1x64xf32, #tpu.memory_space<vmem>>, %arg4: memref<3x64x128xbf16, #tpu.memory_space<vmem>>, %arg5: memref<1x128xf32, #tpu.memory_space<vmem>>, %arg6: memref<1x16x128xf32, #tpu.memory_space<vmem>>, %arg7: memref<18x64xf32, #tpu.memory_space<vmem>>) attributes {dimension_semantics = [#tpu.dimension_semantics<parallel>], iteration_bounds = array<i64: 2>, scalar_prefetch = 0 : i64, scratch_operands = 1 : i64, tpu.core_type = #tpu.core_type<tc>, window_params = [{transform_indices = @transform_0, window_bounds = array<i64: 1, 16, 64>}, {pipeline_mode = #tpu.pipeline_mode<synchronous>, transform_indices = @transform_1, window_bounds = array<i64: 1, 64>}, {pipeline_mode = #tpu.pipeline_mode<synchronous>, transform_indices = @transform_2, window_bounds = array<i64: 1, 64>}, {pipeline_mode = #tpu.pipeline_mode<synchronous>, transform_indices = @transform_3, window_bounds = array<i64: 3, 64, 128>}, {pipeline_mode = #tpu.pipeline_mode<synchronous>, transform_indices = @transform_4, window_bounds = array<i64: 1, 128>}, {transform_indices = @transform_5, window_bounds = array<i64: 1, 16, 128>}]} {
    %c0 = arith.constant 0 : index
    %c0_0 = arith.constant 0 : index
    %c0_1 = arith.constant 0 : index
    %0 = vector.load %arg1[%c0, %c0_0, %c0_1] : memref<1x16x64xf32, #tpu.memory_space<vmem>>, vector<1x16x64xf32>
    %1 = vector.shape_cast %0 : vector<1x16x64xf32> to vector<16x64xf32>
    %c0_2 = arith.constant 0 : index
    %c0_3 = arith.constant 0 : index
    %2 = vector.load %arg2[%c0_2, %c0_3] : memref<1x64xf32, #tpu.memory_space<vmem>>, vector<1x64xf32>
    %3 = vector.broadcast %2 : vector<1x64xf32> to vector<16x64xf32>
    %4 = arith.mulf %1, %3 : vector<16x64xf32>
    %c0_4 = arith.constant 0 : index
    %c0_5 = arith.constant 0 : index
    %5 = vector.load %arg3[%c0_4, %c0_5] : memref<1x64xf32, #tpu.memory_space<vmem>>, vector<1x64xf32>
    %6 = vector.broadcast %5 : vector<1x64xf32> to vector<16x64xf32>
    %7 = arith.addf %4, %6 : vector<16x64xf32>
    %cst = arith.constant 0.000000e+00 : f32
    %8 = vector.broadcast %cst : f32 to vector<16x64xf32>
    %9 = arith.maximumf %7, %8 : vector<16x64xf32>
    %cst_6 = arith.constant 0.000000e+00 : f32
    %10 = vector.broadcast %cst_6 : f32 to vector<1x64xf32>
    %c0_7 = arith.constant 0 : index
    %c0_8 = arith.constant 0 : index
    %11 = vector.load %arg7[%c0_7, %c0_8] : memref<18x64xf32, #tpu.memory_space<vmem>>, vector<1x64xf32>
    tpu.vector_store %arg7[%c0_7, %c0_8], %10 {strides = array<i32>} : memref<18x64xf32, #tpu.memory_space<vmem>>, vector<1x64xf32>,
    %cst_9 = arith.constant 0.000000e+00 : f32
    %12 = vector.broadcast %cst_9 : f32 to vector<1x64xf32>
    %c17 = arith.constant 17 : index
    %c0_10 = arith.constant 0 : index
    %13 = vector.load %arg7[%c17, %c0_10] : memref<18x64xf32, #tpu.memory_space<vmem>>, vector<1x64xf32>
    tpu.vector_store %arg7[%c17, %c0_10], %12 {strides = array<i32>} : memref<18x64xf32, #tpu.memory_space<vmem>>, vector<1x64xf32>,
    %c1 = arith.constant 1 : index
    %c0_11 = arith.constant 0 : index
    %14 = vector.load %arg7[%c1, %c0_11] : memref<18x64xf32, #tpu.memory_space<vmem>>, vector<16x64xf32>
    tpu.vector_store %arg7[%c1, %c0_11], %9 {strides = array<i32>} : memref<18x64xf32, #tpu.memory_space<vmem>>, vector<16x64xf32>,
    %c0_12 = arith.constant 0 : index
    %c0_13 = arith.constant 0 : index
    %15 = vector.load %arg7[%c0_12, %c0_13] : memref<18x64xf32, #tpu.memory_space<vmem>>, vector<16x64xf32>
    %16 = arith.truncf %15 : vector<16x64xf32> to vector<16x64xbf16>
    %c0_14 = arith.constant 0 : index
    %c0_15 = arith.constant 0 : index
    %c0_16 = arith.constant 0 : index
    %17 = vector.load %arg4[%c0_14, %c0_15, %c0_16] : memref<3x64x128xbf16, #tpu.memory_space<vmem>>, vector<1x64x128xbf16>
    %18 = vector.shape_cast %17 : vector<1x64x128xbf16> to vector<64x128xbf16>
    %cst_17 = arith.constant dense<0.000000e+00> : vector<16x128xf32>
    %19 = tpu.matmul %16, %18, %cst_17 {dimension_numbers = #tpu.dot_dimension_numbers<[1], [0], [0], [1], [0, 0, 1, 1], [], []>} : vector<16x64xbf16>, vector<64x128xbf16>, vector<16x128xf32> -> vector<16x128xf32>
    %c1_18 = arith.constant 1 : index
    %c0_19 = arith.constant 0 : index
    %20 = vector.load %arg7[%c1_18, %c0_19] : memref<18x64xf32, #tpu.memory_space<vmem>>, vector<16x64xf32>
    %21 = arith.truncf %20 : vector<16x64xf32> to vector<16x64xbf16>
    %c1_20 = arith.constant 1 : index
    %c0_21 = arith.constant 0 : index
    %c0_22 = arith.constant 0 : index
    %22 = vector.load %arg4[%c1_20, %c0_21, %c0_22] : memref<3x64x128xbf16, #tpu.memory_space<vmem>>, vector<1x64x128xbf16>
    %23 = vector.shape_cast %22 : vector<1x64x128xbf16> to vector<64x128xbf16>
    %cst_23 = arith.constant dense<0.000000e+00> : vector<16x128xf32>
    %24 = tpu.matmul %21, %23, %cst_23 {dimension_numbers = #tpu.dot_dimension_numbers<[1], [0], [0], [1], [0, 0, 1, 1], [], []>} : vector<16x64xbf16>, vector<64x128xbf16>, vector<16x128xf32> -> vector<16x128xf32>
    %25 = arith.addf %19, %24 : vector<16x128xf32>
    %c2 = arith.constant 2 : index
    %c0_24 = arith.constant 0 : index
    %26 = vector.load %arg7[%c2, %c0_24] : memref<18x64xf32, #tpu.memory_space<vmem>>, vector<16x64xf32>
    %27 = arith.truncf %26 : vector<16x64xf32> to vector<16x64xbf16>
    %c2_25 = arith.constant 2 : index
    %c0_26 = arith.constant 0 : index
    %c0_27 = arith.constant 0 : index
    %28 = vector.load %arg4[%c2_25, %c0_26, %c0_27] : memref<3x64x128xbf16, #tpu.memory_space<vmem>>, vector<1x64x128xbf16>
    %29 = vector.shape_cast %28 : vector<1x64x128xbf16> to vector<64x128xbf16>
    %cst_28 = arith.constant dense<0.000000e+00> : vector<16x128xf32>
    %30 = tpu.matmul %27, %29, %cst_28 {dimension_numbers = #tpu.dot_dimension_numbers<[1], [0], [0], [1], [0, 0, 1, 1], [], []>} : vector<16x64xbf16>, vector<64x128xbf16>, vector<16x128xf32> -> vector<16x128xf32>
    %31 = arith.addf %25, %30 : vector<16x128xf32>
    %c0_29 = arith.constant 0 : index
    %c0_30 = arith.constant 0 : index
    %32 = vector.load %arg5[%c0_29, %c0_30] : memref<1x128xf32, #tpu.memory_space<vmem>>, vector<1x128xf32>
    %33 = vector.broadcast %32 : vector<1x128xf32> to vector<16x128xf32>
    %34 = arith.addf %31, %33 : vector<16x128xf32>
    %c0_31 = arith.constant 0 : index
    %c0_32 = arith.constant 0 : index
    %c0_33 = arith.constant 0 : index
    %35 = vector.load %arg6[%c0_31, %c0_32, %c0_33] : memref<1x16x128xf32, #tpu.memory_space<vmem>>, vector<1x16x128xf32>
    %36 = vector.shape_cast %35 : vector<1x16x128xf32> to vector<16x128xf32>
    %37 = vector.shape_cast %34 : vector<16x128xf32> to vector<1x16x128xf32>
    tpu.vector_store %arg6[%c0_31, %c0_32, %c0_33], %37 {strides = array<i32>} : memref<1x16x128xf32, #tpu.memory_space<vmem>>, vector<1x16x128xf32>,
    return
  }
  func.func @transform_0(%arg0: i32) -> (i32, i32, i32) {
    %c0_i32 = arith.constant 0 : i32
    %c0_i32_0 = arith.constant 0 : i32
    %c0_i32_1 = arith.constant 0 : i32
    return %arg0, %c0_i32, %c0_i32_0 : i32, i32, i32
  }
  func.func @transform_1(%arg0: i32) -> (i32, i32) {
    %c0_i32 = arith.constant 0 : i32
    %c0_i32_0 = arith.constant 0 : i32
    %c0_i32_1 = arith.constant 0 : i32
    return %c0_i32, %c0_i32_0 : i32, i32
  }
  func.func @transform_2(%arg0: i32) -> (i32, i32) {
    %c0_i32 = arith.constant 0 : i32
    %c0_i32_0 = arith.constant 0 : i32
    %c0_i32_1 = arith.constant 0 : i32
    return %c0_i32, %c0_i32_0 : i32, i32
  }
  func.func @transform_3(%arg0: i32) -> (i32, i32, i32) {
    %c0_i32 = arith.constant 0 : i32
    %c0_i32_0 = arith.constant 0 : i32
    %c0_i32_1 = arith.constant 0 : i32
    %c0_i32_2 = arith.constant 0 : i32
    return %c0_i32, %c0_i32_0, %c0_i32_1 : i32, i32, i32
  }
  func.func @transform_4(%arg0: i32) -> (i32, i32) {
    %c0_i32 = arith.constant 0 : i32
    %c0_i32_0 = arith.constant 0 : i32
    %c0_i32_1 = arith.constant 0 : i32
    return %c0_i32, %c0_i32_0 : i32, i32
  }
  func.func @transform_5(%arg0: i32) -> (i32, i32, i32) {
    %c0_i32 = arith.constant 0 : i32
    %c0_i32_0 = arith.constant 0 : i32
    %c0_i32_1 = arith.constant 0 : i32
    return %arg0, %c0_i32, %c0_i32_0 : i32, i32, i32
  }
}

module attributes {stable_mosaic.version = 11 : i64} {
  func.func @_conv_block_kernel(%arg0: i32, %arg1: memref<1x16x192xf32, #tpu.memory_space<vmem>>, %arg2: memref<1x192xf32, #tpu.memory_space<vmem>>, %arg3: memref<1x192xf32, #tpu.memory_space<vmem>>, %arg4: memref<3x192x128xbf16, #tpu.memory_space<vmem>>, %arg5: memref<1x128xf32, #tpu.memory_space<vmem>>, %arg6: memref<1x16x128xf32, #tpu.memory_space<vmem>>, %arg7: memref<18x192xf32, #tpu.memory_space<vmem>>) attributes {dimension_semantics = [#tpu.dimension_semantics<parallel>], iteration_bounds = array<i64: 2>, scalar_prefetch = 0 : i64, scratch_operands = 1 : i64, tpu.core_type = #tpu.core_type<tc>, window_params = [{transform_indices = @transform_0, window_bounds = array<i64: 1, 16, 192>}, {pipeline_mode = #tpu.pipeline_mode<synchronous>, transform_indices = @transform_1, window_bounds = array<i64: 1, 192>}, {pipeline_mode = #tpu.pipeline_mode<synchronous>, transform_indices = @transform_2, window_bounds = array<i64: 1, 192>}, {pipeline_mode = #tpu.pipeline_mode<synchronous>, transform_indices = @transform_3, window_bounds = array<i64: 3, 192, 128>}, {pipeline_mode = #tpu.pipeline_mode<synchronous>, transform_indices = @transform_4, window_bounds = array<i64: 1, 128>}, {transform_indices = @transform_5, window_bounds = array<i64: 1, 16, 128>}]} {
    %c0 = arith.constant 0 : index
    %c0_0 = arith.constant 0 : index
    %c0_1 = arith.constant 0 : index
    %0 = vector.load %arg1[%c0, %c0_0, %c0_1] : memref<1x16x192xf32, #tpu.memory_space<vmem>>, vector<1x16x192xf32>
    %1 = vector.shape_cast %0 : vector<1x16x192xf32> to vector<16x192xf32>
    %c0_2 = arith.constant 0 : index
    %c0_3 = arith.constant 0 : index
    %2 = vector.load %arg2[%c0_2, %c0_3] : memref<1x192xf32, #tpu.memory_space<vmem>>, vector<1x192xf32>
    %3 = vector.broadcast %2 : vector<1x192xf32> to vector<16x192xf32>
    %4 = arith.mulf %1, %3 : vector<16x192xf32>
    %c0_4 = arith.constant 0 : index
    %c0_5 = arith.constant 0 : index
    %5 = vector.load %arg3[%c0_4, %c0_5] : memref<1x192xf32, #tpu.memory_space<vmem>>, vector<1x192xf32>
    %6 = vector.broadcast %5 : vector<1x192xf32> to vector<16x192xf32>
    %7 = arith.addf %4, %6 : vector<16x192xf32>
    %cst = arith.constant 0.000000e+00 : f32
    %8 = vector.broadcast %cst : f32 to vector<16x192xf32>
    %9 = arith.maximumf %7, %8 : vector<16x192xf32>
    %cst_6 = arith.constant 0.000000e+00 : f32
    %10 = vector.broadcast %cst_6 : f32 to vector<1x192xf32>
    %c0_7 = arith.constant 0 : index
    %c0_8 = arith.constant 0 : index
    %11 = vector.load %arg7[%c0_7, %c0_8] : memref<18x192xf32, #tpu.memory_space<vmem>>, vector<1x192xf32>
    tpu.vector_store %arg7[%c0_7, %c0_8], %10 {strides = array<i32>} : memref<18x192xf32, #tpu.memory_space<vmem>>, vector<1x192xf32>,
    %cst_9 = arith.constant 0.000000e+00 : f32
    %12 = vector.broadcast %cst_9 : f32 to vector<1x192xf32>
    %c17 = arith.constant 17 : index
    %c0_10 = arith.constant 0 : index
    %13 = vector.load %arg7[%c17, %c0_10] : memref<18x192xf32, #tpu.memory_space<vmem>>, vector<1x192xf32>
    tpu.vector_store %arg7[%c17, %c0_10], %12 {strides = array<i32>} : memref<18x192xf32, #tpu.memory_space<vmem>>, vector<1x192xf32>,
    %c1 = arith.constant 1 : index
    %c0_11 = arith.constant 0 : index
    %14 = vector.load %arg7[%c1, %c0_11] : memref<18x192xf32, #tpu.memory_space<vmem>>, vector<16x192xf32>
    tpu.vector_store %arg7[%c1, %c0_11], %9 {strides = array<i32>} : memref<18x192xf32, #tpu.memory_space<vmem>>, vector<16x192xf32>,
    %c0_12 = arith.constant 0 : index
    %c0_13 = arith.constant 0 : index
    %15 = vector.load %arg7[%c0_12, %c0_13] : memref<18x192xf32, #tpu.memory_space<vmem>>, vector<16x192xf32>
    %16 = arith.truncf %15 : vector<16x192xf32> to vector<16x192xbf16>
    %c0_14 = arith.constant 0 : index
    %c0_15 = arith.constant 0 : index
    %c0_16 = arith.constant 0 : index
    %17 = vector.load %arg4[%c0_14, %c0_15, %c0_16] : memref<3x192x128xbf16, #tpu.memory_space<vmem>>, vector<1x192x128xbf16>
    %18 = vector.shape_cast %17 : vector<1x192x128xbf16> to vector<192x128xbf16>
    %cst_17 = arith.constant dense<0.000000e+00> : vector<16x128xf32>
    %19 = tpu.matmul %16, %18, %cst_17 {dimension_numbers = #tpu.dot_dimension_numbers<[1], [0], [0], [1], [0, 0, 1, 1], [], []>} : vector<16x192xbf16>, vector<192x128xbf16>, vector<16x128xf32> -> vector<16x128xf32>
    %c1_18 = arith.constant 1 : index
    %c0_19 = arith.constant 0 : index
    %20 = vector.load %arg7[%c1_18, %c0_19] : memref<18x192xf32, #tpu.memory_space<vmem>>, vector<16x192xf32>
    %21 = arith.truncf %20 : vector<16x192xf32> to vector<16x192xbf16>
    %c1_20 = arith.constant 1 : index
    %c0_21 = arith.constant 0 : index
    %c0_22 = arith.constant 0 : index
    %22 = vector.load %arg4[%c1_20, %c0_21, %c0_22] : memref<3x192x128xbf16, #tpu.memory_space<vmem>>, vector<1x192x128xbf16>
    %23 = vector.shape_cast %22 : vector<1x192x128xbf16> to vector<192x128xbf16>
    %cst_23 = arith.constant dense<0.000000e+00> : vector<16x128xf32>
    %24 = tpu.matmul %21, %23, %cst_23 {dimension_numbers = #tpu.dot_dimension_numbers<[1], [0], [0], [1], [0, 0, 1, 1], [], []>} : vector<16x192xbf16>, vector<192x128xbf16>, vector<16x128xf32> -> vector<16x128xf32>
    %25 = arith.addf %19, %24 : vector<16x128xf32>
    %c2 = arith.constant 2 : index
    %c0_24 = arith.constant 0 : index
    %26 = vector.load %arg7[%c2, %c0_24] : memref<18x192xf32, #tpu.memory_space<vmem>>, vector<16x192xf32>
    %27 = arith.truncf %26 : vector<16x192xf32> to vector<16x192xbf16>
    %c2_25 = arith.constant 2 : index
    %c0_26 = arith.constant 0 : index
    %c0_27 = arith.constant 0 : index
    %28 = vector.load %arg4[%c2_25, %c0_26, %c0_27] : memref<3x192x128xbf16, #tpu.memory_space<vmem>>, vector<1x192x128xbf16>
    %29 = vector.shape_cast %28 : vector<1x192x128xbf16> to vector<192x128xbf16>
    %cst_28 = arith.constant dense<0.000000e+00> : vector<16x128xf32>
    %30 = tpu.matmul %27, %29, %cst_28 {dimension_numbers = #tpu.dot_dimension_numbers<[1], [0], [0], [1], [0, 0, 1, 1], [], []>} : vector<16x192xbf16>, vector<192x128xbf16>, vector<16x128xf32> -> vector<16x128xf32>
    %31 = arith.addf %25, %30 : vector<16x128xf32>
    %c0_29 = arith.constant 0 : index
    %c0_30 = arith.constant 0 : index
    %32 = vector.load %arg5[%c0_29, %c0_30] : memref<1x128xf32, #tpu.memory_space<vmem>>, vector<1x128xf32>
    %33 = vector.broadcast %32 : vector<1x128xf32> to vector<16x128xf32>
    %34 = arith.addf %31, %33 : vector<16x128xf32>
    %c0_31 = arith.constant 0 : index
    %c0_32 = arith.constant 0 : index
    %c0_33 = arith.constant 0 : index
    %35 = vector.load %arg6[%c0_31, %c0_32, %c0_33] : memref<1x16x128xf32, #tpu.memory_space<vmem>>, vector<1x16x128xf32>
    %36 = vector.shape_cast %35 : vector<1x16x128xf32> to vector<16x128xf32>
    %37 = vector.shape_cast %34 : vector<16x128xf32> to vector<1x16x128xf32>
    tpu.vector_store %arg6[%c0_31, %c0_32, %c0_33], %37 {strides = array<i32>} : memref<1x16x128xf32, #tpu.memory_space<vmem>>, vector<1x16x128xf32>,
    return
  }
  func.func @transform_0(%arg0: i32) -> (i32, i32, i32) {
    %c0_i32 = arith.constant 0 : i32
    %c0_i32_0 = arith.constant 0 : i32
    %c0_i32_1 = arith.constant 0 : i32
    return %arg0, %c0_i32, %c0_i32_0 : i32, i32, i32
  }
  func.func @transform_1(%arg0: i32) -> (i32, i32) {
    %c0_i32 = arith.constant 0 : i32
    %c0_i32_0 = arith.constant 0 : i32
    %c0_i32_1 = arith.constant 0 : i32
    return %c0_i32, %c0_i32_0 : i32, i32
  }
  func.func @transform_2(%arg0: i32) -> (i32, i32) {
    %c0_i32 = arith.constant 0 : i32
    %c0_i32_0 = arith.constant 0 : i32
    %c0_i32_1 = arith.constant 0 : i32
    return %c0_i32, %c0_i32_0 : i32, i32
  }
  func.func @transform_3(%arg0: i32) -> (i32, i32, i32) {
    %c0_i32 = arith.constant 0 : i32
    %c0_i32_0 = arith.constant 0 : i32
    %c0_i32_1 = arith.constant 0 : i32
    %c0_i32_2 = arith.constant 0 : i32
    return %c0_i32, %c0_i32_0, %c0_i32_1 : i32, i32, i32
  }
  func.func @transform_4(%arg0: i32) -> (i32, i32) {
    %c0_i32 = arith.constant 0 : i32
    %c0_i32_0 = arith.constant 0 : i32
    %c0_i32_1 = arith.constant 0 : i32
    return %c0_i32, %c0_i32_0 : i32, i32
  }
  func.func @transform_5(%arg0: i32) -> (i32, i32, i32) {
    %c0_i32 = arith.constant 0 : i32
    %c0_i32_0 = arith.constant 0 : i32
    %c0_i32_1 = arith.constant 0 : i32
    return %arg0, %c0_i32, %c0_i32_0 : i32, i32, i32
  }
}

module attributes {stable_mosaic.version = 11 : i64} {
  func.func @_conv_block_kernel(%arg0: i32, %arg1: memref<1x16x320xf32, #tpu.memory_space<vmem>>, %arg2: memref<1x320xf32, #tpu.memory_space<vmem>>, %arg3: memref<1x320xf32, #tpu.memory_space<vmem>>, %arg4: memref<3x320x128xbf16, #tpu.memory_space<vmem>>, %arg5: memref<1x128xf32, #tpu.memory_space<vmem>>, %arg6: memref<1x16x128xf32, #tpu.memory_space<vmem>>, %arg7: memref<18x320xf32, #tpu.memory_space<vmem>>) attributes {dimension_semantics = [#tpu.dimension_semantics<parallel>], iteration_bounds = array<i64: 2>, scalar_prefetch = 0 : i64, scratch_operands = 1 : i64, tpu.core_type = #tpu.core_type<tc>, window_params = [{transform_indices = @transform_0, window_bounds = array<i64: 1, 16, 320>}, {pipeline_mode = #tpu.pipeline_mode<synchronous>, transform_indices = @transform_1, window_bounds = array<i64: 1, 320>}, {pipeline_mode = #tpu.pipeline_mode<synchronous>, transform_indices = @transform_2, window_bounds = array<i64: 1, 320>}, {pipeline_mode = #tpu.pipeline_mode<synchronous>, transform_indices = @transform_3, window_bounds = array<i64: 3, 320, 128>}, {pipeline_mode = #tpu.pipeline_mode<synchronous>, transform_indices = @transform_4, window_bounds = array<i64: 1, 128>}, {transform_indices = @transform_5, window_bounds = array<i64: 1, 16, 128>}]} {
    %c0 = arith.constant 0 : index
    %c0_0 = arith.constant 0 : index
    %c0_1 = arith.constant 0 : index
    %0 = vector.load %arg1[%c0, %c0_0, %c0_1] : memref<1x16x320xf32, #tpu.memory_space<vmem>>, vector<1x16x320xf32>
    %1 = vector.shape_cast %0 : vector<1x16x320xf32> to vector<16x320xf32>
    %c0_2 = arith.constant 0 : index
    %c0_3 = arith.constant 0 : index
    %2 = vector.load %arg2[%c0_2, %c0_3] : memref<1x320xf32, #tpu.memory_space<vmem>>, vector<1x320xf32>
    %3 = vector.broadcast %2 : vector<1x320xf32> to vector<16x320xf32>
    %4 = arith.mulf %1, %3 : vector<16x320xf32>
    %c0_4 = arith.constant 0 : index
    %c0_5 = arith.constant 0 : index
    %5 = vector.load %arg3[%c0_4, %c0_5] : memref<1x320xf32, #tpu.memory_space<vmem>>, vector<1x320xf32>
    %6 = vector.broadcast %5 : vector<1x320xf32> to vector<16x320xf32>
    %7 = arith.addf %4, %6 : vector<16x320xf32>
    %cst = arith.constant 0.000000e+00 : f32
    %8 = vector.broadcast %cst : f32 to vector<16x320xf32>
    %9 = arith.maximumf %7, %8 : vector<16x320xf32>
    %cst_6 = arith.constant 0.000000e+00 : f32
    %10 = vector.broadcast %cst_6 : f32 to vector<1x320xf32>
    %c0_7 = arith.constant 0 : index
    %c0_8 = arith.constant 0 : index
    %11 = vector.load %arg7[%c0_7, %c0_8] : memref<18x320xf32, #tpu.memory_space<vmem>>, vector<1x320xf32>
    tpu.vector_store %arg7[%c0_7, %c0_8], %10 {strides = array<i32>} : memref<18x320xf32, #tpu.memory_space<vmem>>, vector<1x320xf32>,
    %cst_9 = arith.constant 0.000000e+00 : f32
    %12 = vector.broadcast %cst_9 : f32 to vector<1x320xf32>
    %c17 = arith.constant 17 : index
    %c0_10 = arith.constant 0 : index
    %13 = vector.load %arg7[%c17, %c0_10] : memref<18x320xf32, #tpu.memory_space<vmem>>, vector<1x320xf32>
    tpu.vector_store %arg7[%c17, %c0_10], %12 {strides = array<i32>} : memref<18x320xf32, #tpu.memory_space<vmem>>, vector<1x320xf32>,
    %c1 = arith.constant 1 : index
    %c0_11 = arith.constant 0 : index
    %14 = vector.load %arg7[%c1, %c0_11] : memref<18x320xf32, #tpu.memory_space<vmem>>, vector<16x320xf32>
    tpu.vector_store %arg7[%c1, %c0_11], %9 {strides = array<i32>} : memref<18x320xf32, #tpu.memory_space<vmem>>, vector<16x320xf32>,
    %c0_12 = arith.constant 0 : index
    %c0_13 = arith.constant 0 : index
    %15 = vector.load %arg7[%c0_12, %c0_13] : memref<18x320xf32, #tpu.memory_space<vmem>>, vector<16x320xf32>
    %16 = arith.truncf %15 : vector<16x320xf32> to vector<16x320xbf16>
    %c0_14 = arith.constant 0 : index
    %c0_15 = arith.constant 0 : index
    %c0_16 = arith.constant 0 : index
    %17 = vector.load %arg4[%c0_14, %c0_15, %c0_16] : memref<3x320x128xbf16, #tpu.memory_space<vmem>>, vector<1x320x128xbf16>
    %18 = vector.shape_cast %17 : vector<1x320x128xbf16> to vector<320x128xbf16>
    %cst_17 = arith.constant dense<0.000000e+00> : vector<16x128xf32>
    %19 = tpu.matmul %16, %18, %cst_17 {dimension_numbers = #tpu.dot_dimension_numbers<[1], [0], [0], [1], [0, 0, 1, 1], [], []>} : vector<16x320xbf16>, vector<320x128xbf16>, vector<16x128xf32> -> vector<16x128xf32>
    %c1_18 = arith.constant 1 : index
    %c0_19 = arith.constant 0 : index
    %20 = vector.load %arg7[%c1_18, %c0_19] : memref<18x320xf32, #tpu.memory_space<vmem>>, vector<16x320xf32>
    %21 = arith.truncf %20 : vector<16x320xf32> to vector<16x320xbf16>
    %c1_20 = arith.constant 1 : index
    %c0_21 = arith.constant 0 : index
    %c0_22 = arith.constant 0 : index
    %22 = vector.load %arg4[%c1_20, %c0_21, %c0_22] : memref<3x320x128xbf16, #tpu.memory_space<vmem>>, vector<1x320x128xbf16>
    %23 = vector.shape_cast %22 : vector<1x320x128xbf16> to vector<320x128xbf16>
    %cst_23 = arith.constant dense<0.000000e+00> : vector<16x128xf32>
    %24 = tpu.matmul %21, %23, %cst_23 {dimension_numbers = #tpu.dot_dimension_numbers<[1], [0], [0], [1], [0, 0, 1, 1], [], []>} : vector<16x320xbf16>, vector<320x128xbf16>, vector<16x128xf32> -> vector<16x128xf32>
    %25 = arith.addf %19, %24 : vector<16x128xf32>
    %c2 = arith.constant 2 : index
    %c0_24 = arith.constant 0 : index
    %26 = vector.load %arg7[%c2, %c0_24] : memref<18x320xf32, #tpu.memory_space<vmem>>, vector<16x320xf32>
    %27 = arith.truncf %26 : vector<16x320xf32> to vector<16x320xbf16>
    %c2_25 = arith.constant 2 : index
    %c0_26 = arith.constant 0 : index
    %c0_27 = arith.constant 0 : index
    %28 = vector.load %arg4[%c2_25, %c0_26, %c0_27] : memref<3x320x128xbf16, #tpu.memory_space<vmem>>, vector<1x320x128xbf16>
    %29 = vector.shape_cast %28 : vector<1x320x128xbf16> to vector<320x128xbf16>
    %cst_28 = arith.constant dense<0.000000e+00> : vector<16x128xf32>
    %30 = tpu.matmul %27, %29, %cst_28 {dimension_numbers = #tpu.dot_dimension_numbers<[1], [0], [0], [1], [0, 0, 1, 1], [], []>} : vector<16x320xbf16>, vector<320x128xbf16>, vector<16x128xf32> -> vector<16x128xf32>
    %31 = arith.addf %25, %30 : vector<16x128xf32>
    %c0_29 = arith.constant 0 : index
    %c0_30 = arith.constant 0 : index
    %32 = vector.load %arg5[%c0_29, %c0_30] : memref<1x128xf32, #tpu.memory_space<vmem>>, vector<1x128xf32>
    %33 = vector.broadcast %32 : vector<1x128xf32> to vector<16x128xf32>
    %34 = arith.addf %31, %33 : vector<16x128xf32>
    %c0_31 = arith.constant 0 : index
    %c0_32 = arith.constant 0 : index
    %c0_33 = arith.constant 0 : index
    %35 = vector.load %arg6[%c0_31, %c0_32, %c0_33] : memref<1x16x128xf32, #tpu.memory_space<vmem>>, vector<1x16x128xf32>
    %36 = vector.shape_cast %35 : vector<1x16x128xf32> to vector<16x128xf32>
    %37 = vector.shape_cast %34 : vector<16x128xf32> to vector<1x16x128xf32>
    tpu.vector_store %arg6[%c0_31, %c0_32, %c0_33], %37 {strides = array<i32>} : memref<1x16x128xf32, #tpu.memory_space<vmem>>, vector<1x16x128xf32>,
    return
  }
  func.func @transform_0(%arg0: i32) -> (i32, i32, i32) {
    %c0_i32 = arith.constant 0 : i32
    %c0_i32_0 = arith.constant 0 : i32
    %c0_i32_1 = arith.constant 0 : i32
    return %arg0, %c0_i32, %c0_i32_0 : i32, i32, i32
  }
  func.func @transform_1(%arg0: i32) -> (i32, i32) {
    %c0_i32 = arith.constant 0 : i32
    %c0_i32_0 = arith.constant 0 : i32
    %c0_i32_1 = arith.constant 0 : i32
    return %c0_i32, %c0_i32_0 : i32, i32
  }
  func.func @transform_2(%arg0: i32) -> (i32, i32) {
    %c0_i32 = arith.constant 0 : i32
    %c0_i32_0 = arith.constant 0 : i32
    %c0_i32_1 = arith.constant 0 : i32
    return %c0_i32, %c0_i32_0 : i32, i32
  }
  func.func @transform_3(%arg0: i32) -> (i32, i32, i32) {
    %c0_i32 = arith.constant 0 : i32
    %c0_i32_0 = arith.constant 0 : i32
    %c0_i32_1 = arith.constant 0 : i32
    %c0_i32_2 = arith.constant 0 : i32
    return %c0_i32, %c0_i32_0, %c0_i32_1 : i32, i32, i32
  }
  func.func @transform_4(%arg0: i32) -> (i32, i32) {
    %c0_i32 = arith.constant 0 : i32
    %c0_i32_0 = arith.constant 0 : i32
    %c0_i32_1 = arith.constant 0 : i32
    return %c0_i32, %c0_i32_0 : i32, i32
  }
  func.func @transform_5(%arg0: i32) -> (i32, i32, i32) {
    %c0_i32 = arith.constant 0 : i32
    %c0_i32_0 = arith.constant 0 : i32
    %c0_i32_1 = arith.constant 0 : i32
    return %arg0, %c0_i32, %c0_i32_0 : i32, i32, i32
  }
}

</mosaic_0001>

<llo_original>
// kernel: tile.48
$region0: #{tile.48}
  #allocation0 [shape = 's32[1]{0}', space=sflag, size = 0x4, scoped, tag = 'scoped memory for tile.48']
  %s0 = inlined_call_operand.vmem [shape: f32[4], index: 0, kind: input, shape index: {}]
  %s1 = inlined_call_operand.vmem [shape: f32[16,4], index: 1, kind: output, shape index: {}]
  // Predicated region
  $region2: #{tile.48} parent=0 // pred_check
    _
  $region3: #{tile.48} parent=0 // pred_check_branch
    %3 = sbr.rel (0) target = $region5
  $region4: #{tile.48} parent=0 // pred_region
    _
  $region5: #{tile.48} parent=0 // pred_fallthru
    _
  %v4 = vld [vmem:[%s0] ss:$0 sm:$0xff]
  %5 = vst [vmem:[%s1] sm:$0xff] %v4
  %s6 = scalar_lea.vmem %s1, 8
  %7 = vst [vmem:[%s6] sm:$0xff] %v4

// kernel: tile.49
$region0: #{tile.49}
  %s0 = inlined_call_operand.vmem [shape: f32[16,4], index: 0, kind: input, shape index: {}]
  %s1 = inlined_call_operand.vmem [shape: f32[1,64], index: 1, kind: output, shape index: {}]
  $region1: #{tile.49} parent=0
    #allocation0 [shape = 'u8[4096]{0}', space=vmem, size = 0x1000, scoped, tag = 'scoped mem for output reshape']
    %v2 = vld [vmem:[%s0] sm:$0x1]
    %vm3 = vcmask 31744
    %4 = vst.msk [vmem:[#allocation0] sm:$0x1] %vm3, %v2
    %s5 = scalar_lea.vmem %s0, 15
    %v6 = vld [vmem:[%s5] sm:$0x1]
    %7 = vrot.lane.b32.xlu0 %v6, 60
    %v8 = vpop.permute.xlu0 %7
    %vm9 = vcmask 523744
    %10 = vst.msk [vmem:[#allocation0] sm:$0x1] %vm9, %v8
    %s11 = scalar_lea.vmem %s0, 14
    %v12 = vld [vmem:[%s11] sm:$0x1]
    %13 = vrot.lane.b32.xlu0 %v12, 56
    %v14 = vpop.permute.xlu0 %13
    %vm15 = vcmask 490944
    %16 = vst.msk [vmem:[#allocation0] sm:$0x1] %vm15, %v14
    %s17 = scalar_lea.vmem %s0, 13
    %v18 = vld [vmem:[%s17] sm:$0x1]
    %19 = vrot.lane.b32.xlu0 %v18, 52
    %v20 = vpop.permute.xlu0 %19
    %vm21 = vcmask 458144
    %22 = vst.msk [vmem:[#allocation0] sm:$0x1] %vm21, %v20
    %s23 = scalar_lea.vmem %s0, 12
    %v24 = vld [vmem:[%s23] sm:$0x1]
    %25 = vrot.lane.b32.xlu0 %v24, 48
    %v26 = vpop.permute.xlu0 %25
    %vm27 = vcmask 425344
    %28 = vst.msk [vmem:[#allocation0] sm:$0x1] %vm27, %v26
    %s29 = scalar_lea.vmem %s0, 11
    %v30 = vld [vmem:[%s29] sm:$0x1]
    %31 = vrot.lane.b32.xlu0 %v30, 44
    %v32 = vpop.permute.xlu0 %31
    %vm33 = vcmask 392544
    %34 = vst.msk [vmem:[#allocation0] sm:$0x1] %vm33, %v32
    %s35 = scalar_lea.vmem %s0, 10
    %v36 = vld [vmem:[%s35] sm:$0x1]
    %37 = vrot.lane.b32.xlu0 %v36, 40
    %v38 = vpop.permute.xlu0 %37
    %vm39 = vcmask 359744
    %40 = vst.msk [vmem:[#allocation0] sm:$0x1] %vm39, %v38
    %s41 = scalar_lea.vmem %s0, 9
    %v42 = vld [vmem:[%s41] sm:$0x1]
    %43 = vrot.lane.b32.xlu0 %v42, 36
    %v44 = vpop.permute.xlu0 %43
    %vm45 = vcmask 326944
    %46 = vst.msk [vmem:[#allocation0] sm:$0x1] %vm45, %v44
    %s47 = scalar_lea.vmem %s0, 8
    %v48 = vld [vmem:[%s47] sm:$0x1]
    %49 = vrot.lane.b32.xlu0 %v48, 32
    %v50 = vpop.permute.xlu0 %49
    %vm51 = vcmask 294144
    %52 = vst.msk [vmem:[#allocation0] sm:$0x1] %vm51, %v50
    %s53 = scalar_lea.vmem %s0, 7
    %v54 = vld [vmem:[%s53] sm:$0x1]
    %55 = vrot.lane.b32.xlu0 %v54, 28
    %v56 = vpop.permute.xlu0 %55
    %vm57 = vcmask 261344
    %58 = vst.msk [vmem:[#allocation0] sm:$0x1] %vm57, %v56
    %s59 = scalar_lea.vmem %s0, 6
    %v60 = vld [vmem:[%s59] sm:$0x1]
    %61 = vrot.lane.b32.xlu0 %v60, 24
    %v62 = vpop.permute.xlu0 %61
    %vm63 = vcmask 228544
    %64 = vst.msk [vmem:[#allocation0] sm:$0x1] %vm63, %v62
    %s65 = scalar_lea.vmem %s0, 5
    %v66 = vld [vmem:[%s65] sm:$0x1]
    %67 = vrot.lane.b32.xlu0 %v66, 20
    %v68 = vpop.permute.xlu0 %67
    %vm69 = vcmask 195744
    %70 = vst.msk [vmem:[#allocation0] sm:$0x1] %vm69, %v68
    %s71 = scalar_lea.vmem %s0, 4
    %v72 = vld [vmem:[%s71] sm:$0x1]
    %73 = vrot.lane.b32.xlu0 %v72, 16
    %v74 = vpop.permute.xlu0 %73
    %vm75 = vcmask 162944
    %76 = vst.msk [vmem:[#allocation0] sm:$0x1] %vm75, %v74
    %s77 = scalar_lea.vmem %s0, 3
    %v78 = vld [vmem:[%s77] sm:$0x1]
    %79 = vrot.lane.b32.xlu0 %v78, 12
    %v80 = vpop.permute.xlu0 %79
    %vm81 = vcmask 130144
    %82 = vst.msk [vmem:[#allocation0] sm:$0x1] %vm81, %v80
    %s83 = scalar_lea.vmem %s0, 2
    %v84 = vld [vmem:[%s83] sm:$0x1]
    %85 = vrot.lane.b32.xlu0 %v84, 8
    %v86 = vpop.permute.xlu0 %85
    %vm87 = vcmask 97344
    %88 = vst.msk [vmem:[#allocation0] sm:$0x1] %vm87, %v86
    %s89 = scalar_lea.vmem %s0, 1
    %v90 = vld [vmem:[%s89] sm:$0x1]
    %91 = vrot.lane.b32.xlu0 %v90, 4
    %v92 = vpop.permute.xlu0 %91
    %vm93 = vcmask 64544
    %94 = vst.msk [vmem:[#allocation0] sm:$0x1] %vm93, %v92
    %s96 = sshllo.u32 0, 1
    %v98 = vld [vmem:[#allocation0] sm:%s96]
    %s99 = sshllo.u32 0, 1
    %100 = vst [vmem:[%s1] sm:%s99] %v98

// kernel: tile.58
$region0: #{tile.58}
  #allocation0 [shape = 's32[1]{0}', space=sflag, size = 0x4, scoped, tag = 'scoped memory for tile.58']
  %s0 = inlined_call_operand.vmem [shape: f32[8], index: 0, kind: input, shape index: {}]
  %s1 = inlined_call_operand.vmem [shape: f32[16,8], index: 1, kind: output, shape index: {}]
  // Predicated region
  $region2: #{tile.58} parent=0 // pred_check
    _
  $region3: #{tile.58} parent=0 // pred_check_branch
    %3 = sbr.rel (0) target = $region5
  $region4: #{tile.58} parent=0 // pred_region
    _
  $region5: #{tile.58} parent=0 // pred_fallthru
    _
  %v4 = vld [vmem:[%s0] ss:$0 sm:$0xff]
  %5 = vst [vmem:[%s1] sm:$0xff] %v4
  %s6 = scalar_lea.vmem %s1, 8
  %7 = vst [vmem:[%s6] sm:$0xff] %v4

// kernel: tile.59
$region0: #{tile.59}
  %s0 = inlined_call_operand.vmem [shape: f32[16,8], index: 0, kind: input, shape index: {}]
  %s1 = inlined_call_operand.vmem [shape: f32[1,128], index: 1, kind: output, shape index: {}]
  $region1: #{tile.59} parent=0
    #allocation0 [shape = 'u8[4096]{0}', space=vmem, size = 0x1000, scoped, tag = 'scoped mem for output reshape']
    %v2 = vld [vmem:[%s0] sm:$0x1]
    %vm3 = vcmask 64512
    %4 = vst.msk [vmem:[#allocation0] sm:$0x1] %vm3, %v2
    %s5 = scalar_lea.vmem %s0, 15
    %v6 = vld [vmem:[%s5] sm:$0x1]
    %7 = vrot.lane.b32.xlu0 %v6, 120
    %v8 = vpop.permute.xlu0 %7
    %vm9 = vcmask 1048512
    %10 = vst.msk [vmem:[#allocation0] sm:$0x1] %vm9, %v8
    %s11 = scalar_lea.vmem %s0, 14
    %v12 = vld [vmem:[%s11] sm:$0x1]
    %13 = vrot.lane.b32.xlu0 %v12, 112
    %v14 = vpop.permute.xlu0 %13
    %vm15 = vcmask 982912
    %16 = vst.msk [vmem:[#allocation0] sm:$0x1] %vm15, %v14
    %s17 = scalar_lea.vmem %s0, 13
    %v18 = vld [vmem:[%s17] sm:$0x1]
    %19 = vrot.lane.b32.xlu0 %v18, 104
    %v20 = vpop.permute.xlu0 %19
    %vm21 = vcmask 917312
    %22 = vst.msk [vmem:[#allocation0] sm:$0x1] %vm21, %v20
    %s23 = scalar_lea.vmem %s0, 12
    %v24 = vld [vmem:[%s23] sm:$0x1]
    %25 = vrot.lane.b32.xlu0 %v24, 96
    %v26 = vpop.permute.xlu0 %25
    %vm27 = vcmask 851712
    %28 = vst.msk [vmem:[#allocation0] sm:$0x1] %vm27, %v26
    %s29 = scalar_lea.vmem %s0, 11
    %v30 = vld [vmem:[%s29] sm:$0x1]
    %31 = vrot.lane.b32.xlu0 %v30, 88
    %v32 = vpop.permute.xlu0 %31
    %vm33 = vcmask 786112
    %34 = vst.msk [vmem:[#allocation0] sm:$0x1] %vm33, %v32
    %s35 = scalar_lea.vmem %s0, 10
    %v36 = vld [vmem:[%s35] sm:$0x1]
    %37 = vrot.lane.b32.xlu0 %v36, 80
    %v38 = vpop.permute.xlu0 %37
    %vm39 = vcmask 720512
    %40 = vst.msk [vmem:[#allocation0] sm:$0x1] %vm39, %v38
    %s41 = scalar_lea.vmem %s0, 9
    %v42 = vld [vmem:[%s41] sm:$0x1]
    %43 = vrot.lane.b32.xlu0 %v42, 72
    %v44 = vpop.permute.xlu0 %43
    %vm45 = vcmask 654912
    %46 = vst.msk [vmem:[#allocation0] sm:$0x1] %vm45, %v44
    %s47 = scalar_lea.vmem %s0, 8
    %v48 = vld [vmem:[%s47] sm:$0x1]
    %49 = vrot.lane.b32.xlu0 %v48, 64
    %v50 = vpop.permute.xlu0 %49
    %vm51 = vcmask 589312
    %52 = vst.msk [vmem:[#allocation0] sm:$0x1] %vm51, %v50
    %s53 = scalar_lea.vmem %s0, 7
    %v54 = vld [vmem:[%s53] sm:$0x1]
    %55 = vrot.lane.b32.xlu0 %v54, 56
    %v56 = vpop.permute.xlu0 %55
    %vm57 = vcmask 523712
    %58 = vst.msk [vmem:[#allocation0] sm:$0x1] %vm57, %v56
    %s59 = scalar_lea.vmem %s0, 6
    %v60 = vld [vmem:[%s59] sm:$0x1]
    %61 = vrot.lane.b32.xlu0 %v60, 48
    %v62 = vpop.permute.xlu0 %61
    %vm63 = vcmask 458112
    %64 = vst.msk [vmem:[#allocation0] sm:$0x1] %vm63, %v62
    %s65 = scalar_lea.vmem %s0, 5
    %v66 = vld [vmem:[%s65] sm:$0x1]
    %67 = vrot.lane.b32.xlu0 %v66, 40
    %v68 = vpop.permute.xlu0 %67
    %vm69 = vcmask 392512
    %70 = vst.msk [vmem:[#allocation0] sm:$0x1] %vm69, %v68
    %s71 = scalar_lea.vmem %s0, 4
    %v72 = vld [vmem:[%s71] sm:$0x1]
    %73 = vrot.lane.b32.xlu0 %v72, 32
    %v74 = vpop.permute.xlu0 %73
    %vm75 = vcmask 326912
    %76 = vst.msk [vmem:[#allocation0] sm:$0x1] %vm75, %v74
    %s77 = scalar_lea.vmem %s0, 3
    %v78 = vld [vmem:[%s77] sm:$0x1]
    %79 = vrot.lane.b32.xlu0 %v78, 24
    %v80 = vpop.permute.xlu0 %79
    %vm81 = vcmask 261312
    %82 = vst.msk [vmem:[#allocation0] sm:$0x1] %vm81, %v80
    %s83 = scalar_lea.vmem %s0, 2
    %v84 = vld [vmem:[%s83] sm:$0x1]
    %85 = vrot.lane.b32.xlu0 %v84, 16
    %v86 = vpop.permute.xlu0 %85
    %vm87 = vcmask 195712
    %88 = vst.msk [vmem:[#allocation0] sm:$0x1] %vm87, %v86
    %s89 = scalar_lea.vmem %s0, 1
    %v90 = vld [vmem:[%s89] sm:$0x1]
    %91 = vrot.lane.b32.xlu0 %v90, 8
    %v92 = vpop.permute.xlu0 %91
    %vm93 = vcmask 130112
    %94 = vst.msk [vmem:[#allocation0] sm:$0x1] %vm93, %v92
    %s96 = sshllo.u32 0, 1
    %v98 = vld [vmem:[#allocation0] sm:%s96]
    %s99 = sshllo.u32 0, 1
    %100 = vst [vmem:[%s1] sm:%s99] %v98

// kernel: dense_block_forward.3
$region0: #{dense_block_forward.3}
  #allocation0 [shape = 'u32[]', space=smem, size = 0x4, offset = 0x4, fixed_abs, tag = 'smem constant byte address 0x4 - core index']
  #allocation1 [shape = 'u32[144,128]{1,0:T(1,128)}', space=vmem, size = 0x12000, scoped, tag = 'internal scratch']
  #allocation2 [shape = 'f32[18,64]{1,0:T(8,128)}', space=vmem, size = 0x3000, scoped, tag = 'scratch operand']
  %s0 = inlined_call_operand.vmem [shape: f32[2,16,64], index: 0, kind: input, shape index: {}]
  %s1 = inlined_call_operand.vmem [shape: f32[1,64], index: 1, kind: input, shape index: {}]
  %s2 = inlined_call_operand.vmem [shape: f32[1,64], index: 2, kind: input, shape index: {}]
  %s3 = inlined_call_operand.vmem [shape: bf16[3,64,128], index: 3, kind: input, shape index: {}]
  %s4 = inlined_call_operand.vmem [shape: f32[1,128], index: 4, kind: input, shape index: {}]
  %s5 = inlined_call_operand.vmem [shape: f32[2,16,128], index: 5, kind: output, shape index: {}]
  %s6 = sld [smem:[#allocation0]]
  $region53: #{dense_block_forward.3} parent=0
    _
  %s8 = ssub.s32 1, %s6
  %s9 = scalar_select 0, %s8, %s6
  loop: start=0, step=1, limit=4
  $region2: #{dense_block_forward.3} parent=0 // loop_pre_header
    _
  $region3: #{dense_block_forward.3} parent=0 // loop_header
    %s11 = sphi 0, %s15
    %p12 = scmp.ge.s32.totalorder %s11, 4
    %s21 = sphi 0, %s23
    %s24 = sphi 0, %s21
    %s25 = sphi 0, %s24
    %s41 = sphi 0, %s25
    %s45 = sphi 0, %s45
    %s47 = sphi 0, %s45
    %s48 = sphi 0, %s47
    %s62 = sphi 0, %s48
    %s66 = sphi 0, %s66
    %s68 = sphi 0, %s66
    %s69 = sphi 0, %s68
    %s83 = sphi 0, %s69
    %s87 = sphi 0, %s87
    %s89 = sphi 0, %s87
    %s90 = sphi 0, %s89
    %s104 = sphi 0, %s90
    %s108 = sphi 0, %s108
    %s110 = sphi 0, %s108
    %s111 = sphi 0, %s110
    %s125 = sphi 0, %s111
    %s131 = sphi 0, %s133
    %s134 = sphi 0, %s131
    %s135 = sphi 0, %s134
    %s151 = sphi 0, %s135
  $region4: #{dense_block_forward.3} parent=0 // loop_header_branch
    %14 = sbr.rel (%p12) target = $region8
  $region5: #{dense_block_forward.3} parent=0 // loop_body
    %s16 = ssub.s32 %s11, 1
    %s17 = ssub.s32 %s11, 2
    %s18 = sadd.s32 %s11, 1
    %s19 = ssub.s32 %s11, %s18
    %p20 = scmp.eq.s32.totalorder %s19, 0
    %s22 = sadd.s32 %s21, 1
    %s23 = scalar_select %p20, %s21, %s22
    %p26 = pneg %p20
    %p27 = scmp.eq.s32.totalorder %s11, 1
    %p28 = por %p26, %p27
    %p29 = scmp.ne.s32.totalorder %s21, %s24
    %p30 = scmp.eq.s32.totalorder %s11, 0
    %p31 = por %p29, %p30
    %p32 = scmp.ne.s32.totalorder %s21, %s24
    %p33 = scmp.eq.s32.totalorder %s16, 1
    %p34 = por %p32, %p33
    %p35 = scmp.ne.s32.totalorder %s24, %s25
    %p36 = scmp.eq.s32.totalorder %s16, 0
    %p37 = por %p35, %p36
    %p38 = scmp.ne.s32.totalorder %s24, %s25
    %p39 = scmp.eq.s32.totalorder %s17, 1
    %p40 = por %p38, %p39
    %p42 = scmp.ne.s32.totalorder %s25, %s41
    %p43 = scmp.eq.s32.totalorder %s17, 0
    %p44 = por %p42, %p43
    %s46 = sadd.s32 %s45, 1
    %p49 = scmp.eq.s32.totalorder %s11, 1
    %p50 = scmp.ne.s32.totalorder %s45, %s47
    %p51 = scmp.eq.s32.totalorder %s11, 0
    %p52 = por %p50, %p51
    %p53 = scmp.ne.s32.totalorder %s45, %s47
    %p54 = scmp.eq.s32.totalorder %s16, 1
    %p55 = por %p53, %p54
    %p56 = scmp.ne.s32.totalorder %s47, %s48
    %p57 = scmp.eq.s32.totalorder %s16, 0
    %p58 = por %p56, %p57
    %p59 = scmp.ne.s32.totalorder %s47, %s48
    %p60 = scmp.eq.s32.totalorder %s17, 1
    %p61 = por %p59, %p60
    %p63 = scmp.ne.s32.totalorder %s48, %s62
    %p64 = scmp.eq.s32.totalorder %s17, 0
    %p65 = por %p63, %p64
    %s67 = sadd.s32 %s66, 1
    %p70 = scmp.eq.s32.totalorder %s11, 1
    %p71 = scmp.ne.s32.totalorder %s66, %s68
    %p72 = scmp.eq.s32.totalorder %s11, 0
    %p73 = por %p71, %p72
    %p74 = scmp.ne.s32.totalorder %s66, %s68
    %p75 = scmp.eq.s32.totalorder %s16, 1
    %p76 = por %p74, %p75
    %p77 = scmp.ne.s32.totalorder %s68, %s69
    %p78 = scmp.eq.s32.totalorder %s16, 0
    %p79 = por %p77, %p78
    %p80 = scmp.ne.s32.totalorder %s68, %s69
    %p81 = scmp.eq.s32.totalorder %s17, 1
    %p82 = por %p80, %p81
    %p84 = scmp.ne.s32.totalorder %s69, %s83
    %p85 = scmp.eq.s32.totalorder %s17, 0
    %p86 = por %p84, %p85
    %s88 = sadd.s32 %s87, 1
    %p91 = scmp.eq.s32.totalorder %s11, 1
    %p92 = scmp.ne.s32.totalorder %s87, %s89
    %p93 = scmp.eq.s32.totalorder %s11, 0
    %p94 = por %p92, %p93
    %p95 = scmp.ne.s32.totalorder %s87, %s89
    %p96 = scmp.eq.s32.totalorder %s16, 1
    %p97 = por %p95, %p96
    %p98 = scmp.ne.s32.totalorder %s89, %s90
    %p99 = scmp.eq.s32.totalorder %s16, 0
    %p100 = por %p98, %p99
    %p101 = scmp.ne.s32.totalorder %s89, %s90
    %p102 = scmp.eq.s32.totalorder %s17, 1
    %p103 = por %p101, %p102
    %p105 = scmp.ne.s32.totalorder %s90, %s104
    %p106 = scmp.eq.s32.totalorder %s17, 0
    %p107 = por %p105, %p106
    %s109 = sadd.s32 %s108, 1
    %p112 = scmp.eq.s32.totalorder %s11, 1
    %p113 = scmp.ne.s32.totalorder %s108, %s110
    %p114 = scmp.eq.s32.totalorder %s11, 0
    %p115 = por %p113, %p114
    %p116 = scmp.ne.s32.totalorder %s108, %s110
    %p117 = scmp.eq.s32.totalorder %s16, 1
    %p118 = por %p116, %p117
    %p119 = scmp.ne.s32.totalorder %s110, %s111
    %p120 = scmp.eq.s32.totalorder %s16, 0
    %p121 = por %p119, %p120
    %p122 = scmp.ne.s32.totalorder %s110, %s111
    %p123 = scmp.eq.s32.totalorder %s17, 1
    %p124 = por %p122, %p123
    %p126 = scmp.ne.s32.totalorder %s111, %s125
    %p127 = scmp.eq.s32.totalorder %s17, 0
    %p128 = por %p126, %p127
    %s129 = ssub.s32 %s11, %s18
    %p130 = scmp.eq.s32.totalorder %s129, 0
    %s132 = sadd.s32 %s131, 1
    %s133 = scalar_select %p130, %s131, %s132
    %p136 = pneg %p130
    %p137 = scmp.eq.s32.totalorder %s11, 1
    %p138 = por %p136, %p137
    %p139 = scmp.ne.s32.totalorder %s131, %s134
    %p140 = scmp.eq.s32.totalorder %s11, 0
    %p141 = por %p139, %p140
    %p142 = scmp.ne.s32.totalorder %s131, %s134
    %p143 = scmp.eq.s32.totalorder %s16, 1
    %p144 = por %p142, %p143
    %p145 = scmp.ne.s32.totalorder %s134, %s135
    %p146 = scmp.eq.s32.totalorder %s16, 0
    %p147 = por %p145, %p146
    %p148 = scmp.ne.s32.totalorder %s134, %s135
    %p149 = scmp.eq.s32.totalorder %s17, 1
    %p150 = por %p148, %p149
    %p152 = scmp.ne.s32.totalorder %s135, %s151
    %p153 = scmp.eq.s32.totalorder %s17, 0
    %p154 = por %p152, %p153
    %p155 = scmp.le.s32.totalorder 1, %s11
    %p156 = scmp.lt.s32.totalorder %s11, 3
    %p157 = pnand %p155, %p156
    %p158 = pneg %p157
    // Predicated region
    $region9: #{dense_block_forward.3} parent=5 // pred_check
      _
    $region10: #{dense_block_forward.3} parent=5 // pred_check_branch
      %160 = sbr.rel (%p157) target = $region12
    $region11: #{dense_block_forward.3} parent=5 // pred_region
      %s161 = ssub.s32 %s11, 1
      // Predicated region
      $region13: #{dense_block_forward.3} parent=11 // pred_check
        %p162 = pneg %p58
      $region14: #{dense_block_forward.3} parent=11 // pred_check_branch
        %164 = sbr.rel (%p162) target = $region16
      $region15: #{dense_block_forward.3} parent=11 // pred_region
        _
      $region16: #{dense_block_forward.3} parent=11 // pred_fallthru
        _
      // Predicated region
      $region17: #{dense_block_forward.3} parent=11 // pred_check
        %p165 = pneg %p79
      $region18: #{dense_block_forward.3} parent=11 // pred_check_branch
        %167 = sbr.rel (%p165) target = $region20
      $region19: #{dense_block_forward.3} parent=11 // pred_region
        _
      $region20: #{dense_block_forward.3} parent=11 // pred_fallthru
        _
      // Predicated region
      $region21: #{dense_block_forward.3} parent=11 // pred_check
        %p168 = pneg %p100
      $region22: #{dense_block_forward.3} parent=11 // pred_check_branch
        %170 = sbr.rel (%p168) target = $region24
      $region23: #{dense_block_forward.3} parent=11 // pred_region
        _
      $region24: #{dense_block_forward.3} parent=11 // pred_fallthru
        _
      // Predicated region
      $region25: #{dense_block_forward.3} parent=11 // pred_check
        %p171 = pneg %p121
      $region26: #{dense_block_forward.3} parent=11 // pred_check_branch
        %173 = sbr.rel (%p171) target = $region28
      $region27: #{dense_block_forward.3} parent=11 // pred_region
        _
      $region28: #{dense_block_forward.3} parent=11 // pred_fallthru
        _
    $region12: #{dense_block_forward.3} parent=5 // pred_fallthru
      _
    %p174 = scmp.lt.s32.totalorder %s11, 2
    // Predicated region
    $region29: #{dense_block_forward.3} parent=5 // pred_check
      %p175 = pneg %p174
    $region30: #{dense_block_forward.3} parent=5 // pred_check_branch
      %177 = sbr.rel (%p175) target = $region32
    $region31: #{dense_block_forward.3} parent=5 // pred_region
      // Predicated region
      $region33: #{dense_block_forward.3} parent=31 // pred_check
        %p178 = pneg %p31
      $region34: #{dense_block_forward.3} parent=31 // pred_check_branch
        %180 = sbr.rel (%p178) target = $region36
      $region35: #{dense_block_forward.3} parent=31 // pred_region
        %p181 = scmp.lt.s32.totalorder %s11, 1
        %s182 = scalar_select %p181, %s11, 1
        %s183 = smul.addr %s182, 2
        %s184 = smul.addr %s183, 8
        %s185 = scalar_lea.vmem %s0, %s184
      $region36: #{dense_block_forward.3} parent=31 // pred_fallthru
        _
    $region32: #{dense_block_forward.3} parent=5 // pred_fallthru
      _
    %p186 = scmp.le.s32.totalorder 1, %s11
    %p187 = scmp.lt.s32.totalorder %s11, 3
    %p188 = pnand %p186, %p187
    %p189 = pneg %p188
    // Predicated region
    $region37: #{dense_block_forward.3} parent=5 // pred_check
      _
    $region38: #{dense_block_forward.3} parent=5 // pred_check_branch
      %191 = sbr.rel (%p188) target = $region40
    $region39: #{dense_block_forward.3} parent=5 // pred_region
      %s192 = ssub.s32 %s11, 1
      %p193 = scmp.lt.s32.totalorder %s16, 1
      %s194 = scalar_select %p193, %s16, 1
      %s195 = smul.addr %s194, 2
      %s196 = smul.addr %s195, 8
      %s197 = scalar_lea.vmem %s0, %s196
      %p198 = pneg %p37
      %p199 = pneg %p34
      %p200 = pneg %p58
      %p201 = pneg %p55
      %p202 = pneg %p79
      %p203 = pneg %p76
      %p204 = pneg %p100
      %p205 = pneg %p97
      %p206 = pneg %p121
      %p207 = pneg %p118
      %p208 = pneg %p147
      %p209 = pneg %p144
      %p210 = scmp.lt.s32.totalorder %s16, 1
      %s211 = scalar_select %p210, %s16, 1
      %s212 = smul.addr %s211, 2
      %s213 = smul.addr %s212, 8
      %s214 = scalar_lea.vmem %s5, %s213
      %p215 = scmp.lt.s32.totalorder %s16, 1
      %s216 = scalar_select %p215, %s16, 1
      %s217 = smul.addr %s216, 2
      %s218 = smul.addr %s217, 8
      %s219 = scalar_lea.vmem %s0, %s218
      %p220 = scmp.lt.s32.totalorder %s16, 1
      %s221 = scalar_select %p220, %s16, 1
      %s222 = smul.addr %s221, 2
      %s223 = smul.addr %s222, 8
      %s224 = scalar_lea.vmem %s5, %s223
      %v226 = vld [vmem:[%s219] sm:$0xff]
      %v227 = vld [vmem:[%s219 + $0x8] sm:$0xff]
      %v228 = vld [vmem:[%s1] sm:$0x1]
      %v230 = vlaneseq
      %v231 = vshrl.u32 %v230, 7
      %v232 = vsub.s32 0, %v231
      %v233 = vrot.slane %v228, %v232
      %v235 = vmul.f32 %v226, %v233
      %v236 = vmul.f32 %v227, %v233
      %v237 = vld [vmem:[%s2] sm:$0x1]
      %v239 = vlaneseq
      %v240 = vshrl.u32 %v239, 7
      %v241 = vsub.s32 0, %v240
      %v242 = vrot.slane %v237, %v241
      %v244 = vadd.f32 %v235, %v242
      %v245 = vadd.f32 %v236, %v242
      %v246 = vmax.f32 %v244, 0.0
      %v247 = vmax.f32 %v245, 0.0
      %vm248 = vcmask 516096
      %249 = vst.msk [vmem:[#allocation2] sm:$0x1] %vm248, 0.0
      %250 = vst.msk [vmem:[#allocation2 + $0x11] sm:$0x1] %vm248, 0.0
      %vm251 = vcmask 523264
      %252 = vst.msk [vmem:[#allocation2 + $0x1] sm:$0xff] %vm251, %v246
      %253 = vst.msk [vmem:[#allocation2 + $0x9] sm:$0xff] %vm251, %v247
      %v254 = vld [vmem:[#allocation2] sm:$0xff]
      %v255 = vld [vmem:[#allocation2 + $0x8] sm:$0xff]
      %v256 = vpack.c.bf16 %v255, %v254
      %v257 = vld [vmem:[%s3] sm:$0xf]
      %v258 = vld [vmem:[%s3 + $0x4] sm:$0xf]
      %v259 = vld [vmem:[%s3 + $0x8] sm:$0xf]
      %v260 = vld [vmem:[%s3 + $0xc] sm:$0xf]
      %v261 = vld [vmem:[%s3 + $0x10] sm:$0xf]
      %v262 = vld [vmem:[%s3 + $0x14] sm:$0xf]
      %v263 = vld [vmem:[%s3 + $0x18] sm:$0xf]
      %v264 = vld [vmem:[%s3 + $0x1c] sm:$0xf]
      %v265 = vld [vmem:[#allocation2 + $0x1] sm:$0xff]
      %v266 = vld [vmem:[#allocation2 + $0x9] sm:$0xff]
      %v267 = vpack.c.bf16 %v266, %v265
      %s268 = scalar_lea.vmem %s3, 32
      %v269 = vld [vmem:[%s268] sm:$0xf]
      %v270 = vld [vmem:[%s268 + $0x4] sm:$0xf]
      %v271 = vld [vmem:[%s268 + $0x8] sm:$0xf]
      %v272 = vld [vmem:[%s268 + $0xc] sm:$0xf]
      %v273 = vld [vmem:[%s268 + $0x10] sm:$0xf]
      %v274 = vld [vmem:[%s268 + $0x14] sm:$0xf]
      %v275 = vld [vmem:[%s268 + $0x18] sm:$0xf]
      %v276 = vld [vmem:[%s268 + $0x1c] sm:$0xf]
      %v285 = vunpack.c.l.b16 %v269
      %v286 = vunpack.c.l.b16 %v270
      %v287 = vunpack.c.l.b16 %v271
      %v288 = vunpack.c.l.b16 %v272
      %v289 = vunpack.c.l.b16 %v273
      %v290 = vunpack.c.l.b16 %v274
      %v291 = vunpack.c.l.b16 %v275
      %v292 = vunpack.c.l.b16 %v276
      %v293 = vpack.c.b16 %v286, %v285
      %v294 = vpack.c.b16 %v288, %v287
      %v295 = vpack.c.b16 %v290, %v289
      %v296 = vpack.c.b16 %v292, %v291
      %v302 = vsel %vm251, %v267, 0
      %304 = vmatprep.subr.bf16.mxu0 0
      %305 = vmatpush1.bf16.msra.mxu0 %v293
      %306 = vmatprep.subr.bf16.mxu0 0
      %307 = vmatpush1.bf16.msra.mxu0 %v294
      %308 = vmatprep.subr.bf16.mxu0 0
      %309 = vmatpush1.bf16.msra.mxu0 %v295
      %310 = vmatprep.subr.bf16.mxu0 0
      %311 = vmatpush1.bf16.msra.mxu0 %v296
      %312 = vmatprep.subr.bf16.mxu0 0
      %313 = vmatpush1.bf16.msra.mxu0 0
      %314 = vmatprep.subr.bf16.mxu0 0
      %315 = vmatpush1.bf16.msra.mxu0 0
      %316 = vmatprep.subr.bf16.mxu0 0
      %317 = vmatpush1.bf16.msra.mxu0 0
      %318 = vmatprep.subr.bf16.mxu0 0
      %319 = vmatpush1.bf16.msra.mxu0 0
      %320 = vmatprep.subr.bf16.mxu0 0
      %321 = vmatpush1.bf16.msra.mxu0 0
      %322 = vmatprep.subr.bf16.mxu0 0
      %323 = vmatpush1.bf16.msra.mxu0 0
      %324 = vmatprep.subr.bf16.mxu0 0
      %325 = vmatpush1.bf16.msra.mxu0 0
      %326 = vmatprep.subr.bf16.mxu0 0
      %327 = vmatpush1.bf16.msra.mxu0 0
      %328 = vmatprep.subr.bf16.mxu0 0
      %329 = vmatpush1.bf16.msra.mxu0 0
      %330 = vmatprep.subr.bf16.mxu0 0
      %331 = vmatpush1.bf16.msra.mxu0 0
      %332 = vmatprep.subr.bf16.mxu0 0
      %333 = vmatpush1.bf16.msra.mxu0 0
      %334 = vmatprep.subr.bf16.mxu0 0
      %335 = vmatpush1.bf16.msra.mxu0 0
      %336 = vmatprep.mubr.bf16.mxu0 0
      %337 = vmatmul.mubr.bf16.gmra.mrb[0].mxu0 %v302
      %v338 = vpop.f32.mrb[0].mxu0
      %v339 = vadd.f32 0.0, %v338
      %v340 = vpop.f32.mrb[0].mxu0
      %v341 = vpop.f32.mrb[0].mxu0
      %v342 = vadd.f32 0.0, %v341
      %v343 = vpop.f32.mrb[0].mxu0
      %344 = vdwg.mxu0
      %v353 = vunpack.c.l.b16 %v257
      %v354 = vunpack.c.l.b16 %v258
      %v355 = vunpack.c.l.b16 %v259
      %v356 = vunpack.c.l.b16 %v260
      %v357 = vunpack.c.l.b16 %v261
      %v358 = vunpack.c.l.b16 %v262
      %v359 = vunpack.c.l.b16 %v263
      %v360 = vunpack.c.l.b16 %v264
      %v361 = vpack.c.b16 %v354, %v353
      %v362 = vpack.c.b16 %v356, %v355
      %v363 = vpack.c.b16 %v358, %v357
      %v364 = vpack.c.b16 %v360, %v359
      %v370 = vsel %vm251, %v256, 0
      %372 = vmatprep.subr.bf16.mxu0 0
      %373 = vmatpush1.bf16.msra.mxu0 %v361
      %374 = vmatprep.subr.bf16.mxu0 0
      %375 = vmatpush1.bf16.msra.mxu0 %v362
      %376 = vmatprep.subr.bf16.mxu0 0
      %377 = vmatpush1.bf16.msra.mxu0 %v363
      %378 = vmatprep.subr.bf16.mxu0 0
      %379 = vmatpush1.bf16.msra.mxu0 %v364
      %380 = vmatprep.subr.bf16.mxu0 0
      %381 = vmatpush1.bf16.msra.mxu0 0
      %382 = vmatprep.subr.bf16.mxu0 0
      %383 = vmatpush1.bf16.msra.mxu0 0
      %384 = vmatprep.subr.bf16.mxu0 0
      %385 = vmatpush1.bf16.msra.mxu0 0
      %386 = vmatprep.subr.bf16.mxu0 0
      %387 = vmatpush1.bf16.msra.mxu0 0
      %388 = vmatprep.subr.bf16.mxu0 0
      %389 = vmatpush1.bf16.msra.mxu0 0
      %390 = vmatprep.subr.bf16.mxu0 0
      %391 = vmatpush1.bf16.msra.mxu0 0
      %392 = vmatprep.subr.bf16.mxu0 0
      %393 = vmatpush1.bf16.msra.mxu0 0
      %394 = vmatprep.subr.bf16.mxu0 0
      %395 = vmatpush1.bf16.msra.mxu0 0
      %396 = vmatprep.subr.bf16.mxu0 0
      %397 = vmatpush1.bf16.msra.mxu0 0
      %398 = vmatprep.subr.bf16.mxu0 0
      %399 = vmatpush1.bf16.msra.mxu0 0
      %400 = vmatprep.subr.bf16.mxu0 0
      %401 = vmatpush1.bf16.msra.mxu0 0
      %402 = vmatprep.subr.bf16.mxu0 0
      %403 = vmatpush1.bf16.msra.mxu0 0
      %404 = vmatprep.mubr.bf16.mxu0 0
      %405 = vmatmul.mubr.bf16.gmra.mrb[0].mxu0 %v370
      %v406 = vpop.f32.mrb[0].mxu0
      %v407 = vadd.f32 %v339, %v406
      %v408 = vpop.f32.mrb[0].mxu0
      %v409 = vpop.f32.mrb[0].mxu0
      %v410 = vadd.f32 %v342, %v409
      %v411 = vpop.f32.mrb[0].mxu0
      %412 = vdwg.mxu0
      %v413 = vld [vmem:[#allocation2 + $0x2] sm:$0xff]
      %v414 = vld [vmem:[#allocation2 + $0xa] sm:$0xff]
      %v415 = vpack.c.bf16 %v414, %v413
      %s416 = scalar_lea.vmem %s3, 64
      %v417 = vld [vmem:[%s416] sm:$0xf]
      %v418 = vld [vmem:[%s416 + $0x4] sm:$0xf]
      %v419 = vld [vmem:[%s416 + $0x8] sm:$0xf]
      %v420 = vld [vmem:[%s416 + $0xc] sm:$0xf]
      %v421 = vld [vmem:[%s416 + $0x10] sm:$0xf]
      %v422 = vld [vmem:[%s416 + $0x14] sm:$0xf]
      %v423 = vld [vmem:[%s416 + $0x18] sm:$0xf]
      %v424 = vld [vmem:[%s416 + $0x1c] sm:$0xf]
      %v433 = vunpack.c.l.b16 %v417
      %v434 = vunpack.c.l.b16 %v418
      %v435 = vunpack.c.l.b16 %v419
      %v436 = vunpack.c.l.b16 %v420
      %v437 = vunpack.c.l.b16 %v421
      %v438 = vunpack.c.l.b16 %v422
      %v439 = vunpack.c.l.b16 %v423
      %v440 = vunpack.c.l.b16 %v424
      %v441 = vpack.c.b16 %v434, %v433
      %v442 = vpack.c.b16 %v436, %v435
      %v443 = vpack.c.b16 %v438, %v437
      %v444 = vpack.c.b16 %v440, %v439
      %v450 = vsel %vm251, %v415, 0
      %452 = vmatprep.subr.bf16.mxu0 0
      %453 = vmatpush1.bf16.msra.mxu0 %v441
      %454 = vmatprep.subr.bf16.mxu0 0
      %455 = vmatpush1.bf16.msra.mxu0 %v442
      %456 = vmatprep.subr.bf16.mxu0 0
      %457 = vmatpush1.bf16.msra.mxu0 %v443
      %458 = vmatprep.subr.bf16.mxu0 0
      %459 = vmatpush1.bf16.msra.mxu0 %v444
      %460 = vmatprep.subr.bf16.mxu0 0
      %461 = vmatpush1.bf16.msra.mxu0 0
      %462 = vmatprep.subr.bf16.mxu0 0
      %463 = vmatpush1.bf16.msra.mxu0 0
      %464 = vmatprep.subr.bf16.mxu0 0
      %465 = vmatpush1.bf16.msra.mxu0 0
      %466 = vmatprep.subr.bf16.mxu0 0
      %467 = vmatpush1.bf16.msra.mxu0 0
      %468 = vmatprep.subr.bf16.mxu0 0
      %469 = vmatpush1.bf16.msra.mxu0 0
      %470 = vmatprep.subr.bf16.mxu0 0
      %471 = vmatpush1.bf16.msra.mxu0 0
      %472 = vmatprep.subr.bf16.mxu0 0
      %473 = vmatpush1.bf16.msra.mxu0 0
      %474 = vmatprep.subr.bf16.mxu0 0
      %475 = vmatpush1.bf16.msra.mxu0 0
      %476 = vmatprep.subr.bf16.mxu0 0
      %477 = vmatpush1.bf16.msra.mxu0 0
      %478 = vmatprep.subr.bf16.mxu0 0
      %479 = vmatpush1.bf16.msra.mxu0 0
      %480 = vmatprep.subr.bf16.mxu0 0
      %481 = vmatpush1.bf16.msra.mxu0 0
      %482 = vmatprep.subr.bf16.mxu0 0
      %483 = vmatpush1.bf16.msra.mxu0 0
      %484 = vmatprep.mubr.bf16.mxu0 0
      %485 = vmatmul.mubr.bf16.gmra.mrb[0].mxu0 %v450
      %v486 = vpop.f32.mrb[0].mxu0
      %v487 = vadd.f32 0.0, %v486
      %v488 = vpop.f32.mrb[0].mxu0
      %v489 = vpop.f32.mrb[0].mxu0
      %v490 = vadd.f32 0.0, %v489
      %v491 = vpop.f32.mrb[0].mxu0
      %492 = vdwg.mxu0
      %v493 = vadd.f32 %v407, %v487
      %v494 = vadd.f32 %v410, %v490
      %v495 = vld [vmem:[%s4] sm:$0x1]
      %v497 = vlaneseq
      %v498 = vshrl.u32 %v497, 7
      %v499 = vsub.s32 0, %v498
      %v500 = vrot.slane %v495, %v499
      %v502 = vadd.f32 %v493, %v500
      %v503 = vadd.f32 %v494, %v500
      %504 = vst [vmem:[%s224] sm:$0xff] %v502
      %505 = vst [vmem:[%s224 + $0x8] sm:$0xff] %v503
      %p506 = scmp.lt.s32.totalorder %s16, 1
      %s507 = scalar_select %p506, %s16, 1
      %s508 = smul.addr %s507, 2
      %s509 = smul.addr %s508, 8
      %s510 = scalar_lea.vmem %s5, %s509
      // Predicated region
      $region41: #{dense_block_forward.3} parent=39 // pred_check
        %p511 = pneg %p144
      $region42: #{dense_block_forward.3} parent=39 // pred_check_branch
        %513 = sbr.rel (%p511) target = $region44
      $region43: #{dense_block_forward.3} parent=39 // pred_region
        _
      $region44: #{dense_block_forward.3} parent=39 // pred_fallthru
        _
    $region40: #{dense_block_forward.3} parent=5 // pred_fallthru
      _
    %p514 = scmp.le.s32.totalorder 2, %s11
    // Predicated region
    $region45: #{dense_block_forward.3} parent=5 // pred_check
      %p515 = pneg %p514
    $region46: #{dense_block_forward.3} parent=5 // pred_check_branch
      %517 = sbr.rel (%p515) target = $region48
    $region47: #{dense_block_forward.3} parent=5 // pred_region
      %s518 = ssub.s32 %s11, 2
      // Predicated region
      $region49: #{dense_block_forward.3} parent=47 // pred_check
        %p519 = pneg %p150
      $region50: #{dense_block_forward.3} parent=47 // pred_check_branch
        %521 = sbr.rel (%p519) target = $region52
      $region51: #{dense_block_forward.3} parent=47 // pred_region
        %p522 = scmp.lt.s32.totalorder %s17, 1
        %s523 = scalar_select %p522, %s17, 1
        %s524 = smul.addr %s523, 2
        %s525 = smul.addr %s524, 8
        %s526 = scalar_lea.vmem %s5, %s525
      $region52: #{dense_block_forward.3} parent=47 // pred_fallthru
        _
    $region48: #{dense_block_forward.3} parent=5 // pred_fallthru
      _
  $region6: #{dense_block_forward.3} parent=0 // loop_footer
    %s15 = sadd.s32 1, %s11
  $region7: #{dense_block_forward.3} parent=0 // loop_footer_branch
    %10 = sbr.rel target = $region3
  $region8: #{dense_block_forward.3} parent=0 // loop_exit
    _

// kernel: tile.63
$region0: #{tile.63}
  #allocation0 [shape = 's32[1]{0}', space=sflag, size = 0x4, scoped, tag = 'scoped memory for tile.63']
  %s0 = inlined_call_operand.vmem [shape: f32[12], index: 0, kind: input, shape index: {}]
  %s1 = inlined_call_operand.vmem [shape: f32[16,12], index: 1, kind: output, shape index: {}]
  // Predicated region
  $region2: #{tile.63} parent=0 // pred_check
    _
  $region3: #{tile.63} parent=0 // pred_check_branch
    %3 = sbr.rel (0) target = $region5
  $region4: #{tile.63} parent=0 // pred_region
    _
  $region5: #{tile.63} parent=0 // pred_fallthru
    _
  %v4 = vld [vmem:[%s0] ss:$0 sm:$0xff]
  %5 = vst [vmem:[%s1] sm:$0xff] %v4
  %s6 = scalar_lea.vmem %s1, 8
  %7 = vst [vmem:[%s6] sm:$0xff] %v4

// kernel: tile.64
$region0: #{tile.64}
  %s0 = inlined_call_operand.vmem [shape: f32[16,12], index: 0, kind: input, shape index: {}]
  %s1 = inlined_call_operand.vmem [shape: f32[1,192], index: 1, kind: output, shape index: {}]
  $region1: #{tile.64} parent=0
    #allocation0 [shape = 'u8[8192]{0}', space=vmem, size = 0x2000, scoped, tag = 'scoped mem for output reshape']
    %v2 = vld [vmem:[%s0] sm:$0x1]
    %vm3 = vcmask 97280
    %4 = vst.msk [vmem:[#allocation0] sm:$0x1] %vm3, %v2
    %s5 = scalar_lea.vmem %s0, 10
    %v6 = vld [vmem:[%s5] sm:$0x1]
    %s7 = scalar_lea.vmem %s0, 10
    %v8 = vld [vmem:[%s7] sm:$0x1]
    %vm9 = vcmask 64512
    %v10 = vsel %vm9, %v8, %v6
    %11 = vrot.lane.b32.xlu0 %v10, 120
    %v12 = vpop.permute.xlu0 %11
    %vm13 = vcmask 31744
    %s14 = scalar_lea.vmem [#allocation0], 8
    %15 = vst.msk [vmem:[%s14] sm:$0x1] %vm13, %v12
    %vm16 = vcmask 1048512
    %17 = vst.msk [vmem:[#allocation0] sm:$0x1] %vm16, %v12
    %s18 = scalar_lea.vmem %s0, 9
    %v19 = vld [vmem:[%s18] sm:$0x1]
    %20 = vrot.lane.b32.xlu0 %v19, 108
    %v21 = vpop.permute.xlu0 %20
    %vm22 = vcmask 982880
    %23 = vst.msk [vmem:[#allocation0] sm:$0x1] %vm22, %v21
    %s24 = scalar_lea.vmem %s0, 8
    %v25 = vld [vmem:[%s24] sm:$0x1]
    %26 = vrot.lane.b32.xlu0 %v25, 96
    %v27 = vpop.permute.xlu0 %26
    %vm28 = vcmask 884480
    %29 = vst.msk [vmem:[#allocation0] sm:$0x1] %vm28, %v27
    %s30 = scalar_lea.vmem %s0, 7
    %v31 = vld [vmem:[%s30] sm:$0x1]
    %32 = vrot.lane.b32.xlu0 %v31, 84
    %v33 = vpop.permute.xlu0 %32
    %vm34 = vcmask 786080
    %35 = vst.msk [vmem:[#allocation0] sm:$0x1] %vm34, %v33
    %s36 = scalar_lea.vmem %s0, 6
    %v37 = vld [vmem:[%s36] sm:$0x1]
    %38 = vrot.lane.b32.xlu0 %v37, 72
    %v39 = vpop.permute.xlu0 %38
    %vm40 = vcmask 687680
    %41 = vst.msk [vmem:[#allocation0] sm:$0x1] %vm40, %v39
    %s42 = scalar_lea.vmem %s0, 5
    %v43 = vld [vmem:[%s42] sm:$0x1]
    %44 = vrot.lane.b32.xlu0 %v43, 60
    %v45 = vpop.permute.xlu0 %44
    %vm46 = vcmask 589280
    %47 = vst.msk [vmem:[#allocation0] sm:$0x1] %vm46, %v45
    %s48 = scalar_lea.vmem %s0, 15
    %v49 = vld [vmem:[%s48] sm:$0x1]
    %50 = vrot.lane.b32.xlu0 %v49, 52
    %v51 = vpop.permute.xlu0 %50
    %vm52 = vcmask 523680
    %s53 = scalar_lea.vmem [#allocation0], 8
    %54 = vst.msk [vmem:[%s53] sm:$0x1] %vm52, %v51
    %s55 = scalar_lea.vmem %s0, 4
    %v56 = vld [vmem:[%s55] sm:$0x1]
    %57 = vrot.lane.b32.xlu0 %v56, 48
    %v58 = vpop.permute.xlu0 %57
    %vm59 = vcmask 490880
    %60 = vst.msk [vmem:[#allocation0] sm:$0x1] %vm59, %v58
    %s61 = scalar_lea.vmem %s0, 14
    %v62 = vld [vmem:[%s61] sm:$0x1]
    %63 = vrot.lane.b32.xlu0 %v62, 40
    %v64 = vpop.permute.xlu0 %63
    %vm65 = vcmask 425280
    %s66 = scalar_lea.vmem [#allocation0], 8
    %67 = vst.msk [vmem:[%s66] sm:$0x1] %vm65, %v64
    %s68 = scalar_lea.vmem %s0, 3
    %v69 = vld [vmem:[%s68] sm:$0x1]
    %70 = vrot.lane.b32.xlu0 %v69, 36
    %v71 = vpop.permute.xlu0 %70
    %vm72 = vcmask 392480
    %73 = vst.msk [vmem:[#allocation0] sm:$0x1] %vm72, %v71
    %s74 = scalar_lea.vmem %s0, 13
    %v75 = vld [vmem:[%s74] sm:$0x1]
    %76 = vrot.lane.b32.xlu0 %v75, 28
    %v77 = vpop.permute.xlu0 %76
    %vm78 = vcmask 326880
    %s79 = scalar_lea.vmem [#allocation0], 8
    %80 = vst.msk [vmem:[%s79] sm:$0x1] %vm78, %v77
    %s81 = scalar_lea.vmem %s0, 2
    %v82 = vld [vmem:[%s81] sm:$0x1]
    %83 = vrot.lane.b32.xlu0 %v82, 24
    %v84 = vpop.permute.xlu0 %83
    %vm85 = vcmask 294080
    %86 = vst.msk [vmem:[#allocation0] sm:$0x1] %vm85, %v84
    %s87 = scalar_lea.vmem %s0, 12
    %v88 = vld [vmem:[%s87] sm:$0x1]
    %89 = vrot.lane.b32.xlu0 %v88, 16
    %v90 = vpop.permute.xlu0 %89
    %vm91 = vcmask 228480
    %s92 = scalar_lea.vmem [#allocation0], 8
    %93 = vst.msk [vmem:[%s92] sm:$0x1] %vm91, %v90
    %s94 = scalar_lea.vmem %s0, 1
    %v95 = vld [vmem:[%s94] sm:$0x1]
    %96 = vrot.lane.b32.xlu0 %v95, 12
    %v97 = vpop.permute.xlu0 %96
    %vm98 = vcmask 195680
    %99 = vst.msk [vmem:[#allocation0] sm:$0x1] %vm98, %v97
    %s100 = scalar_lea.vmem %s0, 11
    %v101 = vld [vmem:[%s100] sm:$0x1]
    %102 = vrot.lane.b32.xlu0 %v101, 4
    %v103 = vpop.permute.xlu0 %102
    %vm104 = vcmask 130080
    %s105 = scalar_lea.vmem [#allocation0], 8
    %106 = vst.msk [vmem:[%s105] sm:$0x1] %vm104, %v103
    %s108 = sshllo.u32 0, 1
    %v110 = vld [vmem:[#allocation0] sm:%s108]
    %s111 = sshllo.u32 0, 1
    %112 = vst [vmem:[%s1] sm:%s111] %v110
    %s113 = scalar_lea.vmem [#allocation0], 8
    %v114 = vld [vmem:[%s113] sm:%s108]
    %s115 = sshllo.u32 0, 1
    %s116 = scalar_lea.vmem %s1, 1
    %117 = vst [vmem:[%s116] sm:%s115] %v114

// kernel: dense_block_forward.4
$region0: #{dense_block_forward.4}
  #allocation0 [shape = 'u32[]', space=smem, size = 0x4, offset = 0x4, fixed_abs, tag = 'smem constant byte address 0x4 - core index']
  #allocation1 [shape = 'u32[144,128]{1,0:T(1,128)}', space=vmem, size = 0x12000, scoped, tag = 'internal scratch']
  #allocation2 [shape = 'f32[18,192]{1,0:T(8,128)}', space=vmem, size = 0x6000, scoped, tag = 'scratch operand']
  %s0 = inlined_call_operand.vmem [shape: f32[2,16,192], index: 0, kind: input, shape index: {}]
  %s1 = inlined_call_operand.vmem [shape: f32[1,192], index: 1, kind: input, shape index: {}]
  %s2 = inlined_call_operand.vmem [shape: f32[1,192], index: 2, kind: input, shape index: {}]
  %s3 = inlined_call_operand.vmem [shape: bf16[3,192,128], index: 3, kind: input, shape index: {}]
  %s4 = inlined_call_operand.vmem [shape: f32[1,128], index: 4, kind: input, shape index: {}]
  %s5 = inlined_call_operand.vmem [shape: f32[2,16,128], index: 5, kind: output, shape index: {}]
  %s6 = sld [smem:[#allocation0]]
  $region53: #{dense_block_forward.4} parent=0
    _
  %s8 = ssub.s32 1, %s6
  %s9 = scalar_select 0, %s8, %s6
  loop: start=0, step=1, limit=4
  $region2: #{dense_block_forward.4} parent=0 // loop_pre_header
    _
  $region3: #{dense_block_forward.4} parent=0 // loop_header
    %s11 = sphi 0, %s15
    %p12 = scmp.ge.s32.totalorder %s11, 4
    %s21 = sphi 0, %s23
    %s24 = sphi 0, %s21
    %s25 = sphi 0, %s24
    %s41 = sphi 0, %s25
    %s45 = sphi 0, %s45
    %s47 = sphi 0, %s45
    %s48 = sphi 0, %s47
    %s62 = sphi 0, %s48
    %s66 = sphi 0, %s66
    %s68 = sphi 0, %s66
    %s69 = sphi 0, %s68
    %s83 = sphi 0, %s69
    %s87 = sphi 0, %s87
    %s89 = sphi 0, %s87
    %s90 = sphi 0, %s89
    %s104 = sphi 0, %s90
    %s108 = sphi 0, %s108
    %s110 = sphi 0, %s108
    %s111 = sphi 0, %s110
    %s125 = sphi 0, %s111
    %s131 = sphi 0, %s133
    %s134 = sphi 0, %s131
    %s135 = sphi 0, %s134
    %s151 = sphi 0, %s135
  $region4: #{dense_block_forward.4} parent=0 // loop_header_branch
    %14 = sbr.rel (%p12) target = $region8
  $region5: #{dense_block_forward.4} parent=0 // loop_body
    %s16 = ssub.s32 %s11, 1
    %s17 = ssub.s32 %s11, 2
    %s18 = sadd.s32 %s11, 1
    %s19 = ssub.s32 %s11, %s18
    %p20 = scmp.eq.s32.totalorder %s19, 0
    %s22 = sadd.s32 %s21, 1
    %s23 = scalar_select %p20, %s21, %s22
    %p26 = pneg %p20
    %p27 = scmp.eq.s32.totalorder %s11, 1
    %p28 = por %p26, %p27
    %p29 = scmp.ne.s32.totalorder %s21, %s24
    %p30 = scmp.eq.s32.totalorder %s11, 0
    %p31 = por %p29, %p30
    %p32 = scmp.ne.s32.totalorder %s21, %s24
    %p33 = scmp.eq.s32.totalorder %s16, 1
    %p34 = por %p32, %p33
    %p35 = scmp.ne.s32.totalorder %s24, %s25
    %p36 = scmp.eq.s32.totalorder %s16, 0
    %p37 = por %p35, %p36
    %p38 = scmp.ne.s32.totalorder %s24, %s25
    %p39 = scmp.eq.s32.totalorder %s17, 1
    %p40 = por %p38, %p39
    %p42 = scmp.ne.s32.totalorder %s25, %s41
    %p43 = scmp.eq.s32.totalorder %s17, 0
    %p44 = por %p42, %p43
    %s46 = sadd.s32 %s45, 1
    %p49 = scmp.eq.s32.totalorder %s11, 1
    %p50 = scmp.ne.s32.totalorder %s45, %s47
    %p51 = scmp.eq.s32.totalorder %s11, 0
    %p52 = por %p50, %p51
    %p53 = scmp.ne.s32.totalorder %s45, %s47
    %p54 = scmp.eq.s32.totalorder %s16, 1
    %p55 = por %p53, %p54
    %p56 = scmp.ne.s32.totalorder %s47, %s48
    %p57 = scmp.eq.s32.totalorder %s16, 0
    %p58 = por %p56, %p57
    %p59 = scmp.ne.s32.totalorder %s47, %s48
    %p60 = scmp.eq.s32.totalorder %s17, 1
    %p61 = por %p59, %p60
    %p63 = scmp.ne.s32.totalorder %s48, %s62
    %p64 = scmp.eq.s32.totalorder %s17, 0
    %p65 = por %p63, %p64
    %s67 = sadd.s32 %s66, 1
    %p70 = scmp.eq.s32.totalorder %s11, 1
    %p71 = scmp.ne.s32.totalorder %s66, %s68
    %p72 = scmp.eq.s32.totalorder %s11, 0
    %p73 = por %p71, %p72
    %p74 = scmp.ne.s32.totalorder %s66, %s68
    %p75 = scmp.eq.s32.totalorder %s16, 1
    %p76 = por %p74, %p75
    %p77 = scmp.ne.s32.totalorder %s68, %s69
    %p78 = scmp.eq.s32.totalorder %s16, 0
    %p79 = por %p77, %p78
    %p80 = scmp.ne.s32.totalorder %s68, %s69
    %p81 = scmp.eq.s32.totalorder %s17, 1
    %p82 = por %p80, %p81
    %p84 = scmp.ne.s32.totalorder %s69, %s83
    %p85 = scmp.eq.s32.totalorder %s17, 0
    %p86 = por %p84, %p85
    %s88 = sadd.s32 %s87, 1
    %p91 = scmp.eq.s32.totalorder %s11, 1
    %p92 = scmp.ne.s32.totalorder %s87, %s89
    %p93 = scmp.eq.s32.totalorder %s11, 0
    %p94 = por %p92, %p93
    %p95 = scmp.ne.s32.totalorder %s87, %s89
    %p96 = scmp.eq.s32.totalorder %s16, 1
    %p97 = por %p95, %p96
    %p98 = scmp.ne.s32.totalorder %s89, %s90
    %p99 = scmp.eq.s32.totalorder %s16, 0
    %p100 = por %p98, %p99
    %p101 = scmp.ne.s32.totalorder %s89, %s90
    %p102 = scmp.eq.s32.totalorder %s17, 1
    %p103 = por %p101, %p102
    %p105 = scmp.ne.s32.totalorder %s90, %s104
    %p106 = scmp.eq.s32.totalorder %s17, 0
    %p107 = por %p105, %p106
    %s109 = sadd.s32 %s108, 1
    %p112 = scmp.eq.s32.totalorder %s11, 1
    %p113 = scmp.ne.s32.totalorder %s108, %s110
    %p114 = scmp.eq.s32.totalorder %s11, 0
    %p115 = por %p113, %p114
    %p116 = scmp.ne.s32.totalorder %s108, %s110
    %p117 = scmp.eq.s32.totalorder %s16, 1
    %p118 = por %p116, %p117
    %p119 = scmp.ne.s32.totalorder %s110, %s111
    %p120 = scmp.eq.s32.totalorder %s16, 0
    %p121 = por %p119, %p120
    %p122 = scmp.ne.s32.totalorder %s110, %s111
    %p123 = scmp.eq.s32.totalorder %s17, 1
    %p124 = por %p122, %p123
    %p126 = scmp.ne.s32.totalorder %s111, %s125
    %p127 = scmp.eq.s32.totalorder %s17, 0
    %p128 = por %p126, %p127
    %s129 = ssub.s32 %s11, %s18
    %p130 = scmp.eq.s32.totalorder %s129, 0
    %s132 = sadd.s32 %s131, 1
    %s133 = scalar_select %p130, %s131, %s132
    %p136 = pneg %p130
    %p137 = scmp.eq.s32.totalorder %s11, 1
    %p138 = por %p136, %p137
    %p139 = scmp.ne.s32.totalorder %s131, %s134
    %p140 = scmp.eq.s32.totalorder %s11, 0
    %p141 = por %p139, %p140
    %p142 = scmp.ne.s32.totalorder %s131, %s134
    %p143 = scmp.eq.s32.totalorder %s16, 1
    %p144 = por %p142, %p143
    %p145 = scmp.ne.s32.totalorder %s134, %s135
    %p146 = scmp.eq.s32.totalorder %s16, 0
    %p147 = por %p145, %p146
    %p148 = scmp.ne.s32.totalorder %s134, %s135
    %p149 = scmp.eq.s32.totalorder %s17, 1
    %p150 = por %p148, %p149
    %p152 = scmp.ne.s32.totalorder %s135, %s151
    %p153 = scmp.eq.s32.totalorder %s17, 0
    %p154 = por %p152, %p153
    %p155 = scmp.le.s32.totalorder 1, %s11
    %p156 = scmp.lt.s32.totalorder %s11, 3
    %p157 = pnand %p155, %p156
    %p158 = pneg %p157
    // Predicated region
    $region9: #{dense_block_forward.4} parent=5 // pred_check
      _
    $region10: #{dense_block_forward.4} parent=5 // pred_check_branch
      %160 = sbr.rel (%p157) target = $region12
    $region11: #{dense_block_forward.4} parent=5 // pred_region
      %s161 = ssub.s32 %s11, 1
      // Predicated region
      $region13: #{dense_block_forward.4} parent=11 // pred_check
        %p162 = pneg %p58
      $region14: #{dense_block_forward.4} parent=11 // pred_check_branch
        %164 = sbr.rel (%p162) target = $region16
      $region15: #{dense_block_forward.4} parent=11 // pred_region
        _
      $region16: #{dense_block_forward.4} parent=11 // pred_fallthru
        _
      // Predicated region
      $region17: #{dense_block_forward.4} parent=11 // pred_check
        %p165 = pneg %p79
      $region18: #{dense_block_forward.4} parent=11 // pred_check_branch
        %167 = sbr.rel (%p165) target = $region20
      $region19: #{dense_block_forward.4} parent=11 // pred_region
        _
      $region20: #{dense_block_forward.4} parent=11 // pred_fallthru
        _
      // Predicated region
      $region21: #{dense_block_forward.4} parent=11 // pred_check
        %p168 = pneg %p100
      $region22: #{dense_block_forward.4} parent=11 // pred_check_branch
        %170 = sbr.rel (%p168) target = $region24
      $region23: #{dense_block_forward.4} parent=11 // pred_region
        _
      $region24: #{dense_block_forward.4} parent=11 // pred_fallthru
        _
      // Predicated region
      $region25: #{dense_block_forward.4} parent=11 // pred_check
        %p171 = pneg %p121
      $region26: #{dense_block_forward.4} parent=11 // pred_check_branch
        %173 = sbr.rel (%p171) target = $region28
      $region27: #{dense_block_forward.4} parent=11 // pred_region
        _
      $region28: #{dense_block_forward.4} parent=11 // pred_fallthru
        _
    $region12: #{dense_block_forward.4} parent=5 // pred_fallthru
      _
    %p174 = scmp.lt.s32.totalorder %s11, 2
    // Predicated region
    $region29: #{dense_block_forward.4} parent=5 // pred_check
      %p175 = pneg %p174
    $region30: #{dense_block_forward.4} parent=5 // pred_check_branch
      %177 = sbr.rel (%p175) target = $region32
    $region31: #{dense_block_forward.4} parent=5 // pred_region
      // Predicated region
      $region33: #{dense_block_forward.4} parent=31 // pred_check
        %p178 = pneg %p31
      $region34: #{dense_block_forward.4} parent=31 // pred_check_branch
        %180 = sbr.rel (%p178) target = $region36
      $region35: #{dense_block_forward.4} parent=31 // pred_region
        %p181 = scmp.lt.s32.totalorder %s11, 1
        %s182 = scalar_select %p181, %s11, 1
        %s183 = smul.addr %s182, 4
        %s184 = smul.addr %s183, 8
        %s185 = scalar_lea.vmem %s0, %s184
      $region36: #{dense_block_forward.4} parent=31 // pred_fallthru
        _
    $region32: #{dense_block_forward.4} parent=5 // pred_fallthru
      _
    %p186 = scmp.le.s32.totalorder 1, %s11
    %p187 = scmp.lt.s32.totalorder %s11, 3
    %p188 = pnand %p186, %p187
    %p189 = pneg %p188
    // Predicated region
    $region37: #{dense_block_forward.4} parent=5 // pred_check
      _
    $region38: #{dense_block_forward.4} parent=5 // pred_check_branch
      %191 = sbr.rel (%p188) target = $region40
    $region39: #{dense_block_forward.4} parent=5 // pred_region
      %s192 = ssub.s32 %s11, 1
      %p193 = scmp.lt.s32.totalorder %s16, 1
      %s194 = scalar_select %p193, %s16, 1
      %s195 = smul.addr %s194, 4
      %s196 = smul.addr %s195, 8
      %s197 = scalar_lea.vmem %s0, %s196
      %p198 = pneg %p37
      %p199 = pneg %p34
      %p200 = pneg %p58
      %p201 = pneg %p55
      %p202 = pneg %p79
      %p203 = pneg %p76
      %p204 = pneg %p100
      %p205 = pneg %p97
      %p206 = pneg %p121
      %p207 = pneg %p118
      %p208 = pneg %p147
      %p209 = pneg %p144
      %p210 = scmp.lt.s32.totalorder %s16, 1
      %s211 = scalar_select %p210, %s16, 1
      %s212 = smul.addr %s211, 2
      %s213 = smul.addr %s212, 8
      %s214 = scalar_lea.vmem %s5, %s213
      %p215 = scmp.lt.s32.totalorder %s16, 1
      %s216 = scalar_select %p215, %s16, 1
      %s217 = smul.addr %s216, 4
      %s218 = smul.addr %s217, 8
      %s219 = scalar_lea.vmem %s0, %s218
      %p220 = scmp.lt.s32.totalorder %s16, 1
      %s221 = scalar_select %p220, %s16, 1
      %s222 = smul.addr %s221, 2
      %s223 = smul.addr %s222, 8
      %s224 = scalar_lea.vmem %s5, %s223
      %v226 = vld [vmem:[%s219] sm:$0xff]
      %v227 = vld [vmem:[%s219 + $0x8] sm:$0xff]
      %v228 = vld [vmem:[%s219 + $0x10] sm:$0xff]
      %v229 = vld [vmem:[%s219 + $0x18] sm:$0xff]
      %v230 = vld [vmem:[%s1] sm:$0x3]
      %v232 = vlaneseq
      %v233 = vshrl.u32 %v232, 7
      %v234 = vsub.s32 0, %v233
      %v235 = vrot.slane %v230, %v234
      %v236 = vlaneseq
      %v237 = vshrl.u32 %v236, 7
      %v238 = vsub.s32 1, %v237
      %v239 = vrot.slane %v230, %v238
      %v242 = vmul.f32 %v226, %v235
      %v243 = vmul.f32 %v227, %v239
      %v244 = vmul.f32 %v228, %v235
      %v245 = vmul.f32 %v229, %v239
      %v246 = vld [vmem:[%s2] sm:$0x3]
      %v248 = vlaneseq
      %v249 = vshrl.u32 %v248, 7
      %v250 = vsub.s32 0, %v249
      %v251 = vrot.slane %v246, %v250
      %v252 = vlaneseq
      %v253 = vshrl.u32 %v252, 7
      %v254 = vsub.s32 1, %v253
      %v255 = vrot.slane %v246, %v254
      %v258 = vadd.f32 %v242, %v251
      %v259 = vadd.f32 %v243, %v255
      %v260 = vadd.f32 %v244, %v251
      %v261 = vadd.f32 %v245, %v255
      %v262 = vmax.f32 %v258, 0.0
      %v263 = vmax.f32 %v259, 0.0
      %v264 = vmax.f32 %v260, 0.0
      %v265 = vmax.f32 %v261, 0.0
      %v266 = vlaneseq
      %vm267 = vcmp.ge.s32.totalorder %v266, 0
      %vm268 = vcmp.lt.s32.totalorder %v266, 192
      %vm269 = vmand %vm267, %vm268
      %270 = vst.msk [vmem:[#allocation2] ss:$8 sm:$0x3] %vm269, 0.0
      %271 = vst.msk [vmem:[#allocation2] ss:$8 sm:$0x0] %vm269, 0.0
      %s272 = scalar_lea.vmem [#allocation2], 33
      %273 = vst.msk [vmem:[%s272] ss:$8 sm:$0x3] %vm269, 0.0
      %274 = vst.msk [vmem:[%s272] ss:$8 sm:$0x0] %vm269, 0.0
      %vm279 = vcmask 1040384
      %v280 = vrot.slane %v262, 7
      %v281 = vrot.slane %v263, 7
      %v282 = vrot.slane %v264, 7
      %v283 = vsel %vm279, %v280, %v282
      %v284 = vrot.slane %v265, 7
      %v285 = vsel %vm279, %v281, %v284
      %292 = vst [vmem:[#allocation2] sm:$0xfe] %v280
      %vm293 = vcmask 523265
      %294 = vst.msk [vmem:[#allocation2 + $0x8] sm:$0xfe] %vm293, %v281
      %295 = vst [vmem:[#allocation2 + $0x10] sm:$0xff] %v283
      %vm296 = vcmask 523264
      %297 = vst.msk [vmem:[#allocation2 + $0x18] sm:$0xff] %vm296, %v285
      %298 = vst [vmem:[#allocation2 + $0x20] sm:$0x1] %v282
      %vm299 = vcmask 516096
      %300 = vst.msk [vmem:[#allocation2 + $0x28] sm:$0x1] %vm299, %v284
      %v301 = vld [vmem:[#allocation2] sm:$0xff]
      %v302 = vld [vmem:[#allocation2 + $0x8] sm:$0xff]
      %v303 = vld [vmem:[#allocation2 + $0x10] sm:$0xff]
      %v304 = vld [vmem:[#allocation2 + $0x18] sm:$0xff]
      %v305 = vpack.c.bf16 %v303, %v301
      %v306 = vpack.c.bf16 %v304, %v302
      %v307 = vld [vmem:[%s3] sm:$0xf]
      %v308 = vld [vmem:[%s3 + $0x4] sm:$0xf]
      %v309 = vld [vmem:[%s3 + $0x8] sm:$0xf]
      %v310 = vld [vmem:[%s3 + $0xc] sm:$0xf]
      %v311 = vld [vmem:[%s3 + $0x10] sm:$0xf]
      %v312 = vld [vmem:[%s3 + $0x14] sm:$0xf]
      %v313 = vld [vmem:[%s3 + $0x18] sm:$0xf]
      %v314 = vld [vmem:[%s3 + $0x1c] sm:$0xf]
      %v315 = vld [vmem:[%s3 + $0x20] sm:$0xf]
      %v316 = vld [vmem:[%s3 + $0x24] sm:$0xf]
      %v317 = vld [vmem:[%s3 + $0x28] sm:$0xf]
      %v318 = vld [vmem:[%s3 + $0x2c] sm:$0xf]
      %v319 = vld [vmem:[%s3 + $0x30] sm:$0xf]
      %v320 = vld [vmem:[%s3 + $0x34] sm:$0xf]
      %v321 = vld [vmem:[%s3 + $0x38] sm:$0xf]
      %v322 = vld [vmem:[%s3 + $0x3c] sm:$0xf]
      %v323 = vld [vmem:[%s3 + $0x40] sm:$0xf]
      %v324 = vld [vmem:[%s3 + $0x44] sm:$0xf]
      %v325 = vld [vmem:[%s3 + $0x48] sm:$0xf]
      %v326 = vld [vmem:[%s3 + $0x4c] sm:$0xf]
      %v327 = vld [vmem:[%s3 + $0x50] sm:$0xf]
      %v328 = vld [vmem:[%s3 + $0x54] sm:$0xf]
      %v329 = vld [vmem:[%s3 + $0x58] sm:$0xf]
      %v330 = vld [vmem:[%s3 + $0x5c] sm:$0xf]
      %v331 = vld [vmem:[#allocation2] sm:$0xfe]
      %v332 = vld [vmem:[#allocation2 + $0x8] sm:$0xfe]
      %v333 = vld [vmem:[#allocation2 + $0x20] sm:$0x1]
      %v334 = vld [vmem:[#allocation2 + $0x28] sm:$0x1]
      %v335 = vpack.c.bf16 %v303, %v331
      %v336 = vpack.c.bf16 %v304, %v332
      %v337 = vpack.c.bf16 %v333, %v333
      %v338 = vpack.c.bf16 %v334, %v334
      %s339 = scalar_lea.vmem %s3, 96
      %v340 = vld [vmem:[%s339] sm:$0xf]
      %v341 = vld [vmem:[%s339 + $0x4] sm:$0xf]
      %v342 = vld [vmem:[%s339 + $0x8] sm:$0xf]
      %v343 = vld [vmem:[%s339 + $0xc] sm:$0xf]
      %v344 = vld [vmem:[%s339 + $0x10] sm:$0xf]
      %v345 = vld [vmem:[%s339 + $0x14] sm:$0xf]
      %v346 = vld [vmem:[%s339 + $0x18] sm:$0xf]
      %v347 = vld [vmem:[%s339 + $0x1c] sm:$0xf]
      %v348 = vld [vmem:[%s339 + $0x20] sm:$0xf]
      %v349 = vld [vmem:[%s339 + $0x24] sm:$0xf]
      %v350 = vld [vmem:[%s339 + $0x28] sm:$0xf]
      %v351 = vld [vmem:[%s339 + $0x2c] sm:$0xf]
      %v352 = vld [vmem:[%s339 + $0x30] sm:$0xf]
      %v353 = vld [vmem:[%s339 + $0x34] sm:$0xf]
      %v354 = vld [vmem:[%s339 + $0x38] sm:$0xf]
      %v355 = vld [vmem:[%s339 + $0x3c] sm:$0xf]
      %v356 = vld [vmem:[%s339 + $0x40] sm:$0xf]
      %v357 = vld [vmem:[%s339 + $0x44] sm:$0xf]
      %v358 = vld [vmem:[%s339 + $0x48] sm:$0xf]
      %v359 = vld [vmem:[%s339 + $0x4c] sm:$0xf]
      %v360 = vld [vmem:[%s339 + $0x50] sm:$0xf]
      %v361 = vld [vmem:[%s339 + $0x54] sm:$0xf]
      %v362 = vld [vmem:[%s339 + $0x58] sm:$0xf]
      %v363 = vld [vmem:[%s339 + $0x5c] sm:$0xf]
      %vm364 = vsmask.f32 7424
      %v366 = vshrl.u32 %v335, 16
      %v368 = vshll.u32 %v335, 16
      %v370 = vrot.slane %v368, 1
      %v371 = vor.u32 %v366, %v370
      %v373 = vshll.u32 %v337, 16
      %v375 = vrot.slane %v373, 1
      %v376 = vsel %vm364, %v371, %v375
      %v378 = vshrl.u32 %v336, 16
      %v380 = vshll.u32 %v336, 16
      %v382 = vrot.slane %v380, 1
      %v383 = vor.u32 %v378, %v382
      %v385 = vshll.u32 %v338, 16
      %v387 = vrot.slane %v385, 1
      %v388 = vsel %vm364, %v383, %v387
      %v414 = vunpack.c.l.b16 %v340
      %v415 = vunpack.c.l.b16 %v341
      %v416 = vunpack.c.l.b16 %v342
      %v417 = vunpack.c.l.b16 %v343
      %v418 = vunpack.c.l.b16 %v344
      %v419 = vunpack.c.l.b16 %v345
      %v420 = vunpack.c.l.b16 %v346
      %v421 = vunpack.c.l.b16 %v347
      %v422 = vunpack.c.l.b16 %v348
      %v423 = vunpack.c.l.b16 %v349
      %v424 = vunpack.c.l.b16 %v350
      %v425 = vunpack.c.l.b16 %v351
      %v426 = vunpack.c.l.b16 %v352
      %v427 = vunpack.c.l.b16 %v353
      %v428 = vunpack.c.l.b16 %v354
      %v429 = vunpack.c.l.b16 %v355
      %v430 = vunpack.c.l.b16 %v356
      %v431 = vunpack.c.l.b16 %v357
      %v432 = vunpack.c.l.b16 %v358
      %v433 = vunpack.c.l.b16 %v359
      %v434 = vunpack.c.l.b16 %v360
      %v435 = vunpack.c.l.b16 %v361
      %v436 = vunpack.c.l.b16 %v362
      %v437 = vunpack.c.l.b16 %v363
      %v438 = vpack.c.b16 %v415, %v414
      %v439 = vpack.c.b16 %v417, %v416
      %v440 = vpack.c.b16 %v419, %v418
      %v441 = vpack.c.b16 %v421, %v420
      %v442 = vpack.c.b16 %v423, %v422
      %v443 = vpack.c.b16 %v425, %v424
      %v444 = vpack.c.b16 %v427, %v426
      %v445 = vpack.c.b16 %v429, %v428
      %v446 = vpack.c.b16 %v431, %v430
      %v447 = vpack.c.b16 %v433, %v432
      %v448 = vpack.c.b16 %v435, %v434
      %v449 = vpack.c.b16 %v437, %v436
      %v463 = vsel %vm296, %v388, 0
      %465 = vmatprep.subr.bf16.mxu0 0
      %466 = vmatpush1.bf16.msra.mxu0 %v438
      %467 = vmatprep.subr.bf16.mxu0 0
      %468 = vmatpush1.bf16.msra.mxu0 %v439
      %469 = vmatprep.subr.bf16.mxu0 0
      %470 = vmatpush1.bf16.msra.mxu0 %v440
      %471 = vmatprep.subr.bf16.mxu0 0
      %472 = vmatpush1.bf16.msra.mxu0 %v441
      %473 = vmatprep.subr.bf16.mxu0 0
      %474 = vmatpush1.bf16.msra.mxu0 %v442
      %475 = vmatprep.subr.bf16.mxu0 0
      %476 = vmatpush1.bf16.msra.mxu0 %v443
      %477 = vmatprep.subr.bf16.mxu0 0
      %478 = vmatpush1.bf16.msra.mxu0 %v444
      %479 = vmatprep.subr.bf16.mxu0 0
      %480 = vmatpush1.bf16.msra.mxu0 %v445
      %481 = vmatprep.subr.bf16.mxu0 0
      %482 = vmatpush1.bf16.msra.mxu0 %v446
      %483 = vmatprep.subr.bf16.mxu0 0
      %484 = vmatpush1.bf16.msra.mxu0 %v447
      %485 = vmatprep.subr.bf16.mxu0 0
      %486 = vmatpush1.bf16.msra.mxu0 %v448
      %487 = vmatprep.subr.bf16.mxu0 0
      %488 = vmatpush1.bf16.msra.mxu0 %v449
      %489 = vmatprep.subr.bf16.mxu0 0
      %490 = vmatpush1.bf16.msra.mxu0 0
      %491 = vmatprep.subr.bf16.mxu0 0
      %492 = vmatpush1.bf16.msra.mxu0 0
      %493 = vmatprep.subr.bf16.mxu0 0
      %494 = vmatpush1.bf16.msra.mxu0 0
      %495 = vmatprep.subr.bf16.mxu0 0
      %496 = vmatpush1.bf16.msra.mxu0 0
      %497 = vmatprep.mubr.bf16.mxu0 %v463
      %498 = vmatmul.mubr.bf16.gmra.mrb[0].mxu0 %v376
      %v499 = vpop.f32.mrb[0].mxu0
      %v500 = vadd.f32 0.0, %v499
      %v501 = vpop.f32.mrb[0].mxu0
      %v502 = vpop.f32.mrb[0].mxu0
      %v503 = vadd.f32 0.0, %v502
      %v504 = vpop.f32.mrb[0].mxu0
      %505 = vdwg.mxu0
      %v530 = vunpack.c.l.b16 %v307
      %v531 = vunpack.c.l.b16 %v308
      %v532 = vunpack.c.l.b16 %v309
      %v533 = vunpack.c.l.b16 %v310
      %v534 = vunpack.c.l.b16 %v311
      %v535 = vunpack.c.l.b16 %v312
      %v536 = vunpack.c.l.b16 %v313
      %v537 = vunpack.c.l.b16 %v314
      %v538 = vunpack.c.l.b16 %v315
      %v539 = vunpack.c.l.b16 %v316
      %v540 = vunpack.c.l.b16 %v317
      %v541 = vunpack.c.l.b16 %v318
      %v542 = vunpack.c.l.b16 %v319
      %v543 = vunpack.c.l.b16 %v320
      %v544 = vunpack.c.l.b16 %v321
      %v545 = vunpack.c.l.b16 %v322
      %v546 = vunpack.c.l.b16 %v323
      %v547 = vunpack.c.l.b16 %v324
      %v548 = vunpack.c.l.b16 %v325
      %v549 = vunpack.c.l.b16 %v326
      %v550 = vunpack.c.l.b16 %v327
      %v551 = vunpack.c.l.b16 %v328
      %v552 = vunpack.c.l.b16 %v329
      %v553 = vunpack.c.l.b16 %v330
      %v554 = vpack.c.b16 %v531, %v530
      %v555 = vpack.c.b16 %v533, %v532
      %v556 = vpack.c.b16 %v535, %v534
      %v557 = vpack.c.b16 %v537, %v536
      %v558 = vpack.c.b16 %v539, %v538
      %v559 = vpack.c.b16 %v541, %v540
      %v560 = vpack.c.b16 %v543, %v542
      %v561 = vpack.c.b16 %v545, %v544
      %v562 = vpack.c.b16 %v547, %v546
      %v563 = vpack.c.b16 %v549, %v548
      %v564 = vpack.c.b16 %v551, %v550
      %v565 = vpack.c.b16 %v553, %v552
      %v579 = vsel %vm296, %v306, 0
      %581 = vmatprep.subr.bf16.mxu0 0
      %582 = vmatpush1.bf16.msra.mxu0 %v554
      %583 = vmatprep.subr.bf16.mxu0 0
      %584 = vmatpush1.bf16.msra.mxu0 %v555
      %585 = vmatprep.subr.bf16.mxu0 0
      %586 = vmatpush1.bf16.msra.mxu0 %v556
      %587 = vmatprep.subr.bf16.mxu0 0
      %588 = vmatpush1.bf16.msra.mxu0 %v557
      %589 = vmatprep.subr.bf16.mxu0 0
      %590 = vmatpush1.bf16.msra.mxu0 %v558
      %591 = vmatprep.subr.bf16.mxu0 0
      %592 = vmatpush1.bf16.msra.mxu0 %v559
      %593 = vmatprep.subr.bf16.mxu0 0
      %594 = vmatpush1.bf16.msra.mxu0 %v560
      %595 = vmatprep.subr.bf16.mxu0 0
      %596 = vmatpush1.bf16.msra.mxu0 %v561
      %597 = vmatprep.subr.bf16.mxu0 0
      %598 = vmatpush1.bf16.msra.mxu0 %v562
      %599 = vmatprep.subr.bf16.mxu0 0
      %600 = vmatpush1.bf16.msra.mxu0 %v563
      %601 = vmatprep.subr.bf16.mxu0 0
      %602 = vmatpush1.bf16.msra.mxu0 %v564
      %603 = vmatprep.subr.bf16.mxu0 0
      %604 = vmatpush1.bf16.msra.mxu0 %v565
      %605 = vmatprep.subr.bf16.mxu0 0
      %606 = vmatpush1.bf16.msra.mxu0 0
      %607 = vmatprep.subr.bf16.mxu0 0
      %608 = vmatpush1.bf16.msra.mxu0 0
      %609 = vmatprep.subr.bf16.mxu0 0
      %610 = vmatpush1.bf16.msra.mxu0 0
      %611 = vmatprep.subr.bf16.mxu0 0
      %612 = vmatpush1.bf16.msra.mxu0 0
      %613 = vmatprep.mubr.bf16.mxu0 %v579
      %614 = vmatmul.mubr.bf16.gmra.mrb[0].mxu0 %v305
      %v615 = vpop.f32.mrb[0].mxu0
      %v616 = vadd.f32 %v500, %v615
      %v617 = vpop.f32.mrb[0].mxu0
      %v618 = vpop.f32.mrb[0].mxu0
      %v619 = vadd.f32 %v503, %v618
      %v620 = vpop.f32.mrb[0].mxu0
      %621 = vdwg.mxu0
      %v622 = vld [vmem:[#allocation2] sm:$0xfc]
      %v623 = vld [vmem:[#allocation2 + $0x8] sm:$0xfc]
      %v624 = vld [vmem:[#allocation2 + $0x20] sm:$0x3]
      %v625 = vld [vmem:[#allocation2 + $0x28] sm:$0x3]
      %v626 = vpack.c.bf16 %v303, %v622
      %v627 = vpack.c.bf16 %v304, %v623
      %v628 = vpack.c.bf16 %v624, %v624
      %v629 = vpack.c.bf16 %v625, %v625
      %s630 = scalar_lea.vmem %s3, 192
      %v631 = vld [vmem:[%s630] sm:$0xf]
      %v632 = vld [vmem:[%s630 + $0x4] sm:$0xf]
      %v633 = vld [vmem:[%s630 + $0x8] sm:$0xf]
      %v634 = vld [vmem:[%s630 + $0xc] sm:$0xf]
      %v635 = vld [vmem:[%s630 + $0x10] sm:$0xf]
      %v636 = vld [vmem:[%s630 + $0x14] sm:$0xf]
      %v637 = vld [vmem:[%s630 + $0x18] sm:$0xf]
      %v638 = vld [vmem:[%s630 + $0x1c] sm:$0xf]
      %v639 = vld [vmem:[%s630 + $0x20] sm:$0xf]
      %v640 = vld [vmem:[%s630 + $0x24] sm:$0xf]
      %v641 = vld [vmem:[%s630 + $0x28] sm:$0xf]
      %v642 = vld [vmem:[%s630 + $0x2c] sm:$0xf]
      %v643 = vld [vmem:[%s630 + $0x30] sm:$0xf]
      %v644 = vld [vmem:[%s630 + $0x34] sm:$0xf]
      %v645 = vld [vmem:[%s630 + $0x38] sm:$0xf]
      %v646 = vld [vmem:[%s630 + $0x3c] sm:$0xf]
      %v647 = vld [vmem:[%s630 + $0x40] sm:$0xf]
      %v648 = vld [vmem:[%s630 + $0x44] sm:$0xf]
      %v649 = vld [vmem:[%s630 + $0x48] sm:$0xf]
      %v650 = vld [vmem:[%s630 + $0x4c] sm:$0xf]
      %v651 = vld [vmem:[%s630 + $0x50] sm:$0xf]
      %v652 = vld [vmem:[%s630 + $0x54] sm:$0xf]
      %v653 = vld [vmem:[%s630 + $0x58] sm:$0xf]
      %v654 = vld [vmem:[%s630 + $0x5c] sm:$0xf]
      %vm659 = vcmask 1046528
      %v660 = vrot.slane %v626, 1
      %v661 = vrot.slane %v628, 1
      %v662 = vsel %vm659, %v660, %v661
      %v663 = vrot.slane %v627, 1
      %v664 = vrot.slane %v629, 1
      %v665 = vsel %vm659, %v663, %v664
      %v691 = vunpack.c.l.b16 %v631
      %v692 = vunpack.c.l.b16 %v632
      %v693 = vunpack.c.l.b16 %v633
      %v694 = vunpack.c.l.b16 %v634
      %v695 = vunpack.c.l.b16 %v635
      %v696 = vunpack.c.l.b16 %v636
      %v697 = vunpack.c.l.b16 %v637
      %v698 = vunpack.c.l.b16 %v638
      %v699 = vunpack.c.l.b16 %v639
      %v700 = vunpack.c.l.b16 %v640
      %v701 = vunpack.c.l.b16 %v641
      %v702 = vunpack.c.l.b16 %v642
      %v703 = vunpack.c.l.b16 %v643
      %v704 = vunpack.c.l.b16 %v644
      %v705 = vunpack.c.l.b16 %v645
      %v706 = vunpack.c.l.b16 %v646
      %v707 = vunpack.c.l.b16 %v647
      %v708 = vunpack.c.l.b16 %v648
      %v709 = vunpack.c.l.b16 %v649
      %v710 = vunpack.c.l.b16 %v650
      %v711 = vunpack.c.l.b16 %v651
      %v712 = vunpack.c.l.b16 %v652
      %v713 = vunpack.c.l.b16 %v653
      %v714 = vunpack.c.l.b16 %v654
      %v715 = vpack.c.b16 %v692, %v691
      %v716 = vpack.c.b16 %v694, %v693
      %v717 = vpack.c.b16 %v696, %v695
      %v718 = vpack.c.b16 %v698, %v697
      %v719 = vpack.c.b16 %v700, %v699
      %v720 = vpack.c.b16 %v702, %v701
      %v721 = vpack.c.b16 %v704, %v703
      %v722 = vpack.c.b16 %v706, %v705
      %v723 = vpack.c.b16 %v708, %v707
      %v724 = vpack.c.b16 %v710, %v709
      %v725 = vpack.c.b16 %v712, %v711
      %v726 = vpack.c.b16 %v714, %v713
      %v740 = vsel %vm296, %v665, 0
      %742 = vmatprep.subr.bf16.mxu0 0
      %743 = vmatpush1.bf16.msra.mxu0 %v715
      %744 = vmatprep.subr.bf16.mxu0 0
      %745 = vmatpush1.bf16.msra.mxu0 %v716
      %746 = vmatprep.subr.bf16.mxu0 0
      %747 = vmatpush1.bf16.msra.mxu0 %v717
      %748 = vmatprep.subr.bf16.mxu0 0
      %749 = vmatpush1.bf16.msra.mxu0 %v718
      %750 = vmatprep.subr.bf16.mxu0 0
      %751 = vmatpush1.bf16.msra.mxu0 %v719
      %752 = vmatprep.subr.bf16.mxu0 0
      %753 = vmatpush1.bf16.msra.mxu0 %v720
      %754 = vmatprep.subr.bf16.mxu0 0
      %755 = vmatpush1.bf16.msra.mxu0 %v721
      %756 = vmatprep.subr.bf16.mxu0 0
      %757 = vmatpush1.bf16.msra.mxu0 %v722
      %758 = vmatprep.subr.bf16.mxu0 0
      %759 = vmatpush1.bf16.msra.mxu0 %v723
      %760 = vmatprep.subr.bf16.mxu0 0
      %761 = vmatpush1.bf16.msra.mxu0 %v724
      %762 = vmatprep.subr.bf16.mxu0 0
      %763 = vmatpush1.bf16.msra.mxu0 %v725
      %764 = vmatprep.subr.bf16.mxu0 0
      %765 = vmatpush1.bf16.msra.mxu0 %v726
      %766 = vmatprep.subr.bf16.mxu0 0
      %767 = vmatpush1.bf16.msra.mxu0 0
      %768 = vmatprep.subr.bf16.mxu0 0
      %769 = vmatpush1.bf16.msra.mxu0 0
      %770 = vmatprep.subr.bf16.mxu0 0
      %771 = vmatpush1.bf16.msra.mxu0 0
      %772 = vmatprep.subr.bf16.mxu0 0
      %773 = vmatpush1.bf16.msra.mxu0 0
      %774 = vmatprep.mubr.bf16.mxu0 %v740
      %775 = vmatmul.mubr.bf16.gmra.mrb[0].mxu0 %v662
      %v776 = vpop.f32.mrb[0].mxu0
      %v777 = vadd.f32 0.0, %v776
      %v778 = vpop.f32.mrb[0].mxu0
      %v779 = vpop.f32.mrb[0].mxu0
      %v780 = vadd.f32 0.0, %v779
      %v781 = vpop.f32.mrb[0].mxu0
      %782 = vdwg.mxu0
      %v783 = vadd.f32 %v616, %v777
      %v784 = vadd.f32 %v619, %v780
      %v785 = vld [vmem:[%s4] sm:$0x1]
      %v787 = vlaneseq
      %v788 = vshrl.u32 %v787, 7
      %v789 = vsub.s32 0, %v788
      %v790 = vrot.slane %v785, %v789
      %v792 = vadd.f32 %v783, %v790
      %v793 = vadd.f32 %v784, %v790
      %794 = vst [vmem:[%s224] sm:$0xff] %v792
      %795 = vst [vmem:[%s224 + $0x8] sm:$0xff] %v793
      %p796 = scmp.lt.s32.totalorder %s16, 1
      %s797 = scalar_select %p796, %s16, 1
      %s798 = smul.addr %s797, 2
      %s799 = smul.addr %s798, 8
      %s800 = scalar_lea.vmem %s5, %s799
      // Predicated region
      $region41: #{dense_block_forward.4} parent=39 // pred_check
        %p801 = pneg %p144
      $region42: #{dense_block_forward.4} parent=39 // pred_check_branch
        %803 = sbr.rel (%p801) target = $region44
      $region43: #{dense_block_forward.4} parent=39 // pred_region
        _
      $region44: #{dense_block_forward.4} parent=39 // pred_fallthru
        _
    $region40: #{dense_block_forward.4} parent=5 // pred_fallthru
      _
    %p804 = scmp.le.s32.totalorder 2, %s11
    // Predicated region
    $region45: #{dense_block_forward.4} parent=5 // pred_check
      %p805 = pneg %p804
    $region46: #{dense_block_forward.4} parent=5 // pred_check_branch
      %807 = sbr.rel (%p805) target = $region48
    $region47: #{dense_block_forward.4} parent=5 // pred_region
      %s808 = ssub.s32 %s11, 2
      // Predicated region
      $region49: #{dense_block_forward.4} parent=47 // pred_check
        %p809 = pneg %p150
      $region50: #{dense_block_forward.4} parent=47 // pred_check_branch
        %811 = sbr.rel (%p809) target = $region52
      $region51: #{dense_block_forward.4} parent=47 // pred_region
        %p812 = scmp.lt.s32.totalorder %s17, 1
        %s813 = scalar_select %p812, %s17, 1
        %s814 = smul.addr %s813, 2
        %s815 = smul.addr %s814, 8
        %s816 = scalar_lea.vmem %s5, %s815
      $region52: #{dense_block_forward.4} parent=47 // pred_fallthru
        _
    $region48: #{dense_block_forward.4} parent=5 // pred_fallthru
      _
  $region6: #{dense_block_forward.4} parent=0 // loop_footer
    %s15 = sadd.s32 1, %s11
  $region7: #{dense_block_forward.4} parent=0 // loop_footer_branch
    %10 = sbr.rel target = $region3
  $region8: #{dense_block_forward.4} parent=0 // loop_exit
    _

// kernel: tile.78
$region0: #{tile.78}
  #allocation0 [shape = 's32[1]{0}', space=sflag, size = 0x4, scoped, tag = 'scoped memory for tile.78']
  %s0 = inlined_call_operand.vmem [shape: f32[20], index: 0, kind: input, shape index: {}]
  %s1 = inlined_call_operand.vmem [shape: f32[16,20], index: 1, kind: output, shape index: {}]
  // Predicated region
  $region2: #{tile.78} parent=0 // pred_check
    _
  $region3: #{tile.78} parent=0 // pred_check_branch
    %3 = sbr.rel (0) target = $region5
  $region4: #{tile.78} parent=0 // pred_region
    _
  $region5: #{tile.78} parent=0 // pred_fallthru
    _
  %v4 = vld [vmem:[%s0] ss:$0 sm:$0xff]
  %5 = vst [vmem:[%s1] sm:$0xff] %v4
  %s6 = scalar_lea.vmem %s1, 8
  %7 = vst [vmem:[%s6] sm:$0xff] %v4

// kernel: tile.79
$region0: #{tile.79}
  %s0 = inlined_call_operand.vmem [shape: f32[16,20], index: 0, kind: input, shape index: {}]
  %s1 = inlined_call_operand.vmem [shape: f32[1,320], index: 1, kind: output, shape index: {}]
  $region1: #{tile.79} parent=0
    #allocation0 [shape = 'u8[12288]{0}', space=vmem, size = 0x3000, scoped, tag = 'scoped mem for output reshape']
    %v2 = vld [vmem:[%s0] sm:$0x1]
    %vm3 = vcmask 162816
    %4 = vst.msk [vmem:[#allocation0] sm:$0x1] %vm3, %v2
    %s5 = scalar_lea.vmem %s0, 6
    %v6 = vld [vmem:[%s5] sm:$0x1]
    %s7 = scalar_lea.vmem %s0, 6
    %v8 = vld [vmem:[%s7] sm:$0x1]
    %vm9 = vcmask 64512
    %v10 = vsel %vm9, %v8, %v6
    %11 = vrot.lane.b32.xlu0 %v10, 120
    %v12 = vpop.permute.xlu0 %11
    %vm13 = vcmask 97280
    %s14 = scalar_lea.vmem [#allocation0], 8
    %15 = vst.msk [vmem:[%s14] sm:$0x1] %vm13, %v12
    %vm16 = vcmask 1048512
    %17 = vst.msk [vmem:[#allocation0] sm:$0x1] %vm16, %v12
    %s18 = scalar_lea.vmem %s0, 12
    %v19 = vld [vmem:[%s18] sm:$0x1]
    %s20 = scalar_lea.vmem %s0, 12
    %v21 = vld [vmem:[%s20] sm:$0x1]
    %vm22 = vcmask 130048
    %v23 = vsel %vm22, %v21, %v19
    %24 = vrot.lane.b32.xlu0 %v23, 112
    %v25 = vpop.permute.xlu0 %24
    %vm26 = vcmask 31744
    %s27 = scalar_lea.vmem [#allocation0], 16
    %28 = vst.msk [vmem:[%s27] sm:$0x1] %vm26, %v25
    %vm29 = vcmask 1048448
    %s30 = scalar_lea.vmem [#allocation0], 8
    %31 = vst.msk [vmem:[%s30] sm:$0x1] %vm29, %v25
    %s32 = scalar_lea.vmem %s0, 5
    %v33 = vld [vmem:[%s32] sm:$0x1]
    %34 = vrot.lane.b32.xlu0 %v33, 100
    %v35 = vpop.permute.xlu0 %34
    %vm36 = vcmask 982816
    %37 = vst.msk [vmem:[#allocation0] sm:$0x1] %vm36, %v35
    %s38 = scalar_lea.vmem %s0, 11
    %v39 = vld [vmem:[%s38] sm:$0x1]
    %40 = vrot.lane.b32.xlu0 %v39, 92
    %v41 = vpop.permute.xlu0 %40
    %vm42 = vcmask 917216
    %s43 = scalar_lea.vmem [#allocation0], 8
    %44 = vst.msk [vmem:[%s43] sm:$0x1] %vm42, %v41
    %s45 = scalar_lea.vmem %s0, 4
    %v46 = vld [vmem:[%s45] sm:$0x1]
    %47 = vrot.lane.b32.xlu0 %v46, 80
    %v48 = vpop.permute.xlu0 %47
    %vm49 = vcmask 818816
    %50 = vst.msk [vmem:[#allocation0] sm:$0x1] %vm49, %v48
    %s51 = scalar_lea.vmem %s0, 10
    %v52 = vld [vmem:[%s51] sm:$0x1]
    %53 = vrot.lane.b32.xlu0 %v52, 72
    %v54 = vpop.permute.xlu0 %53
    %vm55 = vcmask 753216
    %s56 = scalar_lea.vmem [#allocation0], 8
    %57 = vst.msk [vmem:[%s56] sm:$0x1] %vm55, %v54
    %s58 = scalar_lea.vmem %s0, 3
    %v59 = vld [vmem:[%s58] sm:$0x1]
    %60 = vrot.lane.b32.xlu0 %v59, 60
    %v61 = vpop.permute.xlu0 %60
    %vm62 = vcmask 654816
    %63 = vst.msk [vmem:[#allocation0] sm:$0x1] %vm62, %v61
    %s64 = scalar_lea.vmem %s0, 9
    %v65 = vld [vmem:[%s64] sm:$0x1]
    %66 = vrot.lane.b32.xlu0 %v65, 52
    %v67 = vpop.permute.xlu0 %66
    %vm68 = vcmask 589216
    %s69 = scalar_lea.vmem [#allocation0], 8
    %70 = vst.msk [vmem:[%s69] sm:$0x1] %vm68, %v67
    %s71 = scalar_lea.vmem %s0, 15
    %v72 = vld [vmem:[%s71] sm:$0x1]
    %73 = vrot.lane.b32.xlu0 %v72, 44
    %v74 = vpop.permute.xlu0 %73
    %vm75 = vcmask 523616
    %s76 = scalar_lea.vmem [#allocation0], 16
    %77 = vst.msk [vmem:[%s76] sm:$0x1] %vm75, %v74
    %s78 = scalar_lea.vmem %s0, 2
    %v79 = vld [vmem:[%s78] sm:$0x1]
    %80 = vrot.lane.b32.xlu0 %v79, 40
    %v81 = vpop.permute.xlu0 %80
    %vm82 = vcmask 490816
    %83 = vst.msk [vmem:[#allocation0] sm:$0x1] %vm82, %v81
    %s84 = scalar_lea.vmem %s0, 8
    %v85 = vld [vmem:[%s84] sm:$0x1]
    %86 = vrot.lane.b32.xlu0 %v85, 32
    %v87 = vpop.permute.xlu0 %86
    %vm88 = vcmask 425216
    %s89 = scalar_lea.vmem [#allocation0], 8
    %90 = vst.msk [vmem:[%s89] sm:$0x1] %vm88, %v87
    %s91 = scalar_lea.vmem %s0, 14
    %v92 = vld [vmem:[%s91] sm:$0x1]
    %93 = vrot.lane.b32.xlu0 %v92, 24
    %v94 = vpop.permute.xlu0 %93
    %vm95 = vcmask 359616
    %s96 = scalar_lea.vmem [#allocation0], 16
    %97 = vst.msk [vmem:[%s96] sm:$0x1] %vm95, %v94
    %s98 = scalar_lea.vmem %s0, 1
    %v99 = vld [vmem:[%s98] sm:$0x1]
    %100 = vrot.lane.b32.xlu0 %v99, 20
    %v101 = vpop.permute.xlu0 %100
    %vm102 = vcmask 326816
    %103 = vst.msk [vmem:[#allocation0] sm:$0x1] %vm102, %v101
    %s104 = scalar_lea.vmem %s0, 7
    %v105 = vld [vmem:[%s104] sm:$0x1]
    %106 = vrot.lane.b32.xlu0 %v105, 12
    %v107 = vpop.permute.xlu0 %106
    %vm108 = vcmask 261216
    %s109 = scalar_lea.vmem [#allocation0], 8
    %110 = vst.msk [vmem:[%s109] sm:$0x1] %vm108, %v107
    %s111 = scalar_lea.vmem %s0, 13
    %v112 = vld [vmem:[%s111] sm:$0x1]
    %113 = vrot.lane.b32.xlu0 %v112, 4
    %v114 = vpop.permute.xlu0 %113
    %vm115 = vcmask 195616
    %s116 = scalar_lea.vmem [#allocation0], 16
    %117 = vst.msk [vmem:[%s116] sm:$0x1] %vm115, %v114
    %s119 = sshllo.u32 0, 1
    %v121 = vld [vmem:[#allocation0] sm:%s119]
    %s122 = sshllo.u32 0, 1
    %123 = vst [vmem:[%s1] sm:%s122] %v121
    %s124 = scalar_lea.vmem [#allocation0], 8
    %v125 = vld [vmem:[%s124] sm:%s119]
    %s126 = sshllo.u32 0, 1
    %s127 = scalar_lea.vmem %s1, 1
    %128 = vst [vmem:[%s127] sm:%s126] %v125
    %s129 = scalar_lea.vmem [#allocation0], 16
    %v130 = vld [vmem:[%s129] sm:%s119]
    %s131 = sshllo.u32 0, 1
    %s132 = smul.addr 1, 2
    %s133 = scalar_lea.vmem %s1, %s132
    %134 = vst [vmem:[%s133] sm:%s131] %v130

// kernel: dense_block_forward.5
$region0: #{dense_block_forward.5}
  #allocation0 [shape = 'u32[]', space=smem, size = 0x4, offset = 0x4, fixed_abs, tag = 'smem constant byte address 0x4 - core index']
  #allocation1 [shape = 'u32[144,128]{1,0:T(1,128)}', space=vmem, size = 0x12000, scoped, tag = 'internal scratch']
  #allocation2 [shape = 'f32[18,320]{1,0:T(8,128)}', space=vmem, size = 0x9000, scoped, tag = 'scratch operand']
  %s0 = inlined_call_operand.vmem [shape: f32[2,16,320], index: 0, kind: input, shape index: {}]
  %s1 = inlined_call_operand.vmem [shape: f32[1,320], index: 1, kind: input, shape index: {}]
  %s2 = inlined_call_operand.vmem [shape: f32[1,320], index: 2, kind: input, shape index: {}]
  %s3 = inlined_call_operand.vmem [shape: bf16[3,320,128], index: 3, kind: input, shape index: {}]
  %s4 = inlined_call_operand.vmem [shape: f32[1,128], index: 4, kind: input, shape index: {}]
  %s5 = inlined_call_operand.vmem [shape: f32[2,16,128], index: 5, kind: output, shape index: {}]
  %s6 = sld [smem:[#allocation0]]
  $region53: #{dense_block_forward.5} parent=0
    _
  %s8 = ssub.s32 1, %s6
  %s9 = scalar_select 0, %s8, %s6
  loop: start=0, step=1, limit=4
  $region2: #{dense_block_forward.5} parent=0 // loop_pre_header
    _
  $region3: #{dense_block_forward.5} parent=0 // loop_header
    %s11 = sphi 0, %s15
    %p12 = scmp.ge.s32.totalorder %s11, 4
    %s21 = sphi 0, %s23
    %s24 = sphi 0, %s21
    %s25 = sphi 0, %s24
    %s41 = sphi 0, %s25
    %s45 = sphi 0, %s45
    %s47 = sphi 0, %s45
    %s48 = sphi 0, %s47
    %s62 = sphi 0, %s48
    %s66 = sphi 0, %s66
    %s68 = sphi 0, %s66
    %s69 = sphi 0, %s68
    %s83 = sphi 0, %s69
    %s87 = sphi 0, %s87
    %s89 = sphi 0, %s87
    %s90 = sphi 0, %s89
    %s104 = sphi 0, %s90
    %s108 = sphi 0, %s108
    %s110 = sphi 0, %s108
    %s111 = sphi 0, %s110
    %s125 = sphi 0, %s111
    %s131 = sphi 0, %s133
    %s134 = sphi 0, %s131
    %s135 = sphi 0, %s134
    %s151 = sphi 0, %s135
  $region4: #{dense_block_forward.5} parent=0 // loop_header_branch
    %14 = sbr.rel (%p12) target = $region8
  $region5: #{dense_block_forward.5} parent=0 // loop_body
    %s16 = ssub.s32 %s11, 1
    %s17 = ssub.s32 %s11, 2
    %s18 = sadd.s32 %s11, 1
    %s19 = ssub.s32 %s11, %s18
    %p20 = scmp.eq.s32.totalorder %s19, 0
    %s22 = sadd.s32 %s21, 1
    %s23 = scalar_select %p20, %s21, %s22
    %p26 = pneg %p20
    %p27 = scmp.eq.s32.totalorder %s11, 1
    %p28 = por %p26, %p27
    %p29 = scmp.ne.s32.totalorder %s21, %s24
    %p30 = scmp.eq.s32.totalorder %s11, 0
    %p31 = por %p29, %p30
    %p32 = scmp.ne.s32.totalorder %s21, %s24
    %p33 = scmp.eq.s32.totalorder %s16, 1
    %p34 = por %p32, %p33
    %p35 = scmp.ne.s32.totalorder %s24, %s25
    %p36 = scmp.eq.s32.totalorder %s16, 0
    %p37 = por %p35, %p36
    %p38 = scmp.ne.s32.totalorder %s24, %s25
    %p39 = scmp.eq.s32.totalorder %s17, 1
    %p40 = por %p38, %p39
    %p42 = scmp.ne.s32.totalorder %s25, %s41
    %p43 = scmp.eq.s32.totalorder %s17, 0
    %p44 = por %p42, %p43
    %s46 = sadd.s32 %s45, 1
    %p49 = scmp.eq.s32.totalorder %s11, 1
    %p50 = scmp.ne.s32.totalorder %s45, %s47
    %p51 = scmp.eq.s32.totalorder %s11, 0
    %p52 = por %p50, %p51
    %p53 = scmp.ne.s32.totalorder %s45, %s47
    %p54 = scmp.eq.s32.totalorder %s16, 1
    %p55 = por %p53, %p54
    %p56 = scmp.ne.s32.totalorder %s47, %s48
    %p57 = scmp.eq.s32.totalorder %s16, 0
    %p58 = por %p56, %p57
    %p59 = scmp.ne.s32.totalorder %s47, %s48
    %p60 = scmp.eq.s32.totalorder %s17, 1
    %p61 = por %p59, %p60
    %p63 = scmp.ne.s32.totalorder %s48, %s62
    %p64 = scmp.eq.s32.totalorder %s17, 0
    %p65 = por %p63, %p64
    %s67 = sadd.s32 %s66, 1
    %p70 = scmp.eq.s32.totalorder %s11, 1
    %p71 = scmp.ne.s32.totalorder %s66, %s68
    %p72 = scmp.eq.s32.totalorder %s11, 0
    %p73 = por %p71, %p72
    %p74 = scmp.ne.s32.totalorder %s66, %s68
    %p75 = scmp.eq.s32.totalorder %s16, 1
    %p76 = por %p74, %p75
    %p77 = scmp.ne.s32.totalorder %s68, %s69
    %p78 = scmp.eq.s32.totalorder %s16, 0
    %p79 = por %p77, %p78
    %p80 = scmp.ne.s32.totalorder %s68, %s69
    %p81 = scmp.eq.s32.totalorder %s17, 1
    %p82 = por %p80, %p81
    %p84 = scmp.ne.s32.totalorder %s69, %s83
    %p85 = scmp.eq.s32.totalorder %s17, 0
    %p86 = por %p84, %p85
    %s88 = sadd.s32 %s87, 1
    %p91 = scmp.eq.s32.totalorder %s11, 1
    %p92 = scmp.ne.s32.totalorder %s87, %s89
    %p93 = scmp.eq.s32.totalorder %s11, 0
    %p94 = por %p92, %p93
    %p95 = scmp.ne.s32.totalorder %s87, %s89
    %p96 = scmp.eq.s32.totalorder %s16, 1
    %p97 = por %p95, %p96
    %p98 = scmp.ne.s32.totalorder %s89, %s90
    %p99 = scmp.eq.s32.totalorder %s16, 0
    %p100 = por %p98, %p99
    %p101 = scmp.ne.s32.totalorder %s89, %s90
    %p102 = scmp.eq.s32.totalorder %s17, 1
    %p103 = por %p101, %p102
    %p105 = scmp.ne.s32.totalorder %s90, %s104
    %p106 = scmp.eq.s32.totalorder %s17, 0
    %p107 = por %p105, %p106
    %s109 = sadd.s32 %s108, 1
    %p112 = scmp.eq.s32.totalorder %s11, 1
    %p113 = scmp.ne.s32.totalorder %s108, %s110
    %p114 = scmp.eq.s32.totalorder %s11, 0
    %p115 = por %p113, %p114
    %p116 = scmp.ne.s32.totalorder %s108, %s110
    %p117 = scmp.eq.s32.totalorder %s16, 1
    %p118 = por %p116, %p117
    %p119 = scmp.ne.s32.totalorder %s110, %s111
    %p120 = scmp.eq.s32.totalorder %s16, 0
    %p121 = por %p119, %p120
    %p122 = scmp.ne.s32.totalorder %s110, %s111
    %p123 = scmp.eq.s32.totalorder %s17, 1
    %p124 = por %p122, %p123
    %p126 = scmp.ne.s32.totalorder %s111, %s125
    %p127 = scmp.eq.s32.totalorder %s17, 0
    %p128 = por %p126, %p127
    %s129 = ssub.s32 %s11, %s18
    %p130 = scmp.eq.s32.totalorder %s129, 0
    %s132 = sadd.s32 %s131, 1
    %s133 = scalar_select %p130, %s131, %s132
    %p136 = pneg %p130
    %p137 = scmp.eq.s32.totalorder %s11, 1
    %p138 = por %p136, %p137
    %p139 = scmp.ne.s32.totalorder %s131, %s134
    %p140 = scmp.eq.s32.totalorder %s11, 0
    %p141 = por %p139, %p140
    %p142 = scmp.ne.s32.totalorder %s131, %s134
    %p143 = scmp.eq.s32.totalorder %s16, 1
    %p144 = por %p142, %p143
    %p145 = scmp.ne.s32.totalorder %s134, %s135
    %p146 = scmp.eq.s32.totalorder %s16, 0
    %p147 = por %p145, %p146
    %p148 = scmp.ne.s32.totalorder %s134, %s135
    %p149 = scmp.eq.s32.totalorder %s17, 1
    %p150 = por %p148, %p149
    %p152 = scmp.ne.s32.totalorder %s135, %s151
    %p153 = scmp.eq.s32.totalorder %s17, 0
    %p154 = por %p152, %p153
    %p155 = scmp.le.s32.totalorder 1, %s11
    %p156 = scmp.lt.s32.totalorder %s11, 3
    %p157 = pnand %p155, %p156
    %p158 = pneg %p157
    // Predicated region
    $region9: #{dense_block_forward.5} parent=5 // pred_check
      _
    $region10: #{dense_block_forward.5} parent=5 // pred_check_branch
      %160 = sbr.rel (%p157) target = $region12
    $region11: #{dense_block_forward.5} parent=5 // pred_region
      %s161 = ssub.s32 %s11, 1
      // Predicated region
      $region13: #{dense_block_forward.5} parent=11 // pred_check
        %p162 = pneg %p58
      $region14: #{dense_block_forward.5} parent=11 // pred_check_branch
        %164 = sbr.rel (%p162) target = $region16
      $region15: #{dense_block_forward.5} parent=11 // pred_region
        _
      $region16: #{dense_block_forward.5} parent=11 // pred_fallthru
        _
      // Predicated region
      $region17: #{dense_block_forward.5} parent=11 // pred_check
        %p165 = pneg %p79
      $region18: #{dense_block_forward.5} parent=11 // pred_check_branch
        %167 = sbr.rel (%p165) target = $region20
      $region19: #{dense_block_forward.5} parent=11 // pred_region
        _
      $region20: #{dense_block_forward.5} parent=11 // pred_fallthru
        _
      // Predicated region
      $region21: #{dense_block_forward.5} parent=11 // pred_check
        %p168 = pneg %p100
      $region22: #{dense_block_forward.5} parent=11 // pred_check_branch
        %170 = sbr.rel (%p168) target = $region24
      $region23: #{dense_block_forward.5} parent=11 // pred_region
        _
      $region24: #{dense_block_forward.5} parent=11 // pred_fallthru
        _
      // Predicated region
      $region25: #{dense_block_forward.5} parent=11 // pred_check
        %p171 = pneg %p121
      $region26: #{dense_block_forward.5} parent=11 // pred_check_branch
        %173 = sbr.rel (%p171) target = $region28
      $region27: #{dense_block_forward.5} parent=11 // pred_region
        _
      $region28: #{dense_block_forward.5} parent=11 // pred_fallthru
        _
    $region12: #{dense_block_forward.5} parent=5 // pred_fallthru
      _
    %p174 = scmp.lt.s32.totalorder %s11, 2
    // Predicated region
    $region29: #{dense_block_forward.5} parent=5 // pred_check
      %p175 = pneg %p174
    $region30: #{dense_block_forward.5} parent=5 // pred_check_branch
      %177 = sbr.rel (%p175) target = $region32
    $region31: #{dense_block_forward.5} parent=5 // pred_region
      // Predicated region
      $region33: #{dense_block_forward.5} parent=31 // pred_check
        %p178 = pneg %p31
      $region34: #{dense_block_forward.5} parent=31 // pred_check_branch
        %180 = sbr.rel (%p178) target = $region36
      $region35: #{dense_block_forward.5} parent=31 // pred_region
        %p181 = scmp.lt.s32.totalorder %s11, 1
        %s182 = scalar_select %p181, %s11, 1
        %s183 = smul.addr %s182, 6
        %s184 = smul.addr %s183, 8
        %s185 = scalar_lea.vmem %s0, %s184
      $region36: #{dense_block_forward.5} parent=31 // pred_fallthru
        _
    $region32: #{dense_block_forward.5} parent=5 // pred_fallthru
      _
    %p186 = scmp.le.s32.totalorder 1, %s11
    %p187 = scmp.lt.s32.totalorder %s11, 3
    %p188 = pnand %p186, %p187
    %p189 = pneg %p188
    // Predicated region
    $region37: #{dense_block_forward.5} parent=5 // pred_check
      _
    $region38: #{dense_block_forward.5} parent=5 // pred_check_branch
      %191 = sbr.rel (%p188) target = $region40
    $region39: #{dense_block_forward.5} parent=5 // pred_region
      %s192 = ssub.s32 %s11, 1
      %p193 = scmp.lt.s32.totalorder %s16, 1
      %s194 = scalar_select %p193, %s16, 1
      %s195 = smul.addr %s194, 6
      %s196 = smul.addr %s195, 8
      %s197 = scalar_lea.vmem %s0, %s196
      %p198 = pneg %p37
      %p199 = pneg %p34
      %p200 = pneg %p58
      %p201 = pneg %p55
      %p202 = pneg %p79
      %p203 = pneg %p76
      %p204 = pneg %p100
      %p205 = pneg %p97
      %p206 = pneg %p121
      %p207 = pneg %p118
      %p208 = pneg %p147
      %p209 = pneg %p144
      %p210 = scmp.lt.s32.totalorder %s16, 1
      %s211 = scalar_select %p210, %s16, 1
      %s212 = smul.addr %s211, 2
      %s213 = smul.addr %s212, 8
      %s214 = scalar_lea.vmem %s5, %s213
      %p215 = scmp.lt.s32.totalorder %s16, 1
      %s216 = scalar_select %p215, %s16, 1
      %s217 = smul.addr %s216, 6
      %s218 = smul.addr %s217, 8
      %s219 = scalar_lea.vmem %s0, %s218
      %p220 = scmp.lt.s32.totalorder %s16, 1
      %s221 = scalar_select %p220, %s16, 1
      %s222 = smul.addr %s221, 2
      %s223 = smul.addr %s222, 8
      %s224 = scalar_lea.vmem %s5, %s223
      %v226 = vld [vmem:[%s219] sm:$0xff]
      %v227 = vld [vmem:[%s219 + $0x8] sm:$0xff]
      %v228 = vld [vmem:[%s219 + $0x10] sm:$0xff]
      %v229 = vld [vmem:[%s219 + $0x18] sm:$0xff]
      %v230 = vld [vmem:[%s219 + $0x20] sm:$0xff]
      %v231 = vld [vmem:[%s219 + $0x28] sm:$0xff]
      %v232 = vld [vmem:[%s1] sm:$0x7]
      %v234 = vlaneseq
      %v235 = vshrl.u32 %v234, 7
      %v236 = vsub.s32 0, %v235
      %v237 = vrot.slane %v232, %v236
      %v238 = vlaneseq
      %v239 = vshrl.u32 %v238, 7
      %v240 = vsub.s32 1, %v239
      %v241 = vrot.slane %v232, %v240
      %v242 = vlaneseq
      %v243 = vshrl.u32 %v242, 7
      %v244 = vsub.s32 2, %v243
      %v245 = vrot.slane %v232, %v244
      %v249 = vmul.f32 %v226, %v237
      %v250 = vmul.f32 %v227, %v241
      %v251 = vmul.f32 %v228, %v245
      %v252 = vmul.f32 %v229, %v237
      %v253 = vmul.f32 %v230, %v241
      %v254 = vmul.f32 %v231, %v245
      %v255 = vld [vmem:[%s2] sm:$0x7]
      %v257 = vlaneseq
      %v258 = vshrl.u32 %v257, 7
      %v259 = vsub.s32 0, %v258
      %v260 = vrot.slane %v255, %v259
      %v261 = vlaneseq
      %v262 = vshrl.u32 %v261, 7
      %v263 = vsub.s32 1, %v262
      %v264 = vrot.slane %v255, %v263
      %v265 = vlaneseq
      %v266 = vshrl.u32 %v265, 7
      %v267 = vsub.s32 2, %v266
      %v268 = vrot.slane %v255, %v267
      %v272 = vadd.f32 %v249, %v260
      %v273 = vadd.f32 %v250, %v264
      %v274 = vadd.f32 %v251, %v268
      %v275 = vadd.f32 %v252, %v260
      %v276 = vadd.f32 %v253, %v264
      %v277 = vadd.f32 %v254, %v268
      %v278 = vmax.f32 %v272, 0.0
      %v279 = vmax.f32 %v273, 0.0
      %v280 = vmax.f32 %v274, 0.0
      %v281 = vmax.f32 %v275, 0.0
      %v282 = vmax.f32 %v276, 0.0
      %v283 = vmax.f32 %v277, 0.0
      %v284 = vlaneseq
      %vm285 = vcmp.ge.s32.totalorder %v284, 0
      %vm286 = vcmp.lt.s32.totalorder %v284, 320
      %vm287 = vmand %vm285, %vm286
      %288 = vst.msk [vmem:[#allocation2] ss:$8 sm:$0x7] %vm287, 0.0
      %289 = vst.msk [vmem:[#allocation2] ss:$8 sm:$0x0] %vm287, 0.0
      %s290 = scalar_lea.vmem [#allocation2], 49
      %291 = vst.msk [vmem:[%s290] ss:$8 sm:$0x7] %vm287, 0.0
      %292 = vst.msk [vmem:[%s290] ss:$8 sm:$0x0] %vm287, 0.0
      %vm299 = vcmask 1040384
      %v300 = vrot.slane %v278, 7
      %v301 = vrot.slane %v279, 7
      %v302 = vrot.slane %v280, 7
      %v303 = vrot.slane %v281, 7
      %v304 = vsel %vm299, %v300, %v303
      %v305 = vrot.slane %v282, 7
      %v306 = vsel %vm299, %v301, %v305
      %v307 = vrot.slane %v283, 7
      %v308 = vsel %vm299, %v302, %v307
      %318 = vst [vmem:[#allocation2] sm:$0xfe] %v300
      %319 = vst [vmem:[#allocation2 + $0x8] sm:$0xfe] %v301
      %vm320 = vcmask 523265
      %321 = vst.msk [vmem:[#allocation2 + $0x10] sm:$0xfe] %vm320, %v302
      %322 = vst [vmem:[#allocation2 + $0x18] sm:$0xff] %v304
      %323 = vst [vmem:[#allocation2 + $0x20] sm:$0xff] %v306
      %vm324 = vcmask 523264
      %325 = vst.msk [vmem:[#allocation2 + $0x28] sm:$0xff] %vm324, %v308
      %326 = vst [vmem:[#allocation2 + $0x30] sm:$0x1] %v303
      %327 = vst [vmem:[#allocation2 + $0x38] sm:$0x1] %v305
      %vm328 = vcmask 516096
      %329 = vst.msk [vmem:[#allocation2 + $0x40] sm:$0x1] %vm328, %v307
      %v330 = vld [vmem:[#allocation2] sm:$0xff]
      %v331 = vld [vmem:[#allocation2 + $0x8] sm:$0xff]
      %v332 = vld [vmem:[#allocation2 + $0x10] sm:$0xff]
      %v333 = vld [vmem:[#allocation2 + $0x18] sm:$0xff]
      %v334 = vld [vmem:[#allocation2 + $0x20] sm:$0xff]
      %v335 = vld [vmem:[#allocation2 + $0x28] sm:$0xff]
      %v336 = vpack.c.bf16 %v333, %v330
      %v337 = vpack.c.bf16 %v334, %v331
      %v338 = vpack.c.bf16 %v335, %v332
      %v339 = vld [vmem:[%s3] sm:$0xf]
      %v340 = vld [vmem:[%s3 + $0x4] sm:$0xf]
      %v341 = vld [vmem:[%s3 + $0x8] sm:$0xf]
      %v342 = vld [vmem:[%s3 + $0xc] sm:$0xf]
      %v343 = vld [vmem:[%s3 + $0x10] sm:$0xf]
      %v344 = vld [vmem:[%s3 + $0x14] sm:$0xf]
      %v345 = vld [vmem:[%s3 + $0x18] sm:$0xf]
      %v346 = vld [vmem:[%s3 + $0x1c] sm:$0xf]
      %v347 = vld [vmem:[%s3 + $0x20] sm:$0xf]
      %v348 = vld [vmem:[%s3 + $0x24] sm:$0xf]
      %v349 = vld [vmem:[%s3 + $0x28] sm:$0xf]
      %v350 = vld [vmem:[%s3 + $0x2c] sm:$0xf]
      %v351 = vld [vmem:[%s3 + $0x30] sm:$0xf]
      %v352 = vld [vmem:[%s3 + $0x34] sm:$0xf]
      %v353 = vld [vmem:[%s3 + $0x38] sm:$0xf]
      %v354 = vld [vmem:[%s3 + $0x3c] sm:$0xf]
      %v355 = vld [vmem:[%s3 + $0x40] sm:$0xf]
      %v356 = vld [vmem:[%s3 + $0x44] sm:$0xf]
      %v357 = vld [vmem:[%s3 + $0x48] sm:$0xf]
      %v358 = vld [vmem:[%s3 + $0x4c] sm:$0xf]
      %v359 = vld [vmem:[%s3 + $0x50] sm:$0xf]
      %v360 = vld [vmem:[%s3 + $0x54] sm:$0xf]
      %v361 = vld [vmem:[%s3 + $0x58] sm:$0xf]
      %v362 = vld [vmem:[%s3 + $0x5c] sm:$0xf]
      %v363 = vld [vmem:[%s3 + $0x60] sm:$0xf]
      %v364 = vld [vmem:[%s3 + $0x64] sm:$0xf]
      %v365 = vld [vmem:[%s3 + $0x68] sm:$0xf]
      %v366 = vld [vmem:[%s3 + $0x6c] sm:$0xf]
      %v367 = vld [vmem:[%s3 + $0x70] sm:$0xf]
      %v368 = vld [vmem:[%s3 + $0x74] sm:$0xf]
      %v369 = vld [vmem:[%s3 + $0x78] sm:$0xf]
      %v370 = vld [vmem:[%s3 + $0x7c] sm:$0xf]
      %v371 = vld [vmem:[%s3 + $0x80] sm:$0xf]
      %v372 = vld [vmem:[%s3 + $0x84] sm:$0xf]
      %v373 = vld [vmem:[%s3 + $0x88] sm:$0xf]
      %v374 = vld [vmem:[%s3 + $0x8c] sm:$0xf]
      %v375 = vld [vmem:[%s3 + $0x90] sm:$0xf]
      %v376 = vld [vmem:[%s3 + $0x94] sm:$0xf]
      %v377 = vld [vmem:[%s3 + $0x98] sm:$0xf]
      %v378 = vld [vmem:[%s3 + $0x9c] sm:$0xf]
      %v379 = vld [vmem:[#allocation2] sm:$0xfe]
      %v380 = vld [vmem:[#allocation2 + $0x8] sm:$0xfe]
      %v381 = vld [vmem:[#allocation2 + $0x10] sm:$0xfe]
      %v382 = vld [vmem:[#allocation2 + $0x30] sm:$0x1]
      %v383 = vld [vmem:[#allocation2 + $0x38] sm:$0x1]
      %v384 = vld [vmem:[#allocation2 + $0x40] sm:$0x1]
      %v385 = vpack.c.bf16 %v333, %v379
      %v386 = vpack.c.bf16 %v334, %v380
      %v387 = vpack.c.bf16 %v335, %v381
      %v388 = vpack.c.bf16 %v382, %v382
      %v389 = vpack.c.bf16 %v383, %v383
      %v390 = vpack.c.bf16 %v384, %v384
      %s391 = scalar_lea.vmem %s3, 160
      %v392 = vld [vmem:[%s391] sm:$0xf]
      %v393 = vld [vmem:[%s391 + $0x4] sm:$0xf]
      %v394 = vld [vmem:[%s391 + $0x8] sm:$0xf]
      %v395 = vld [vmem:[%s391 + $0xc] sm:$0xf]
      %v396 = vld [vmem:[%s391 + $0x10] sm:$0xf]
      %v397 = vld [vmem:[%s391 + $0x14] sm:$0xf]
      %v398 = vld [vmem:[%s391 + $0x18] sm:$0xf]
      %v399 = vld [vmem:[%s391 + $0x1c] sm:$0xf]
      %v400 = vld [vmem:[%s391 + $0x20] sm:$0xf]
      %v401 = vld [vmem:[%s391 + $0x24] sm:$0xf]
      %v402 = vld [vmem:[%s391 + $0x28] sm:$0xf]
      %v403 = vld [vmem:[%s391 + $0x2c] sm:$0xf]
      %v404 = vld [vmem:[%s391 + $0x30] sm:$0xf]
      %v405 = vld [vmem:[%s391 + $0x34] sm:$0xf]
      %v406 = vld [vmem:[%s391 + $0x38] sm:$0xf]
      %v407 = vld [vmem:[%s391 + $0x3c] sm:$0xf]
      %v408 = vld [vmem:[%s391 + $0x40] sm:$0xf]
      %v409 = vld [vmem:[%s391 + $0x44] sm:$0xf]
      %v410 = vld [vmem:[%s391 + $0x48] sm:$0xf]
      %v411 = vld [vmem:[%s391 + $0x4c] sm:$0xf]
      %v412 = vld [vmem:[%s391 + $0x50] sm:$0xf]
      %v413 = vld [vmem:[%s391 + $0x54] sm:$0xf]
      %v414 = vld [vmem:[%s391 + $0x58] sm:$0xf]
      %v415 = vld [vmem:[%s391 + $0x5c] sm:$0xf]
      %v416 = vld [vmem:[%s391 + $0x60] sm:$0xf]
      %v417 = vld [vmem:[%s391 + $0x64] sm:$0xf]
      %v418 = vld [vmem:[%s391 + $0x68] sm:$0xf]
      %v419 = vld [vmem:[%s391 + $0x6c] sm:$0xf]
      %v420 = vld [vmem:[%s391 + $0x70] sm:$0xf]
      %v421 = vld [vmem:[%s391 + $0x74] sm:$0xf]
      %v422 = vld [vmem:[%s391 + $0x78] sm:$0xf]
      %v423 = vld [vmem:[%s391 + $0x7c] sm:$0xf]
      %v424 = vld [vmem:[%s391 + $0x80] sm:$0xf]
      %v425 = vld [vmem:[%s391 + $0x84] sm:$0xf]
      %v426 = vld [vmem:[%s391 + $0x88] sm:$0xf]
      %v427 = vld [vmem:[%s391 + $0x8c] sm:$0xf]
      %v428 = vld [vmem:[%s391 + $0x90] sm:$0xf]
      %v429 = vld [vmem:[%s391 + $0x94] sm:$0xf]
      %v430 = vld [vmem:[%s391 + $0x98] sm:$0xf]
      %v431 = vld [vmem:[%s391 + $0x9c] sm:$0xf]
      %vm432 = vsmask.f32 7424
      %v434 = vshrl.u32 %v385, 16
      %v436 = vshll.u32 %v385, 16
      %v438 = vrot.slane %v436, 1
      %v439 = vor.u32 %v434, %v438
      %v441 = vshll.u32 %v388, 16
      %v443 = vrot.slane %v441, 1
      %v444 = vsel %vm432, %v439, %v443
      %v446 = vshrl.u32 %v386, 16
      %v448 = vshll.u32 %v386, 16
      %v450 = vrot.slane %v448, 1
      %v451 = vor.u32 %v446, %v450
      %v453 = vshll.u32 %v389, 16
      %v455 = vrot.slane %v453, 1
      %v456 = vsel %vm432, %v451, %v455
      %v458 = vshrl.u32 %v387, 16
      %v460 = vshll.u32 %v387, 16
      %v462 = vrot.slane %v460, 1
      %v463 = vor.u32 %v458, %v462
      %v465 = vshll.u32 %v390, 16
      %v467 = vrot.slane %v465, 1
      %v468 = vsel %vm432, %v463, %v467
      %v511 = vunpack.c.l.b16 %v392
      %v512 = vunpack.c.l.b16 %v393
      %v513 = vunpack.c.l.b16 %v394
      %v514 = vunpack.c.l.b16 %v395
      %v515 = vunpack.c.l.b16 %v396
      %v516 = vunpack.c.l.b16 %v397
      %v517 = vunpack.c.l.b16 %v398
      %v518 = vunpack.c.l.b16 %v399
      %v519 = vunpack.c.l.b16 %v400
      %v520 = vunpack.c.l.b16 %v401
      %v521 = vunpack.c.l.b16 %v402
      %v522 = vunpack.c.l.b16 %v403
      %v523 = vunpack.c.l.b16 %v404
      %v524 = vunpack.c.l.b16 %v405
      %v525 = vunpack.c.l.b16 %v406
      %v526 = vunpack.c.l.b16 %v407
      %v527 = vunpack.c.l.b16 %v408
      %v528 = vunpack.c.l.b16 %v409
      %v529 = vunpack.c.l.b16 %v410
      %v530 = vunpack.c.l.b16 %v411
      %v531 = vunpack.c.l.b16 %v412
      %v532 = vunpack.c.l.b16 %v413
      %v533 = vunpack.c.l.b16 %v414
      %v534 = vunpack.c.l.b16 %v415
      %v535 = vunpack.c.l.b16 %v416
      %v536 = vunpack.c.l.b16 %v417
      %v537 = vunpack.c.l.b16 %v418
      %v538 = vunpack.c.l.b16 %v419
      %v539 = vunpack.c.l.b16 %v420
      %v540 = vunpack.c.l.b16 %v421
      %v541 = vunpack.c.l.b16 %v422
      %v542 = vunpack.c.l.b16 %v423
      %v543 = vunpack.c.l.b16 %v424
      %v544 = vunpack.c.l.b16 %v425
      %v545 = vunpack.c.l.b16 %v426
      %v546 = vunpack.c.l.b16 %v427
      %v547 = vunpack.c.l.b16 %v428
      %v548 = vunpack.c.l.b16 %v429
      %v549 = vunpack.c.l.b16 %v430
      %v550 = vunpack.c.l.b16 %v431
      %v551 = vpack.c.b16 %v512, %v511
      %v552 = vpack.c.b16 %v514, %v513
      %v553 = vpack.c.b16 %v516, %v515
      %v554 = vpack.c.b16 %v518, %v517
      %v555 = vpack.c.b16 %v520, %v519
      %v556 = vpack.c.b16 %v522, %v521
      %v557 = vpack.c.b16 %v524, %v523
      %v558 = vpack.c.b16 %v526, %v525
      %v559 = vpack.c.b16 %v528, %v527
      %v560 = vpack.c.b16 %v530, %v529
      %v561 = vpack.c.b16 %v532, %v531
      %v562 = vpack.c.b16 %v534, %v533
      %v563 = vpack.c.b16 %v536, %v535
      %v564 = vpack.c.b16 %v538, %v537
      %v565 = vpack.c.b16 %v540, %v539
      %v566 = vpack.c.b16 %v542, %v541
      %v567 = vpack.c.b16 %v544, %v543
      %v568 = vpack.c.b16 %v546, %v545
      %v569 = vpack.c.b16 %v548, %v547
      %v570 = vpack.c.b16 %v550, %v549
      %v592 = vsel %vm324, %v468, 0
      %594 = vmatprep.subr.bf16.mxu0 0
      %595 = vmatpush1.bf16.msra.mxu0 %v551
      %596 = vmatprep.subr.bf16.mxu0 0
      %597 = vmatpush1.bf16.msra.mxu0 %v552
      %598 = vmatprep.subr.bf16.mxu0 0
      %599 = vmatpush1.bf16.msra.mxu0 %v553
      %600 = vmatprep.subr.bf16.mxu0 0
      %601 = vmatpush1.bf16.msra.mxu0 %v554
      %602 = vmatprep.subr.bf16.mxu0 0
      %603 = vmatpush1.bf16.msra.mxu0 %v555
      %604 = vmatprep.subr.bf16.mxu0 0
      %605 = vmatpush1.bf16.msra.mxu0 %v556
      %606 = vmatprep.subr.bf16.mxu0 0
      %607 = vmatpush1.bf16.msra.mxu0 %v557
      %608 = vmatprep.subr.bf16.mxu0 0
      %609 = vmatpush1.bf16.msra.mxu0 %v558
      %610 = vmatprep.subr.bf16.mxu0 0
      %611 = vmatpush1.bf16.msra.mxu0 %v559
      %612 = vmatprep.subr.bf16.mxu0 0
      %613 = vmatpush1.bf16.msra.mxu0 %v560
      %614 = vmatprep.subr.bf16.mxu0 0
      %615 = vmatpush1.bf16.msra.mxu0 %v561
      %616 = vmatprep.subr.bf16.mxu0 0
      %617 = vmatpush1.bf16.msra.mxu0 %v562
      %618 = vmatprep.subr.bf16.mxu0 0
      %619 = vmatpush1.bf16.msra.mxu0 %v563
      %620 = vmatprep.subr.bf16.mxu0 0
      %621 = vmatpush1.bf16.msra.mxu0 %v564
      %622 = vmatprep.subr.bf16.mxu0 0
      %623 = vmatpush1.bf16.msra.mxu0 %v565
      %624 = vmatprep.subr.bf16.mxu0 0
      %625 = vmatpush1.bf16.msra.mxu0 %v566
      %626 = vmatprep.mubr.bf16.mxu0 %v456
      %627 = vmatmul.mubr.bf16.gmra.mrb[0].mxu0 %v444
      %v628 = vpop.f32.mrb[0].mxu0
      %v629 = vadd.f32 0.0, %v628
      %v630 = vpop.f32.mrb[0].mxu0
      %v631 = vpop.f32.mrb[0].mxu0
      %v632 = vadd.f32 0.0, %v631
      %v633 = vpop.f32.mrb[0].mxu0
      %634 = vdwg.mxu0
      %635 = vmatprep.subr.bf16.mxu0 0
      %636 = vmatpush1.bf16.msra.mxu0 %v567
      %637 = vmatprep.subr.bf16.mxu0 0
      %638 = vmatpush1.bf16.msra.mxu0 %v568
      %639 = vmatprep.subr.bf16.mxu0 0
      %640 = vmatpush1.bf16.msra.mxu0 %v569
      %641 = vmatprep.subr.bf16.mxu0 0
      %642 = vmatpush1.bf16.msra.mxu0 %v570
      %643 = vmatprep.subr.bf16.mxu0 0
      %644 = vmatpush1.bf16.msra.mxu0 0
      %645 = vmatprep.subr.bf16.mxu0 0
      %646 = vmatpush1.bf16.msra.mxu0 0
      %647 = vmatprep.subr.bf16.mxu0 0
      %648 = vmatpush1.bf16.msra.mxu0 0
      %649 = vmatprep.subr.bf16.mxu0 0
      %650 = vmatpush1.bf16.msra.mxu0 0
      %651 = vmatprep.subr.bf16.mxu0 0
      %652 = vmatpush1.bf16.msra.mxu0 0
      %653 = vmatprep.subr.bf16.mxu0 0
      %654 = vmatpush1.bf16.msra.mxu0 0
      %655 = vmatprep.subr.bf16.mxu0 0
      %656 = vmatpush1.bf16.msra.mxu0 0
      %657 = vmatprep.subr.bf16.mxu0 0
      %658 = vmatpush1.bf16.msra.mxu0 0
      %659 = vmatprep.subr.bf16.mxu0 0
      %660 = vmatpush1.bf16.msra.mxu0 0
      %661 = vmatprep.subr.bf16.mxu0 0
      %662 = vmatpush1.bf16.msra.mxu0 0
      %663 = vmatprep.subr.bf16.mxu0 0
      %664 = vmatpush1.bf16.msra.mxu0 0
      %665 = vmatprep.subr.bf16.mxu0 0
      %666 = vmatpush1.bf16.msra.mxu0 0
      %667 = vmatprep.mubr.bf16.mxu0 0
      %668 = vmatmul.mubr.bf16.gmra.mrb[0].mxu0 %v592
      %v669 = vpop.f32.mrb[0].mxu0
      %v670 = vadd.f32 %v629, %v669
      %v671 = vpop.f32.mrb[0].mxu0
      %v672 = vpop.f32.mrb[0].mxu0
      %v673 = vadd.f32 %v632, %v672
      %v674 = vpop.f32.mrb[0].mxu0
      %675 = vdwg.mxu0
      %v716 = vunpack.c.l.b16 %v339
      %v717 = vunpack.c.l.b16 %v340
      %v718 = vunpack.c.l.b16 %v341
      %v719 = vunpack.c.l.b16 %v342
      %v720 = vunpack.c.l.b16 %v343
      %v721 = vunpack.c.l.b16 %v344
      %v722 = vunpack.c.l.b16 %v345
      %v723 = vunpack.c.l.b16 %v346
      %v724 = vunpack.c.l.b16 %v347
      %v725 = vunpack.c.l.b16 %v348
      %v726 = vunpack.c.l.b16 %v349
      %v727 = vunpack.c.l.b16 %v350
      %v728 = vunpack.c.l.b16 %v351
      %v729 = vunpack.c.l.b16 %v352
      %v730 = vunpack.c.l.b16 %v353
      %v731 = vunpack.c.l.b16 %v354
      %v732 = vunpack.c.l.b16 %v355
      %v733 = vunpack.c.l.b16 %v356
      %v734 = vunpack.c.l.b16 %v357
      %v735 = vunpack.c.l.b16 %v358
      %v736 = vunpack.c.l.b16 %v359
      %v737 = vunpack.c.l.b16 %v360
      %v738 = vunpack.c.l.b16 %v361
      %v739 = vunpack.c.l.b16 %v362
      %v740 = vunpack.c.l.b16 %v363
      %v741 = vunpack.c.l.b16 %v364
      %v742 = vunpack.c.l.b16 %v365
      %v743 = vunpack.c.l.b16 %v366
      %v744 = vunpack.c.l.b16 %v367
      %v745 = vunpack.c.l.b16 %v368
      %v746 = vunpack.c.l.b16 %v369
      %v747 = vunpack.c.l.b16 %v370
      %v748 = vunpack.c.l.b16 %v371
      %v749 = vunpack.c.l.b16 %v372
      %v750 = vunpack.c.l.b16 %v373
      %v751 = vunpack.c.l.b16 %v374
      %v752 = vunpack.c.l.b16 %v375
      %v753 = vunpack.c.l.b16 %v376
      %v754 = vunpack.c.l.b16 %v377
      %v755 = vunpack.c.l.b16 %v378
      %v756 = vpack.c.b16 %v717, %v716
      %v757 = vpack.c.b16 %v719, %v718
      %v758 = vpack.c.b16 %v721, %v720
      %v759 = vpack.c.b16 %v723, %v722
      %v760 = vpack.c.b16 %v725, %v724
      %v761 = vpack.c.b16 %v727, %v726
      %v762 = vpack.c.b16 %v729, %v728
      %v763 = vpack.c.b16 %v731, %v730
      %v764 = vpack.c.b16 %v733, %v732
      %v765 = vpack.c.b16 %v735, %v734
      %v766 = vpack.c.b16 %v737, %v736
      %v767 = vpack.c.b16 %v739, %v738
      %v768 = vpack.c.b16 %v741, %v740
      %v769 = vpack.c.b16 %v743, %v742
      %v770 = vpack.c.b16 %v745, %v744
      %v771 = vpack.c.b16 %v747, %v746
      %v772 = vpack.c.b16 %v749, %v748
      %v773 = vpack.c.b16 %v751, %v750
      %v774 = vpack.c.b16 %v753, %v752
      %v775 = vpack.c.b16 %v755, %v754
      %v797 = vsel %vm324, %v338, 0
      %799 = vmatprep.subr.bf16.mxu0 0
      %800 = vmatpush1.bf16.msra.mxu0 %v756
      %801 = vmatprep.subr.bf16.mxu0 0
      %802 = vmatpush1.bf16.msra.mxu0 %v757
      %803 = vmatprep.subr.bf16.mxu0 0
      %804 = vmatpush1.bf16.msra.mxu0 %v758
      %805 = vmatprep.subr.bf16.mxu0 0
      %806 = vmatpush1.bf16.msra.mxu0 %v759
      %807 = vmatprep.subr.bf16.mxu0 0
      %808 = vmatpush1.bf16.msra.mxu0 %v760
      %809 = vmatprep.subr.bf16.mxu0 0
      %810 = vmatpush1.bf16.msra.mxu0 %v761
      %811 = vmatprep.subr.bf16.mxu0 0
      %812 = vmatpush1.bf16.msra.mxu0 %v762
      %813 = vmatprep.subr.bf16.mxu0 0
      %814 = vmatpush1.bf16.msra.mxu0 %v763
      %815 = vmatprep.subr.bf16.mxu0 0
      %816 = vmatpush1.bf16.msra.mxu0 %v764
      %817 = vmatprep.subr.bf16.mxu0 0
      %818 = vmatpush1.bf16.msra.mxu0 %v765
      %819 = vmatprep.subr.bf16.mxu0 0
      %820 = vmatpush1.bf16.msra.mxu0 %v766
      %821 = vmatprep.subr.bf16.mxu0 0
      %822 = vmatpush1.bf16.msra.mxu0 %v767
      %823 = vmatprep.subr.bf16.mxu0 0
      %824 = vmatpush1.bf16.msra.mxu0 %v768
      %825 = vmatprep.subr.bf16.mxu0 0
      %826 = vmatpush1.bf16.msra.mxu0 %v769
      %827 = vmatprep.subr.bf16.mxu0 0
      %828 = vmatpush1.bf16.msra.mxu0 %v770
      %829 = vmatprep.subr.bf16.mxu0 0
      %830 = vmatpush1.bf16.msra.mxu0 %v771
      %831 = vmatprep.mubr.bf16.mxu0 %v337
      %832 = vmatmul.mubr.bf16.gmra.mrb[0].mxu0 %v336
      %v833 = vpop.f32.mrb[0].mxu0
      %v834 = vadd.f32 %v670, %v833
      %v835 = vpop.f32.mrb[0].mxu0
      %v836 = vpop.f32.mrb[0].mxu0
      %v837 = vadd.f32 %v673, %v836
      %v838 = vpop.f32.mrb[0].mxu0
      %839 = vdwg.mxu0
      %840 = vmatprep.subr.bf16.mxu0 0
      %841 = vmatpush1.bf16.msra.mxu0 %v772
      %842 = vmatprep.subr.bf16.mxu0 0
      %843 = vmatpush1.bf16.msra.mxu0 %v773
      %844 = vmatprep.subr.bf16.mxu0 0
      %845 = vmatpush1.bf16.msra.mxu0 %v774
      %846 = vmatprep.subr.bf16.mxu0 0
      %847 = vmatpush1.bf16.msra.mxu0 %v775
      %848 = vmatprep.subr.bf16.mxu0 0
      %849 = vmatpush1.bf16.msra.mxu0 0
      %850 = vmatprep.subr.bf16.mxu0 0
      %851 = vmatpush1.bf16.msra.mxu0 0
      %852 = vmatprep.subr.bf16.mxu0 0
      %853 = vmatpush1.bf16.msra.mxu0 0
      %854 = vmatprep.subr.bf16.mxu0 0
      %855 = vmatpush1.bf16.msra.mxu0 0
      %856 = vmatprep.subr.bf16.mxu0 0
      %857 = vmatpush1.bf16.msra.mxu0 0
      %858 = vmatprep.subr.bf16.mxu0 0
      %859 = vmatpush1.bf16.msra.mxu0 0
      %860 = vmatprep.subr.bf16.mxu0 0
      %861 = vmatpush1.bf16.msra.mxu0 0
      %862 = vmatprep.subr.bf16.mxu0 0
      %863 = vmatpush1.bf16.msra.mxu0 0
      %864 = vmatprep.subr.bf16.mxu0 0
      %865 = vmatpush1.bf16.msra.mxu0 0
      %866 = vmatprep.subr.bf16.mxu0 0
      %867 = vmatpush1.bf16.msra.mxu0 0
      %868 = vmatprep.subr.bf16.mxu0 0
      %869 = vmatpush1.bf16.msra.mxu0 0
      %870 = vmatprep.subr.bf16.mxu0 0
      %871 = vmatpush1.bf16.msra.mxu0 0
      %872 = vmatprep.mubr.bf16.mxu0 0
      %873 = vmatmul.mubr.bf16.gmra.mrb[0].mxu0 %v797
      %v874 = vpop.f32.mrb[0].mxu0
      %v875 = vadd.f32 %v834, %v874
      %v876 = vpop.f32.mrb[0].mxu0
      %v877 = vpop.f32.mrb[0].mxu0
      %v878 = vadd.f32 %v837, %v877
      %v879 = vpop.f32.mrb[0].mxu0
      %880 = vdwg.mxu0
      %v881 = vld [vmem:[#allocation2] sm:$0xfc]
      %v882 = vld [vmem:[#allocation2 + $0x8] sm:$0xfc]
      %v883 = vld [vmem:[#allocation2 + $0x10] sm:$0xfc]
      %v884 = vld [vmem:[#allocation2 + $0x30] sm:$0x3]
      %v885 = vld [vmem:[#allocation2 + $0x38] sm:$0x3]
      %v886 = vld [vmem:[#allocation2 + $0x40] sm:$0x3]
      %v887 = vpack.c.bf16 %v333, %v881
      %v888 = vpack.c.bf16 %v334, %v882
      %v889 = vpack.c.bf16 %v335, %v883
      %v890 = vpack.c.bf16 %v884, %v884
      %v891 = vpack.c.bf16 %v885, %v885
      %v892 = vpack.c.bf16 %v886, %v886
      %s893 = scalar_lea.vmem %s3, 320
      %v894 = vld [vmem:[%s893] sm:$0xf]
      %v895 = vld [vmem:[%s893 + $0x4] sm:$0xf]
      %v896 = vld [vmem:[%s893 + $0x8] sm:$0xf]
      %v897 = vld [vmem:[%s893 + $0xc] sm:$0xf]
      %v898 = vld [vmem:[%s893 + $0x10] sm:$0xf]
      %v899 = vld [vmem:[%s893 + $0x14] sm:$0xf]
      %v900 = vld [vmem:[%s893 + $0x18] sm:$0xf]
      %v901 = vld [vmem:[%s893 + $0x1c] sm:$0xf]
      %v902 = vld [vmem:[%s893 + $0x20] sm:$0xf]
      %v903 = vld [vmem:[%s893 + $0x24] sm:$0xf]
      %v904 = vld [vmem:[%s893 + $0x28] sm:$0xf]
      %v905 = vld [vmem:[%s893 + $0x2c] sm:$0xf]
      %v906 = vld [vmem:[%s893 + $0x30] sm:$0xf]
      %v907 = vld [vmem:[%s893 + $0x34] sm:$0xf]
      %v908 = vld [vmem:[%s893 + $0x38] sm:$0xf]
      %v909 = vld [vmem:[%s893 + $0x3c] sm:$0xf]
      %v910 = vld [vmem:[%s893 + $0x40] sm:$0xf]
      %v911 = vld [vmem:[%s893 + $0x44] sm:$0xf]
      %v912 = vld [vmem:[%s893 + $0x48] sm:$0xf]
      %v913 = vld [vmem:[%s893 + $0x4c] sm:$0xf]
      %v914 = vld [vmem:[%s893 + $0x50] sm:$0xf]
      %v915 = vld [vmem:[%s893 + $0x54] sm:$0xf]
      %v916 = vld [vmem:[%s893 + $0x58] sm:$0xf]
      %v917 = vld [vmem:[%s893 + $0x5c] sm:$0xf]
      %v918 = vld [vmem:[%s893 + $0x60] sm:$0xf]
      %v919 = vld [vmem:[%s893 + $0x64] sm:$0xf]
      %v920 = vld [vmem:[%s893 + $0x68] sm:$0xf]
      %v921 = vld [vmem:[%s893 + $0x6c] sm:$0xf]
      %v922 = vld [vmem:[%s893 + $0x70] sm:$0xf]
      %v923 = vld [vmem:[%s893 + $0x74] sm:$0xf]
      %v924 = vld [vmem:[%s893 + $0x78] sm:$0xf]
      %v925 = vld [vmem:[%s893 + $0x7c] sm:$0xf]
      %v926 = vld [vmem:[%s893 + $0x80] sm:$0xf]
      %v927 = vld [vmem:[%s893 + $0x84] sm:$0xf]
      %v928 = vld [vmem:[%s893 + $0x88] sm:$0xf]
      %v929 = vld [vmem:[%s893 + $0x8c] sm:$0xf]
      %v930 = vld [vmem:[%s893 + $0x90] sm:$0xf]
      %v931 = vld [vmem:[%s893 + $0x94] sm:$0xf]
      %v932 = vld [vmem:[%s893 + $0x98] sm:$0xf]
      %v933 = vld [vmem:[%s893 + $0x9c] sm:$0xf]
      %vm940 = vcmask 1046528
      %v941 = vrot.slane %v887, 1
      %v942 = vrot.slane %v890, 1
      %v943 = vsel %vm940, %v941, %v942
      %v944 = vrot.slane %v888, 1
      %v945 = vrot.slane %v891, 1
      %v946 = vsel %vm940, %v944, %v945
      %v947 = vrot.slane %v889, 1
      %v948 = vrot.slane %v892, 1
      %v949 = vsel %vm940, %v947, %v948
      %v992 = vunpack.c.l.b16 %v894
      %v993 = vunpack.c.l.b16 %v895
      %v994 = vunpack.c.l.b16 %v896
      %v995 = vunpack.c.l.b16 %v897
      %v996 = vunpack.c.l.b16 %v898
      %v997 = vunpack.c.l.b16 %v899
      %v998 = vunpack.c.l.b16 %v900
      %v999 = vunpack.c.l.b16 %v901
      %v1000 = vunpack.c.l.b16 %v902
      %v1001 = vunpack.c.l.b16 %v903
      %v1002 = vunpack.c.l.b16 %v904
      %v1003 = vunpack.c.l.b16 %v905
      %v1004 = vunpack.c.l.b16 %v906
      %v1005 = vunpack.c.l.b16 %v907
      %v1006 = vunpack.c.l.b16 %v908
      %v1007 = vunpack.c.l.b16 %v909
      %v1008 = vunpack.c.l.b16 %v910
      %v1009 = vunpack.c.l.b16 %v911
      %v1010 = vunpack.c.l.b16 %v912
      %v1011 = vunpack.c.l.b16 %v913
      %v1012 = vunpack.c.l.b16 %v914
      %v1013 = vunpack.c.l.b16 %v915
      %v1014 = vunpack.c.l.b16 %v916
      %v1015 = vunpack.c.l.b16 %v917
      %v1016 = vunpack.c.l.b16 %v918
      %v1017 = vunpack.c.l.b16 %v919
      %v1018 = vunpack.c.l.b16 %v920
      %v1019 = vunpack.c.l.b16 %v921
      %v1020 = vunpack.c.l.b16 %v922
      %v1021 = vunpack.c.l.b16 %v923
      %v1022 = vunpack.c.l.b16 %v924
      %v1023 = vunpack.c.l.b16 %v925
      %v1024 = vunpack.c.l.b16 %v926
      %v1025 = vunpack.c.l.b16 %v927
      %v1026 = vunpack.c.l.b16 %v928
      %v1027 = vunpack.c.l.b16 %v929
      %v1028 = vunpack.c.l.b16 %v930
      %v1029 = vunpack.c.l.b16 %v931
      %v1030 = vunpack.c.l.b16 %v932
      %v1031 = vunpack.c.l.b16 %v933
      %v1032 = vpack.c.b16 %v993, %v992
      %v1033 = vpack.c.b16 %v995, %v994
      %v1034 = vpack.c.b16 %v997, %v996
      %v1035 = vpack.c.b16 %v999, %v998
      %v1036 = vpack.c.b16 %v1001, %v1000
      %v1037 = vpack.c.b16 %v1003, %v1002
      %v1038 = vpack.c.b16 %v1005, %v1004
      %v1039 = vpack.c.b16 %v1007, %v1006
      %v1040 = vpack.c.b16 %v1009, %v1008
      %v1041 = vpack.c.b16 %v1011, %v1010
      %v1042 = vpack.c.b16 %v1013, %v1012
      %v1043 = vpack.c.b16 %v1015, %v1014
      %v1044 = vpack.c.b16 %v1017, %v1016
      %v1045 = vpack.c.b16 %v1019, %v1018
      %v1046 = vpack.c.b16 %v1021, %v1020
      %v1047 = vpack.c.b16 %v1023, %v1022
      %v1048 = vpack.c.b16 %v1025, %v1024
      %v1049 = vpack.c.b16 %v1027, %v1026
      %v1050 = vpack.c.b16 %v1029, %v1028
      %v1051 = vpack.c.b16 %v1031, %v1030
      %v1073 = vsel %vm324, %v949, 0
      %1075 = vmatprep.subr.bf16.mxu0 0
      %1076 = vmatpush1.bf16.msra.mxu0 %v1032
      %1077 = vmatprep.subr.bf16.mxu0 0
      %1078 = vmatpush1.bf16.msra.mxu0 %v1033
      %1079 = vmatprep.subr.bf16.mxu0 0
      %1080 = vmatpush1.bf16.msra.mxu0 %v1034
      %1081 = vmatprep.subr.bf16.mxu0 0
      %1082 = vmatpush1.bf16.msra.mxu0 %v1035
      %1083 = vmatprep.subr.bf16.mxu0 0
      %1084 = vmatpush1.bf16.msra.mxu0 %v1036
      %1085 = vmatprep.subr.bf16.mxu0 0
      %1086 = vmatpush1.bf16.msra.mxu0 %v1037
      %1087 = vmatprep.subr.bf16.mxu0 0
      %1088 = vmatpush1.bf16.msra.mxu0 %v1038
      %1089 = vmatprep.subr.bf16.mxu0 0
      %1090 = vmatpush1.bf16.msra.mxu0 %v1039
      %1091 = vmatprep.subr.bf16.mxu0 0
      %1092 = vmatpush1.bf16.msra.mxu0 %v1040
      %1093 = vmatprep.subr.bf16.mxu0 0
      %1094 = vmatpush1.bf16.msra.mxu0 %v1041
      %1095 = vmatprep.subr.bf16.mxu0 0
      %1096 = vmatpush1.bf16.msra.mxu0 %v1042
      %1097 = vmatprep.subr.bf16.mxu0 0
      %1098 = vmatpush1.bf16.msra.mxu0 %v1043
      %1099 = vmatprep.subr.bf16.mxu0 0
      %1100 = vmatpush1.bf16.msra.mxu0 %v1044
      %1101 = vmatprep.subr.bf16.mxu0 0
      %1102 = vmatpush1.bf16.msra.mxu0 %v1045
      %1103 = vmatprep.subr.bf16.mxu0 0
      %1104 = vmatpush1.bf16.msra.mxu0 %v1046
      %1105 = vmatprep.subr.bf16.mxu0 0
      %1106 = vmatpush1.bf16.msra.mxu0 %v1047
      %1107 = vmatprep.mubr.bf16.mxu0 %v946
      %1108 = vmatmul.mubr.bf16.gmra.mrb[0].mxu0 %v943
      %v1109 = vpop.f32.mrb[0].mxu0
      %v1110 = vadd.f32 0.0, %v1109
      %v1111 = vpop.f32.mrb[0].mxu0
      %v1112 = vpop.f32.mrb[0].mxu0
      %v1113 = vadd.f32 0.0, %v1112
      %v1114 = vpop.f32.mrb[0].mxu0
      %1115 = vdwg.mxu0
      %1116 = vmatprep.subr.bf16.mxu0 0
      %1117 = vmatpush1.bf16.msra.mxu0 %v1048
      %1118 = vmatprep.subr.bf16.mxu0 0
      %1119 = vmatpush1.bf16.msra.mxu0 %v1049
      %1120 = vmatprep.subr.bf16.mxu0 0
      %1121 = vmatpush1.bf16.msra.mxu0 %v1050
      %1122 = vmatprep.subr.bf16.mxu0 0
      %1123 = vmatpush1.bf16.msra.mxu0 %v1051
      %1124 = vmatprep.subr.bf16.mxu0 0
      %1125 = vmatpush1.bf16.msra.mxu0 0
      %1126 = vmatprep.subr.bf16.mxu0 0
      %1127 = vmatpush1.bf16.msra.mxu0 0
      %1128 = vmatprep.subr.bf16.mxu0 0
      %1129 = vmatpush1.bf16.msra.mxu0 0
      %1130 = vmatprep.subr.bf16.mxu0 0
      %1131 = vmatpush1.bf16.msra.mxu0 0
      %1132 = vmatprep.subr.bf16.mxu0 0
      %1133 = vmatpush1.bf16.msra.mxu0 0
      %1134 = vmatprep.subr.bf16.mxu0 0
      %1135 = vmatpush1.bf16.msra.mxu0 0
      %1136 = vmatprep.subr.bf16.mxu0 0
      %1137 = vmatpush1.bf16.msra.mxu0 0
      %1138 = vmatprep.subr.bf16.mxu0 0
      %1139 = vmatpush1.bf16.msra.mxu0 0
      %1140 = vmatprep.subr.bf16.mxu0 0
      %1141 = vmatpush1.bf16.msra.mxu0 0
      %1142 = vmatprep.subr.bf16.mxu0 0
      %1143 = vmatpush1.bf16.msra.mxu0 0
      %1144 = vmatprep.subr.bf16.mxu0 0
      %1145 = vmatpush1.bf16.msra.mxu0 0
      %1146 = vmatprep.subr.bf16.mxu0 0
      %1147 = vmatpush1.bf16.msra.mxu0 0
      %1148 = vmatprep.mubr.bf16.mxu0 0
      %1149 = vmatmul.mubr.bf16.gmra.mrb[0].mxu0 %v1073
      %v1150 = vpop.f32.mrb[0].mxu0
      %v1151 = vadd.f32 %v1110, %v1150
      %v1152 = vpop.f32.mrb[0].mxu0
      %v1153 = vpop.f32.mrb[0].mxu0
      %v1154 = vadd.f32 %v1113, %v1153
      %v1155 = vpop.f32.mrb[0].mxu0
      %1156 = vdwg.mxu0
      %v1157 = vadd.f32 %v875, %v1151
      %v1158 = vadd.f32 %v878, %v1154
      %v1159 = vld [vmem:[%s4] sm:$0x1]
      %v1161 = vlaneseq
      %v1162 = vshrl.u32 %v1161, 7
      %v1163 = vsub.s32 0, %v1162
      %v1164 = vrot.slane %v1159, %v1163
      %v1166 = vadd.f32 %v1157, %v1164
      %v1167 = vadd.f32 %v1158, %v1164
      %1168 = vst [vmem:[%s224] sm:$0xff] %v1166
      %1169 = vst [vmem:[%s224 + $0x8] sm:$0xff] %v1167
      %p1170 = scmp.lt.s32.totalorder %s16, 1
      %s1171 = scalar_select %p1170, %s16, 1
      %s1172 = smul.addr %s1171, 2
      %s1173 = smul.addr %s1172, 8
      %s1174 = scalar_lea.vmem %s5, %s1173
      // Predicated region
      $region41: #{dense_block_forward.5} parent=39 // pred_check
        %p1175 = pneg %p144
      $region42: #{dense_block_forward.5} parent=39 // pred_check_branch
        %1177 = sbr.rel (%p1175) target = $region44
      $region43: #{dense_block_forward.5} parent=39 // pred_region
        _
      $region44: #{dense_block_forward.5} parent=39 // pred_fallthru
        _
    $region40: #{dense_block_forward.5} parent=5 // pred_fallthru
      _
    %p1178 = scmp.le.s32.totalorder 2, %s11
    // Predicated region
    $region45: #{dense_block_forward.5} parent=5 // pred_check
      %p1179 = pneg %p1178
    $region46: #{dense_block_forward.5} parent=5 // pred_check_branch
      %1181 = sbr.rel (%p1179) target = $region48
    $region47: #{dense_block_forward.5} parent=5 // pred_region
      %s1182 = ssub.s32 %s11, 2
      // Predicated region
      $region49: #{dense_block_forward.5} parent=47 // pred_check
        %p1183 = pneg %p150
      $region50: #{dense_block_forward.5} parent=47 // pred_check_branch
        %1185 = sbr.rel (%p1183) target = $region52
      $region51: #{dense_block_forward.5} parent=47 // pred_region
        %p1186 = scmp.lt.s32.totalorder %s17, 1
        %s1187 = scalar_select %p1186, %s17, 1
        %s1188 = smul.addr %s1187, 2
        %s1189 = smul.addr %s1188, 8
        %s1190 = scalar_lea.vmem %s5, %s1189
      $region52: #{dense_block_forward.5} parent=47 // pred_fallthru
        _
    $region48: #{dense_block_forward.5} parent=5 // pred_fallthru
      _
  $region6: #{dense_block_forward.5} parent=0 // loop_footer
    %s15 = sadd.s32 1, %s11
  $region7: #{dense_block_forward.5} parent=0 // loop_footer_branch
    %10 = sbr.rel target = $region3
  $region8: #{dense_block_forward.5} parent=0 // loop_exit
    _

</llo_original>
